<compile_context>
chip_gen: v6e
topology: v6e:2x2x1
jax: 0.10.0
libtpu: 0.0.40
codegen_flags: <defaults>
</compile_context>

<pallas_src>
import numpy as np

import jax
import jax.numpy as jnp
from jax.experimental import pallas as pl
from jax.experimental.pallas import tpu as pltpu

# Module hyper-parameters (consistent with the PyTorch __init__).
CONV_SLICES = 4       # conv_slices
KERNEL_SIZE = 3       # kernel_size
NUM_CLASSES = 10      # num_classes
IMAGE_DIM = (16, 16)  # image_dim
HIDDEN = 512          # nn.Linear(input_size, 512)


# ----------------------------------------------------------------------------
# Fused kernel: conv1 + ReLU + conv2 + ReLU + flatten + fc1 + ReLU + fc2 + softmax
# One grid step processes a tile of TB images; all weights are VMEM-resident.
# ----------------------------------------------------------------------------
def kf_nol_kernel(x_ref, m1_ref, b1_ref, m2_ref, b2_ref,
                  fc1w_ref, fc1b_ref, fc2w_ref, fc2b_ref, out_ref):
    # conv1 (expressed as a dense matmul over flattened input pixels) + ReLU
    h = jnp.dot(x_ref[...], m1_ref[...], preferred_element_type=jnp.float32)
    h = jnp.maximum(h + b1_ref[...], 0.0)                    # (TB, C*H1*W1)

    # conv2 + ReLU; columns of m2 are already in torch's NCHW flatten order,
    # so this IS x.view(-1, input_size).
    h = jnp.dot(h, m2_ref[...], preferred_element_type=jnp.float32)
    h = jnp.maximum(h + b2_ref[...], 0.0)                    # (TB, D=576)

    # fc1 + ReLU: bf16 operands feed the MXU at full rate, f32 accumulate.
    h = jnp.dot(h.astype(jnp.bfloat16), fc1w_ref[...],
                preferred_element_type=jnp.float32)
    h = jnp.maximum(h + fc1b_ref[...], 0.0)                  # (TB, 512)

    # fc2 + softmax (module in eval mode)
    logits = jnp.dot(h, fc2w_ref[...], preferred_element_type=jnp.float32)
    logits = logits + fc2b_ref[...]                          # (TB, 10)
    m = jnp.max(logits, axis=-1, keepdims=True)
    e = jnp.exp(logits - m)
    out_ref[...] = e / jnp.sum(e, axis=-1, keepdims=True)


# ----------------------------------------------------------------------------
# Weight repacking: fold the (tiny) valid convolutions into dense matrices so
# the kernel is pure MXU work.  Exact (no approximation).
# ----------------------------------------------------------------------------
def _conv_to_dense(w, h_in, w_in):
    """w: (Cout, Cin, K, K). Returns (Cin*Hin*Win, Cout*Hout*Wout) f32 matrix
    such that  flat(conv_valid(x, w))  ==  flat(x) @ M   (NCHW flatten order)."""
    w = np.asarray(w, np.float32)
    c_out, c_in, k, _ = w.shape
    h_out, w_out = h_in - k + 1, w_in - k + 1
    m = np.zeros((c_in, h_in, w_in, c_out, h_out, w_out), np.float32)
    ho = np.arange(h_out)[:, None]
    wo = np.arange(w_out)[None, :]
    for co in range(c_out):
        for ci in range(c_in):
            for dy in range(k):
                for dx in range(k):
                    m[ci, ho + dy, wo + dx, co, ho, wo] += w[co, ci, dy, dx]
    return m.reshape(c_in * h_in * w_in, c_out * h_out * w_out)


def prepare_kernel_params(params):
    H, W = IMAGE_DIM
    K, C = KERNEL_SIZE, CONV_SLICES
    H1, W1 = H - K + 1, W - K + 1
    H2, W2 = H1 - K + 1, W1 - K + 1

    m1 = _conv_to_dense(params["w1"], H, W)        # (256, C*H1*W1)
    m2 = _conv_to_dense(params["w2"], H1, W1)      # (C*H1*W1, C*H2*W2)
    b1_vec = np.repeat(np.asarray(params["b1"], np.float32), H1 * W1)[None, :]
    b2_vec = np.repeat(np.asarray(params["b2"], np.float32), H2 * W2)[None, :]

    return {
        "m1": jnp.asarray(m1, jnp.float32),
        "b1_vec": jnp.asarray(b1_vec, jnp.float32),
        "m2": jnp.asarray(m2, jnp.float32),
        "b2_vec": jnp.asarray(b2_vec, jnp.float32),
        "fc1_w": params["fc1_w"].astype(jnp.bfloat16),   # bf16 fc1 weights
        "fc1_b": params["fc1_b"].reshape(1, -1).astype(jnp.float32),
        "fc2_w": params["fc2_w"].astype(jnp.float32),
        "fc2_b": params["fc2_b"].reshape(1, -1).astype(jnp.float32),
    }


# ----------------------------------------------------------------------------
# Wrapper
# ----------------------------------------------------------------------------
def kf_nol_forward(x, kparams, *, tb=256):
    N = x.shape[0]
    H, W = IMAGE_DIM
    HW = H * W

    # Batch tile: multiple of 8, capped at 256 (sized for v7x's 64 MiB VMEM).
    tb = int(min(tb, max(8, ((N + 7) // 8) * 8)))
    n_pad = ((N + tb - 1) // tb) * tb

    x2 = x.reshape(N, HW).astype(jnp.float32)
    if n_pad != N:
        x2 = jnp.pad(x2, ((0, n_pad - N), (0, 0)))

    out = pl.pallas_call(
        kf_nol_kernel,
        out_shape=jax.ShapeDtypeStruct((n_pad, NUM_CLASSES), jnp.float32),
        grid_spec=pltpu.PrefetchScalarGridSpec(
            num_scalar_prefetch=0,
            grid=(n_pad // tb,),
            in_specs=[
                pl.BlockSpec((tb, HW), lambda i: (i, 0)),
                # weights / biases: grid-invariant -> DMA'd once, VMEM-resident
                pl.BlockSpec(kparams["m1"].shape, lambda i: (0, 0)),
                pl.BlockSpec(kparams["b1_vec"].shape, lambda i: (0, 0)),
                pl.BlockSpec(kparams["m2"].shape, lambda i: (0, 0)),
                pl.BlockSpec(kparams["b2_vec"].shape, lambda i: (0, 0)),
                pl.BlockSpec(kparams["fc1_w"].shape, lambda i: (0, 0)),
                pl.BlockSpec(kparams["fc1_b"].shape, lambda i: (0, 0)),
                pl.BlockSpec(kparams["fc2_w"].shape, lambda i: (0, 0)),
                pl.BlockSpec(kparams["fc2_b"].shape, lambda i: (0, 0)),
            ],
            out_specs=pl.BlockSpec((tb, NUM_CLASSES), lambda i: (i, 0)),
        ),
        compiler_params=pltpu.CompilerParams(
            dimension_semantics=("parallel",),
            vmem_limit_bytes=48 * 1024 * 1024,
        ),
    )(x2, kparams["m1"], kparams["b1_vec"], kparams["m2"], kparams["b2_vec"],
      kparams["fc1_w"], kparams["fc1_b"], kparams["fc2_w"], kparams["fc2_b"])

    return out[:N]


# ----------------------------------------------------------------------------
# Deterministic parameter init (shapes match the PyTorch module, f32 masters)
# ----------------------------------------------------------------------------
def init_params(key):
    C, K = CONV_SLICES, KERNEL_SIZE
    H, W = IMAGE_DIM
    H2, W2 = H - 2 * (K - 1), W - 2 * (K - 1)
    D = C * H2 * W2

    ks = jax.random.split(key, 8)
    # TODO(synk): KF_Layer filter bank is not provided; conv1 weights use a
    # deterministic random init instead of the KF filters.
    w1 = jax.random.normal(ks[0], (C, 1, K, K), jnp.float32) * 0.3
    b1 = jax.random.normal(ks[1], (C,), jnp.float32) * 0.1
    w2 = jax.random.normal(ks[2], (C, C, K, K), jnp.float32) * (1.0 / (C * K * K)) ** 0.5
    b2 = jax.random.normal(ks[3], (C,), jnp.float32) * 0.1
    fc1_w = jax.random.normal(ks[4], (D, HIDDEN), jnp.float32) * (1.0 / D) ** 0.5
    fc1_b = jax.random.normal(ks[5], (HIDDEN,), jnp.float32) * 0.05
    fc2_w = jax.random.normal(ks[6], (HIDDEN, NUM_CLASSES), jnp.float32) * (1.0 / HIDDEN) ** 0.5
    fc2_b = jax.random.normal(ks[7], (NUM_CLASSES,), jnp.float32) * 0.05

    return {"w1": w1, "b1": b1, "w2": w2, "b2": b2,
            "fc1_w": fc1_w, "fc1_b": fc1_b, "fc2_w": fc2_w, "fc2_b": fc2_b}


def reference_forward(x, params):
    """Pure-JAX f32 reference mirroring the PyTorch forward (eval mode)."""
    hi = jax.lax.Precision.HIGHEST
    dn = jax.lax.conv_dimension_numbers(x.shape, params["w1"].shape,
                                        ("NCHW", "OIHW", "NCHW"))
    h = jax.lax.conv_general_dilated(x, params["w1"], (1, 1), "VALID",
                                     dimension_numbers=dn, precision=hi)
    h = jax.nn.relu(h + params["b1"].reshape(1, -1, 1, 1))
    dn2 = jax.lax.conv_dimension_numbers(h.shape, params["w2"].shape,
                                         ("NCHW", "OIHW", "NCHW"))
    h = jax.lax.conv_general_dilated(h, params["w2"], (1, 1), "VALID",
                                     dimension_numbers=dn2, precision=hi)
    h = jax.nn.relu(h + params["b2"].reshape(1, -1, 1, 1))
    h = h.reshape(h.shape[0], -1)                       # NCHW flatten (== view)
    h = jax.nn.relu(jnp.dot(h, params["fc1_w"], precision=hi)
                    + params["fc1_b"][None, :])
    logits = jnp.dot(h, params["fc2_w"], precision=hi) + params["fc2_b"][None, :]
    return jax.nn.softmax(logits, axis=1)


if __name__ == "__main__":
    key = jax.random.PRNGKey(0)
    k_x, k_x2, k_p = jax.random.split(key, 3)

    params = init_params(k_p)
    kparams = prepare_kernel_params(params)

    # Small batch (NCHW input, as the PyTorch module expects).
    N = 2
    x = jax.random.normal(k_x, (N, 1, IMAGE_DIM[0], IMAGE_DIM[1]), jnp.float32)
    out = jax.block_until_ready(kf_nol_forward(x, kparams))
    ref = reference_forward(x, params)
    assert out.shape == (N, NUM_CLASSES)
    assert bool(jnp.all(jnp.isfinite(out)))
    assert bool(jnp.allclose(jnp.sum(out, axis=1), 1.0, atol=1e-4))
    assert bool(jnp.allclose(out, ref, atol=5e-3, rtol=5e-2))

    # Larger batch: exercises the multi-step grid (resident weights) + padding.
    N2 = 40
    x2 = jax.random.normal(k_x2, (N2, 1, IMAGE_DIM[0], IMAGE_DIM[1]), jnp.float32)
    out2 = jax.block_until_ready(kf_nol_forward(x2, kparams, tb=16))
    ref2 = reference_forward(x2, params)
    assert out2.shape == (N2, NUM_CLASSES)
    assert bool(jnp.allclose(out2, ref2, atol=5e-3, rtol=5e-2))

    print("KERNEL_OK")
</pallas_src>

<mosaic_0001>
module attributes {stable_mosaic.version = 11 : i64} {
  func.func @kf_nol_kernel(%arg0: i32, %arg1: memref<8x256xf32, #tpu.memory_space<vmem>>, %arg2: memref<256x784xf32, #tpu.memory_space<vmem>>, %arg3: memref<1x784xf32, #tpu.memory_space<vmem>>, %arg4: memref<784x576xf32, #tpu.memory_space<vmem>>, %arg5: memref<1x576xf32, #tpu.memory_space<vmem>>, %arg6: memref<576x512xbf16, #tpu.memory_space<vmem>>, %arg7: memref<1x512xf32, #tpu.memory_space<vmem>>, %arg8: memref<512x10xf32, #tpu.memory_space<vmem>>, %arg9: memref<1x10xf32, #tpu.memory_space<vmem>>, %arg10: memref<8x10xf32, #tpu.memory_space<vmem>>) attributes {dimension_semantics = [#tpu.dimension_semantics<parallel>], iteration_bounds = array<i64: 1>, scalar_prefetch = 0 : i64, scratch_operands = 0 : i64, tpu.core_type = #tpu.core_type<tc>, window_params = [{transform_indices = @transform_0, window_bounds = array<i64: 8, 256>}, {pipeline_mode = #tpu.pipeline_mode<synchronous>, transform_indices = @transform_1, window_bounds = array<i64: 256, 784>}, {pipeline_mode = #tpu.pipeline_mode<synchronous>, transform_indices = @transform_2, window_bounds = array<i64: 1, 784>}, {pipeline_mode = #tpu.pipeline_mode<synchronous>, transform_indices = @transform_3, window_bounds = array<i64: 784, 576>}, {pipeline_mode = #tpu.pipeline_mode<synchronous>, transform_indices = @transform_4, window_bounds = array<i64: 1, 576>}, {pipeline_mode = #tpu.pipeline_mode<synchronous>, transform_indices = @transform_5, window_bounds = array<i64: 576, 512>}, {pipeline_mode = #tpu.pipeline_mode<synchronous>, transform_indices = @transform_6, window_bounds = array<i64: 1, 512>}, {pipeline_mode = #tpu.pipeline_mode<synchronous>, transform_indices = @transform_7, window_bounds = array<i64: 512, 10>}, {pipeline_mode = #tpu.pipeline_mode<synchronous>, transform_indices = @transform_8, window_bounds = array<i64: 1, 10>}, {transform_indices = @transform_9, window_bounds = array<i64: 8, 10>}]} {
    %c0 = arith.constant 0 : index
    %c0_0 = arith.constant 0 : index
    %0 = vector.load %arg1[%c0, %c0_0] : memref<8x256xf32, #tpu.memory_space<vmem>>, vector<8x256xf32>
    %c0_1 = arith.constant 0 : index
    %c0_2 = arith.constant 0 : index
    %1 = vector.load %arg2[%c0_1, %c0_2] : memref<256x784xf32, #tpu.memory_space<vmem>>, vector<256x784xf32>
    %cst = arith.constant dense<0.000000e+00> : vector<8x784xf32>
    %2 = tpu.matmul %0, %1, %cst {dimension_numbers = #tpu.dot_dimension_numbers<[1], [0], [0], [1], [0, 0, 1, 1], [], []>} : vector<8x256xf32>, vector<256x784xf32>, vector<8x784xf32> -> vector<8x784xf32>
    %c0_3 = arith.constant 0 : index
    %c0_4 = arith.constant 0 : index
    %3 = vector.load %arg3[%c0_3, %c0_4] : memref<1x784xf32, #tpu.memory_space<vmem>>, vector<1x784xf32>
    %4 = vector.broadcast %3 : vector<1x784xf32> to vector<8x784xf32>
    %5 = arith.addf %2, %4 : vector<8x784xf32>
    %cst_5 = arith.constant 0.000000e+00 : f32
    %6 = vector.broadcast %cst_5 : f32 to vector<8x784xf32>
    %7 = arith.maximumf %5, %6 : vector<8x784xf32>
    %c0_6 = arith.constant 0 : index
    %c0_7 = arith.constant 0 : index
    %8 = vector.load %arg4[%c0_6, %c0_7] : memref<784x576xf32, #tpu.memory_space<vmem>>, vector<784x576xf32>
    %cst_8 = arith.constant dense<0.000000e+00> : vector<8x576xf32>
    %9 = tpu.matmul %7, %8, %cst_8 {dimension_numbers = #tpu.dot_dimension_numbers<[1], [0], [0], [1], [0, 0, 1, 1], [], []>} : vector<8x784xf32>, vector<784x576xf32>, vector<8x576xf32> -> vector<8x576xf32>
    %c0_9 = arith.constant 0 : index
    %c0_10 = arith.constant 0 : index
    %10 = vector.load %arg5[%c0_9, %c0_10] : memref<1x576xf32, #tpu.memory_space<vmem>>, vector<1x576xf32>
    %11 = vector.broadcast %10 : vector<1x576xf32> to vector<8x576xf32>
    %12 = arith.addf %9, %11 : vector<8x576xf32>
    %cst_11 = arith.constant 0.000000e+00 : f32
    %13 = vector.broadcast %cst_11 : f32 to vector<8x576xf32>
    %14 = arith.maximumf %12, %13 : vector<8x576xf32>
    %15 = arith.truncf %14 : vector<8x576xf32> to vector<8x576xbf16>
    %c0_12 = arith.constant 0 : index
    %c0_13 = arith.constant 0 : index
    %16 = vector.load %arg6[%c0_12, %c0_13] : memref<576x512xbf16, #tpu.memory_space<vmem>>, vector<576x512xbf16>
    %cst_14 = arith.constant dense<0.000000e+00> : vector<8x512xf32>
    %17 = tpu.matmul %15, %16, %cst_14 {dimension_numbers = #tpu.dot_dimension_numbers<[1], [0], [0], [1], [0, 0, 1, 1], [], []>} : vector<8x576xbf16>, vector<576x512xbf16>, vector<8x512xf32> -> vector<8x512xf32>
    %c0_15 = arith.constant 0 : index
    %c0_16 = arith.constant 0 : index
    %18 = vector.load %arg7[%c0_15, %c0_16] : memref<1x512xf32, #tpu.memory_space<vmem>>, vector<1x512xf32>
    %19 = vector.broadcast %18 : vector<1x512xf32> to vector<8x512xf32>
    %20 = arith.addf %17, %19 : vector<8x512xf32>
    %cst_17 = arith.constant 0.000000e+00 : f32
    %21 = vector.broadcast %cst_17 : f32 to vector<8x512xf32>
    %22 = arith.maximumf %20, %21 : vector<8x512xf32>
    %c0_18 = arith.constant 0 : index
    %c0_19 = arith.constant 0 : index
    %23 = vector.load %arg8[%c0_18, %c0_19] : memref<512x10xf32, #tpu.memory_space<vmem>>, vector<512x10xf32>
    %cst_20 = arith.constant dense<0.000000e+00> : vector<8x10xf32>
    %24 = tpu.matmul %22, %23, %cst_20 {dimension_numbers = #tpu.dot_dimension_numbers<[1], [0], [0], [1], [0, 0, 1, 1], [], []>} : vector<8x512xf32>, vector<512x10xf32>, vector<8x10xf32> -> vector<8x10xf32>
    %c0_21 = arith.constant 0 : index
    %c0_22 = arith.constant 0 : index
    %25 = vector.load %arg9[%c0_21, %c0_22] : memref<1x10xf32, #tpu.memory_space<vmem>>, vector<1x10xf32>
    %26 = vector.broadcast %25 : vector<1x10xf32> to vector<8x10xf32>
    %27 = arith.addf %24, %26 : vector<8x10xf32>
    %cst_23 = arith.constant dense<0xFF800000> : vector<8xf32>
    %28 = vector.multi_reduction <maximumf>, %27, %cst_23 [1] : vector<8x10xf32> to vector<8xf32>
    %29 = vector.shape_cast %28 : vector<8xf32> to vector<8x1xf32>
    %30 = vector.broadcast %29 : vector<8x1xf32> to vector<8x10xf32>
    %31 = arith.subf %27, %30 : vector<8x10xf32>
    %32 = math.exp %31 : vector<8x10xf32>
    %cst_24 = arith.constant dense<0.000000e+00> : vector<8xf32>
    %33 = vector.multi_reduction <add>, %32, %cst_24 [1] : vector<8x10xf32> to vector<8xf32>
    %34 = vector.shape_cast %33 : vector<8xf32> to vector<8x1xf32>
    %35 = vector.broadcast %34 : vector<8x1xf32> to vector<8x10xf32>
    %36 = arith.divf %32, %35 : vector<8x10xf32>
    %c0_25 = arith.constant 0 : index
    %c0_26 = arith.constant 0 : index
    %37 = vector.load %arg10[%c0_25, %c0_26] : memref<8x10xf32, #tpu.memory_space<vmem>>, vector<8x10xf32>
    tpu.vector_store %arg10[%c0_25, %c0_26], %36 {strides = array<i32>} : memref<8x10xf32, #tpu.memory_space<vmem>>, vector<8x10xf32>,
    return
  }
  func.func @transform_0(%arg0: i32) -> (i32, i32) {
    %c0_i32 = arith.constant 0 : i32
    %c0_i32_0 = arith.constant 0 : i32
    return %arg0, %c0_i32 : i32, i32
  }
  func.func @transform_1(%arg0: i32) -> (i32, i32) {
    %c0_i32 = arith.constant 0 : i32
    %c0_i32_0 = arith.constant 0 : i32
    %c0_i32_1 = arith.constant 0 : i32
    return %c0_i32, %c0_i32_0 : i32, i32
  }
  func.func @transform_2(%arg0: i32) -> (i32, i32) {
    %c0_i32 = arith.constant 0 : i32
    %c0_i32_0 = arith.constant 0 : i32
    %c0_i32_1 = arith.constant 0 : i32
    return %c0_i32, %c0_i32_0 : i32, i32
  }
  func.func @transform_3(%arg0: i32) -> (i32, i32) {
    %c0_i32 = arith.constant 0 : i32
    %c0_i32_0 = arith.constant 0 : i32
    %c0_i32_1 = arith.constant 0 : i32
    return %c0_i32, %c0_i32_0 : i32, i32
  }
  func.func @transform_4(%arg0: i32) -> (i32, i32) {
    %c0_i32 = arith.constant 0 : i32
    %c0_i32_0 = arith.constant 0 : i32
    %c0_i32_1 = arith.constant 0 : i32
    return %c0_i32, %c0_i32_0 : i32, i32
  }
  func.func @transform_5(%arg0: i32) -> (i32, i32) {
    %c0_i32 = arith.constant 0 : i32
    %c0_i32_0 = arith.constant 0 : i32
    %c0_i32_1 = arith.constant 0 : i32
    return %c0_i32, %c0_i32_0 : i32, i32
  }
  func.func @transform_6(%arg0: i32) -> (i32, i32) {
    %c0_i32 = arith.constant 0 : i32
    %c0_i32_0 = arith.constant 0 : i32
    %c0_i32_1 = arith.constant 0 : i32
    return %c0_i32, %c0_i32_0 : i32, i32
  }
  func.func @transform_7(%arg0: i32) -> (i32, i32) {
    %c0_i32 = arith.constant 0 : i32
    %c0_i32_0 = arith.constant 0 : i32
    %c0_i32_1 = arith.constant 0 : i32
    return %c0_i32, %c0_i32_0 : i32, i32
  }
  func.func @transform_8(%arg0: i32) -> (i32, i32) {
    %c0_i32 = arith.constant 0 : i32
    %c0_i32_0 = arith.constant 0 : i32
    %c0_i32_1 = arith.constant 0 : i32
    return %c0_i32, %c0_i32_0 : i32, i32
  }
  func.func @transform_9(%arg0: i32) -> (i32, i32) {
    %c0_i32 = arith.constant 0 : i32
    %c0_i32_0 = arith.constant 0 : i32
    return %arg0, %c0_i32 : i32, i32
  }
}

</mosaic_0001>

<llo_original>
// kernel: tpu_custom_call.1
$region0: #{tpu_custom_call.1}
  #allocation0 [shape = 'u32[]', space=smem, size = 0x4, offset = 0x4, fixed_abs, tag = 'smem constant byte address 0x4 - core index']
  #allocation1 [shape = 'u32[144,128]{1,0:T(1,128)}', space=vmem, size = 0x12000, scoped, tag = 'internal scratch']
  %s0 = inlined_call_operand.vmem [shape: f32[8,256], index: 0, kind: input, shape index: {}]
  %s1 = inlined_call_operand.vmem [shape: f32[256,784], index: 1, kind: input, shape index: {}]
  %s2 = inlined_call_operand.hbm [shape: f32[1,784], index: 2, kind: input, shape index: {}]
  %s3 = inlined_call_operand.vmem [shape: f32[784,576], index: 3, kind: input, shape index: {}]
  %s4 = inlined_call_operand.vmem [shape: f32[1,576], index: 4, kind: input, shape index: {}]
  %s5 = inlined_call_operand.hbm [shape: bf16[576,512], index: 5, kind: input, shape index: {}]
  %s6 = inlined_call_operand.vmem [shape: f32[1,512], index: 6, kind: input, shape index: {}]
  %s7 = inlined_call_operand.vmem [shape: f32[512,10], index: 7, kind: input, shape index: {}]
  %s8 = inlined_call_operand.vmem [shape: f32[1,10], index: 8, kind: input, shape index: {}]
  %s9 = inlined_call_operand.hbm [shape: f32[8,10], index: 9, kind: output, shape index: {}]
  %s10 = sld [smem:[#allocation0]]
  $region54: #{tpu_custom_call.1} parent=0
    _
  %s12 = ssub.s32 1, %s10
  %s13 = scalar_select 0, %s12, %s10
  $region1: #{tpu_custom_call.1} parent=0
    #allocation2 [shape = 'u8[3584]{0}', space=vmem, size = 0x1000, scoped, tag = 'input window, operand 2, single buffered']
    #allocation3 [shape = 's32[1]{0}', space=sflag, size = 0x4, scoped, tag = 'scoped memory for tpu_custom_call.1']
    #allocation4 [shape = 's32[1]{0}', space=sflag, size = 0x4, scoped, tag = 'scoped memory for tpu_custom_call.1']
    #allocation5 [shape = 'u8[589824]{0}', space=vmem, size = 0x90000, scoped, tag = 'input window, operand 5, single buffered']
    #allocation6 [shape = 's32[1]{0}', space=sflag, size = 0x4, scoped, tag = 'scoped memory for tpu_custom_call.1']
    #allocation7 [shape = 'u8[4096]{0}', space=vmem, size = 0x1000, scoped, tag = 'output window, operand 0, single buffered']
    %14 = vsyncpa [#allocation3], 0
    %15 = vsyncpa [#allocation6], 0
    %16 = vsyncpa [#allocation4], 0
    // Predicated region
    $region2: #{tpu_custom_call.1} parent=1 // pred_check
      _
    $region3: #{tpu_custom_call.1} parent=1 // pred_check_branch
      %18 = sbr.rel (0) target = $region5
    $region4: #{tpu_custom_call.1} parent=1 // pred_region
      _
    $region5: #{tpu_custom_call.1} parent=1 // pred_fallthru
      _
    // Predicated region
    $region6: #{tpu_custom_call.1} parent=1 // pred_check
      _
    $region7: #{tpu_custom_call.1} parent=1 // pred_check_branch
      %20 = sbr.rel (0) target = $region9
    $region8: #{tpu_custom_call.1} parent=1 // pred_region
      _
    $region9: #{tpu_custom_call.1} parent=1 // pred_fallthru
      _
    // Predicated region
    $region10: #{tpu_custom_call.1} parent=1 // pred_check
      _
    $region11: #{tpu_custom_call.1} parent=1 // pred_check_branch
      %22 = sbr.rel (0) target = $region13
    $region12: #{tpu_custom_call.1} parent=1 // pred_region
      %s24 = ssub.s32 112, 112
      %25 = vsyncadd [#allocation3], %s24
      %s27 = sshll.u32 [#allocation2], 4
      %s28 = int_to_ptr.vmem [resolvable:$true] %s27
      %30 = dma.hbm_to_vmem [thread:$0]  %s2, 112, %s28, [#allocation3]
    $region13: #{tpu_custom_call.1} parent=1 // pred_fallthru
      _
    // Predicated region
    $region14: #{tpu_custom_call.1} parent=1 // pred_check
      _
    $region15: #{tpu_custom_call.1} parent=1 // pred_check_branch
      %32 = sbr.rel (0) target = $region17
    $region16: #{tpu_custom_call.1} parent=1 // pred_region
      _
    $region17: #{tpu_custom_call.1} parent=1 // pred_fallthru
      _
    // Predicated region
    $region18: #{tpu_custom_call.1} parent=1 // pred_check
      _
    $region19: #{tpu_custom_call.1} parent=1 // pred_check_branch
      %34 = sbr.rel (0) target = $region21
    $region20: #{tpu_custom_call.1} parent=1 // pred_region
      _
    $region21: #{tpu_custom_call.1} parent=1 // pred_fallthru
      _
    // Predicated region
    $region22: #{tpu_custom_call.1} parent=1 // pred_check
      _
    $region23: #{tpu_custom_call.1} parent=1 // pred_check_branch
      %36 = sbr.rel (0) target = $region25
    $region24: #{tpu_custom_call.1} parent=1 // pred_region
      %s38 = ssub.s32 18432, 18432
      %39 = vsyncadd [#allocation6], %s38
      %s40 = sshll.u32 [#allocation5], 4
      %s41 = int_to_ptr.vmem [resolvable:$true] %s40
      %46 = dma.hbm_to_vmem [thread:$0]  %s5, 18432, %s41, [#allocation6], 256, 256, 16
    $region25: #{tpu_custom_call.1} parent=1 // pred_fallthru
      _
    // Predicated region
    $region26: #{tpu_custom_call.1} parent=1 // pred_check
      _
    $region27: #{tpu_custom_call.1} parent=1 // pred_check_branch
      %48 = sbr.rel (0) target = $region29
    $region28: #{tpu_custom_call.1} parent=1 // pred_region
      _
    $region29: #{tpu_custom_call.1} parent=1 // pred_fallthru
      _
    // Predicated region
    $region30: #{tpu_custom_call.1} parent=1 // pred_check
      _
    $region31: #{tpu_custom_call.1} parent=1 // pred_check_branch
      %50 = sbr.rel (0) target = $region33
    $region32: #{tpu_custom_call.1} parent=1 // pred_region
      _
    $region33: #{tpu_custom_call.1} parent=1 // pred_fallthru
      _
    // Predicated region
    $region34: #{tpu_custom_call.1} parent=1 // pred_check
      _
    $region35: #{tpu_custom_call.1} parent=1 // pred_check_branch
      %52 = sbr.rel (0) target = $region37
    $region36: #{tpu_custom_call.1} parent=1 // pred_region
      _
    $region37: #{tpu_custom_call.1} parent=1 // pred_fallthru
      _
    // Predicated region
    $region38: #{tpu_custom_call.1} parent=1 // pred_check
      _
    $region39: #{tpu_custom_call.1} parent=1 // pred_check_branch
      %54 = sbr.rel (0) target = $region41
    $region40: #{tpu_custom_call.1} parent=1 // pred_region
      %55 = dma.done [#allocation3], 112
    $region41: #{tpu_custom_call.1} parent=1 // pred_fallthru
      _
    // Predicated region
    $region42: #{tpu_custom_call.1} parent=1 // pred_check
      _
    $region43: #{tpu_custom_call.1} parent=1 // pred_check_branch
      %57 = sbr.rel (0) target = $region45
    $region44: #{tpu_custom_call.1} parent=1 // pred_region
      %58 = dma.done [#allocation6], 18432
    $region45: #{tpu_custom_call.1} parent=1 // pred_fallthru
      _
    %v60 = vld [vmem:[%s0] sm:$0xff]
    %v61 = vld [vmem:[%s0 + $0x8] sm:$0xff]
    %v62 = vld [vmem:[%s1] sm:$0xff]
    %v63 = vld [vmem:[%s1 + $0x8] sm:$0xff]
    %v64 = vld [vmem:[%s1 + $0x10] sm:$0xff]
    %v65 = vld [vmem:[%s1 + $0x18] sm:$0xff]
    %v66 = vld [vmem:[%s1 + $0x20] sm:$0xff]
    %v67 = vld [vmem:[%s1 + $0x28] sm:$0xff]
    %v68 = vld [vmem:[%s1 + $0x30] sm:$0xff]
    %v69 = vld [vmem:[%s1 + $0x38] sm:$0xff]
    %v70 = vld [vmem:[%s1 + $0x40] sm:$0xff]
    %v71 = vld [vmem:[%s1 + $0x48] sm:$0xff]
    %v72 = vld [vmem:[%s1 + $0x50] sm:$0xff]
    %v73 = vld [vmem:[%s1 + $0x58] sm:$0xff]
    %v74 = vld [vmem:[%s1 + $0x60] sm:$0xff]
    %v75 = vld [vmem:[%s1 + $0x68] sm:$0xff]
    %v76 = vld [vmem:[%s1 + $0x70] sm:$0xff]
    %v77 = vld [vmem:[%s1 + $0x78] sm:$0xff]
    %v78 = vld [vmem:[%s1 + $0x80] sm:$0xff]
    %v79 = vld [vmem:[%s1 + $0x88] sm:$0xff]
    %v80 = vld [vmem:[%s1 + $0x90] sm:$0xff]
    %v81 = vld [vmem:[%s1 + $0x98] sm:$0xff]
    %v82 = vld [vmem:[%s1 + $0xa0] sm:$0xff]
    %v83 = vld [vmem:[%s1 + $0xa8] sm:$0xff]
    %v84 = vld [vmem:[%s1 + $0xb0] sm:$0xff]
    %v85 = vld [vmem:[%s1 + $0xb8] sm:$0xff]
    %v86 = vld [vmem:[%s1 + $0xc0] sm:$0xff]
    %v87 = vld [vmem:[%s1 + $0xc8] sm:$0xff]
    %v88 = vld [vmem:[%s1 + $0xd0] sm:$0xff]
    %v89 = vld [vmem:[%s1 + $0xd8] sm:$0xff]
    %v90 = vld [vmem:[%s1 + $0xe0] sm:$0xff]
    %v91 = vld [vmem:[%s1 + $0xe8] sm:$0xff]
    %v92 = vld [vmem:[%s1 + $0xf0] sm:$0xff]
    %v93 = vld [vmem:[%s1 + $0xf8] sm:$0xff]
    %v94 = vld [vmem:[%s1 + $0x100] sm:$0xff]
    %v95 = vld [vmem:[%s1 + $0x108] sm:$0xff]
    %v96 = vld [vmem:[%s1 + $0x110] sm:$0xff]
    %v97 = vld [vmem:[%s1 + $0x118] sm:$0xff]
    %v98 = vld [vmem:[%s1 + $0x120] sm:$0xff]
    %v99 = vld [vmem:[%s1 + $0x128] sm:$0xff]
    %v100 = vld [vmem:[%s1 + $0x130] sm:$0xff]
    %v101 = vld [vmem:[%s1 + $0x138] sm:$0xff]
    %v102 = vld [vmem:[%s1 + $0x140] sm:$0xff]
    %v103 = vld [vmem:[%s1 + $0x148] sm:$0xff]
    %v104 = vld [vmem:[%s1 + $0x150] sm:$0xff]
    %v105 = vld [vmem:[%s1 + $0x158] sm:$0xff]
    %v106 = vld [vmem:[%s1 + $0x160] sm:$0xff]
    %v107 = vld [vmem:[%s1 + $0x168] sm:$0xff]
    %v108 = vld [vmem:[%s1 + $0x170] sm:$0xff]
    %v109 = vld [vmem:[%s1 + $0x178] sm:$0xff]
    %v110 = vld [vmem:[%s1 + $0x180] sm:$0xff]
    %v111 = vld [vmem:[%s1 + $0x188] sm:$0xff]
    %v112 = vld [vmem:[%s1 + $0x190] sm:$0xff]
    %v113 = vld [vmem:[%s1 + $0x198] sm:$0xff]
    %v114 = vld [vmem:[%s1 + $0x1a0] sm:$0xff]
    %v115 = vld [vmem:[%s1 + $0x1a8] sm:$0xff]
    %v116 = vld [vmem:[%s1 + $0x1b0] sm:$0xff]
    %v117 = vld [vmem:[%s1 + $0x1b8] sm:$0xff]
    %v118 = vld [vmem:[%s1 + $0x1c0] sm:$0xff]
    %v119 = vld [vmem:[%s1 + $0x1c8] sm:$0xff]
    %v120 = vld [vmem:[%s1 + $0x1d0] sm:$0xff]
    %v121 = vld [vmem:[%s1 + $0x1d8] sm:$0xff]
    %v122 = vld [vmem:[%s1 + $0x1e0] sm:$0xff]
    %v123 = vld [vmem:[%s1 + $0x1e8] sm:$0xff]
    %v124 = vld [vmem:[%s1 + $0x1f0] sm:$0xff]
    %v125 = vld [vmem:[%s1 + $0x1f8] sm:$0xff]
    %v126 = vld [vmem:[%s1 + $0x200] sm:$0xff]
    %v127 = vld [vmem:[%s1 + $0x208] sm:$0xff]
    %v128 = vld [vmem:[%s1 + $0x210] sm:$0xff]
    %v129 = vld [vmem:[%s1 + $0x218] sm:$0xff]
    %v130 = vld [vmem:[%s1 + $0x220] sm:$0xff]
    %v131 = vld [vmem:[%s1 + $0x228] sm:$0xff]
    %v132 = vld [vmem:[%s1 + $0x230] sm:$0xff]
    %v133 = vld [vmem:[%s1 + $0x238] sm:$0xff]
    %v134 = vld [vmem:[%s1 + $0x240] sm:$0xff]
    %v135 = vld [vmem:[%s1 + $0x248] sm:$0xff]
    %v136 = vld [vmem:[%s1 + $0x250] sm:$0xff]
    %v137 = vld [vmem:[%s1 + $0x258] sm:$0xff]
    %v138 = vld [vmem:[%s1 + $0x260] sm:$0xff]
    %v139 = vld [vmem:[%s1 + $0x268] sm:$0xff]
    %v140 = vld [vmem:[%s1 + $0x270] sm:$0xff]
    %v141 = vld [vmem:[%s1 + $0x278] sm:$0xff]
    %v142 = vld [vmem:[%s1 + $0x280] sm:$0xff]
    %v143 = vld [vmem:[%s1 + $0x288] sm:$0xff]
    %v144 = vld [vmem:[%s1 + $0x290] sm:$0xff]
    %v145 = vld [vmem:[%s1 + $0x298] sm:$0xff]
    %v146 = vld [vmem:[%s1 + $0x2a0] sm:$0xff]
    %v147 = vld [vmem:[%s1 + $0x2a8] sm:$0xff]
    %v148 = vld [vmem:[%s1 + $0x2b0] sm:$0xff]
    %v149 = vld [vmem:[%s1 + $0x2b8] sm:$0xff]
    %v150 = vld [vmem:[%s1 + $0x2c0] sm:$0xff]
    %v151 = vld [vmem:[%s1 + $0x2c8] sm:$0xff]
    %v152 = vld [vmem:[%s1 + $0x2d0] sm:$0xff]
    %v153 = vld [vmem:[%s1 + $0x2d8] sm:$0xff]
    %v154 = vld [vmem:[%s1 + $0x2e0] sm:$0xff]
    %v155 = vld [vmem:[%s1 + $0x2e8] sm:$0xff]
    %v156 = vld [vmem:[%s1 + $0x2f0] sm:$0xff]
    %v157 = vld [vmem:[%s1 + $0x2f8] sm:$0xff]
    %v158 = vld [vmem:[%s1 + $0x300] sm:$0xff]
    %v159 = vld [vmem:[%s1 + $0x308] sm:$0xff]
    %v160 = vld [vmem:[%s1 + $0x310] sm:$0xff]
    %v161 = vld [vmem:[%s1 + $0x318] sm:$0xff]
    %v162 = vld [vmem:[%s1 + $0x320] sm:$0xff]
    %v163 = vld [vmem:[%s1 + $0x328] sm:$0xff]
    %v164 = vld [vmem:[%s1 + $0x330] sm:$0xff]
    %v165 = vld [vmem:[%s1 + $0x338] sm:$0xff]
    %v166 = vld [vmem:[%s1 + $0x340] sm:$0xff]
    %v167 = vld [vmem:[%s1 + $0x348] sm:$0xff]
    %v168 = vld [vmem:[%s1 + $0x350] sm:$0xff]
    %v169 = vld [vmem:[%s1 + $0x358] sm:$0xff]
    %v170 = vld [vmem:[%s1 + $0x360] sm:$0xff]
    %v171 = vld [vmem:[%s1 + $0x368] sm:$0xff]
    %v172 = vld [vmem:[%s1 + $0x370] sm:$0xff]
    %v173 = vld [vmem:[%s1 + $0x378] sm:$0xff]
    %v174 = vld [vmem:[%s1 + $0x380] sm:$0xff]
    %v175 = vld [vmem:[%s1 + $0x388] sm:$0xff]
    %v176 = vld [vmem:[%s1 + $0x390] sm:$0xff]
    %v177 = vld [vmem:[%s1 + $0x398] sm:$0xff]
    %v178 = vld [vmem:[%s1 + $0x3a0] sm:$0xff]
    %v179 = vld [vmem:[%s1 + $0x3a8] sm:$0xff]
    %v180 = vld [vmem:[%s1 + $0x3b0] sm:$0xff]
    %v181 = vld [vmem:[%s1 + $0x3b8] sm:$0xff]
    %v182 = vld [vmem:[%s1 + $0x3c0] sm:$0xff]
    %v183 = vld [vmem:[%s1 + $0x3c8] sm:$0xff]
    %v184 = vld [vmem:[%s1 + $0x3d0] sm:$0xff]
    %v185 = vld [vmem:[%s1 + $0x3d8] sm:$0xff]
    %v186 = vld [vmem:[%s1 + $0x3e0] sm:$0xff]
    %v187 = vld [vmem:[%s1 + $0x3e8] sm:$0xff]
    %v188 = vld [vmem:[%s1 + $0x3f0] sm:$0xff]
    %v189 = vld [vmem:[%s1 + $0x3f8] sm:$0xff]
    %v190 = vld [vmem:[%s1 + $0x400] sm:$0xff]
    %v191 = vld [vmem:[%s1 + $0x408] sm:$0xff]
    %v192 = vld [vmem:[%s1 + $0x410] sm:$0xff]
    %v193 = vld [vmem:[%s1 + $0x418] sm:$0xff]
    %v194 = vld [vmem:[%s1 + $0x420] sm:$0xff]
    %v195 = vld [vmem:[%s1 + $0x428] sm:$0xff]
    %v196 = vld [vmem:[%s1 + $0x430] sm:$0xff]
    %v197 = vld [vmem:[%s1 + $0x438] sm:$0xff]
    %v198 = vld [vmem:[%s1 + $0x440] sm:$0xff]
    %v199 = vld [vmem:[%s1 + $0x448] sm:$0xff]
    %v200 = vld [vmem:[%s1 + $0x450] sm:$0xff]
    %v201 = vld [vmem:[%s1 + $0x458] sm:$0xff]
    %v202 = vld [vmem:[%s1 + $0x460] sm:$0xff]
    %v203 = vld [vmem:[%s1 + $0x468] sm:$0xff]
    %v204 = vld [vmem:[%s1 + $0x470] sm:$0xff]
    %v205 = vld [vmem:[%s1 + $0x478] sm:$0xff]
    %v206 = vld [vmem:[%s1 + $0x480] sm:$0xff]
    %v207 = vld [vmem:[%s1 + $0x488] sm:$0xff]
    %v208 = vld [vmem:[%s1 + $0x490] sm:$0xff]
    %v209 = vld [vmem:[%s1 + $0x498] sm:$0xff]
    %v210 = vld [vmem:[%s1 + $0x4a0] sm:$0xff]
    %v211 = vld [vmem:[%s1 + $0x4a8] sm:$0xff]
    %v212 = vld [vmem:[%s1 + $0x4b0] sm:$0xff]
    %v213 = vld [vmem:[%s1 + $0x4b8] sm:$0xff]
    %v214 = vld [vmem:[%s1 + $0x4c0] sm:$0xff]
    %v215 = vld [vmem:[%s1 + $0x4c8] sm:$0xff]
    %v216 = vld [vmem:[%s1 + $0x4d0] sm:$0xff]
    %v217 = vld [vmem:[%s1 + $0x4d8] sm:$0xff]
    %v218 = vld [vmem:[%s1 + $0x4e0] sm:$0xff]
    %v219 = vld [vmem:[%s1 + $0x4e8] sm:$0xff]
    %v220 = vld [vmem:[%s1 + $0x4f0] sm:$0xff]
    %v221 = vld [vmem:[%s1 + $0x4f8] sm:$0xff]
    %v222 = vld [vmem:[%s1 + $0x500] sm:$0xff]
    %v223 = vld [vmem:[%s1 + $0x508] sm:$0xff]
    %v224 = vld [vmem:[%s1 + $0x510] sm:$0xff]
    %v225 = vld [vmem:[%s1 + $0x518] sm:$0xff]
    %v226 = vld [vmem:[%s1 + $0x520] sm:$0xff]
    %v227 = vld [vmem:[%s1 + $0x528] sm:$0xff]
    %v228 = vld [vmem:[%s1 + $0x530] sm:$0xff]
    %v229 = vld [vmem:[%s1 + $0x538] sm:$0xff]
    %v230 = vld [vmem:[%s1 + $0x540] sm:$0xff]
    %v231 = vld [vmem:[%s1 + $0x548] sm:$0xff]
    %v232 = vld [vmem:[%s1 + $0x550] sm:$0xff]
    %v233 = vld [vmem:[%s1 + $0x558] sm:$0xff]
    %v234 = vld [vmem:[%s1 + $0x560] sm:$0xff]
    %v235 = vld [vmem:[%s1 + $0x568] sm:$0xff]
    %v236 = vld [vmem:[%s1 + $0x570] sm:$0xff]
    %v237 = vld [vmem:[%s1 + $0x578] sm:$0xff]
    %v238 = vld [vmem:[%s1 + $0x580] sm:$0xff]
    %v239 = vld [vmem:[%s1 + $0x588] sm:$0xff]
    %v240 = vld [vmem:[%s1 + $0x590] sm:$0xff]
    %v241 = vld [vmem:[%s1 + $0x598] sm:$0xff]
    %v242 = vld [vmem:[%s1 + $0x5a0] sm:$0xff]
    %v243 = vld [vmem:[%s1 + $0x5a8] sm:$0xff]
    %v244 = vld [vmem:[%s1 + $0x5b0] sm:$0xff]
    %v245 = vld [vmem:[%s1 + $0x5b8] sm:$0xff]
    %v246 = vld [vmem:[%s1 + $0x5c0] sm:$0xff]
    %v247 = vld [vmem:[%s1 + $0x5c8] sm:$0xff]
    %v248 = vld [vmem:[%s1 + $0x5d0] sm:$0xff]
    %v249 = vld [vmem:[%s1 + $0x5d8] sm:$0xff]
    %v250 = vld [vmem:[%s1 + $0x5e0] sm:$0xff]
    %v251 = vld [vmem:[%s1 + $0x5e8] sm:$0xff]
    %v252 = vld [vmem:[%s1 + $0x5f0] sm:$0xff]
    %v253 = vld [vmem:[%s1 + $0x5f8] sm:$0xff]
    %v254 = vld [vmem:[%s1 + $0x600] sm:$0xff]
    %v255 = vld [vmem:[%s1 + $0x608] sm:$0xff]
    %v256 = vld [vmem:[%s1 + $0x610] sm:$0xff]
    %v257 = vld [vmem:[%s1 + $0x618] sm:$0xff]
    %v258 = vld [vmem:[%s1 + $0x620] sm:$0xff]
    %v259 = vld [vmem:[%s1 + $0x628] sm:$0xff]
    %v260 = vld [vmem:[%s1 + $0x630] sm:$0xff]
    %v261 = vld [vmem:[%s1 + $0x638] sm:$0xff]
    %v262 = vld [vmem:[%s1 + $0x640] sm:$0xff]
    %v263 = vld [vmem:[%s1 + $0x648] sm:$0xff]
    %v264 = vld [vmem:[%s1 + $0x650] sm:$0xff]
    %v265 = vld [vmem:[%s1 + $0x658] sm:$0xff]
    %v266 = vld [vmem:[%s1 + $0x660] sm:$0xff]
    %v267 = vld [vmem:[%s1 + $0x668] sm:$0xff]
    %v268 = vld [vmem:[%s1 + $0x670] sm:$0xff]
    %v269 = vld [vmem:[%s1 + $0x678] sm:$0xff]
    %v270 = vld [vmem:[%s1 + $0x680] sm:$0xff]
    %v271 = vld [vmem:[%s1 + $0x688] sm:$0xff]
    %v272 = vld [vmem:[%s1 + $0x690] sm:$0xff]
    %v273 = vld [vmem:[%s1 + $0x698] sm:$0xff]
    %v274 = vld [vmem:[%s1 + $0x6a0] sm:$0xff]
    %v275 = vld [vmem:[%s1 + $0x6a8] sm:$0xff]
    %v276 = vld [vmem:[%s1 + $0x6b0] sm:$0xff]
    %v277 = vld [vmem:[%s1 + $0x6b8] sm:$0xff]
    %v278 = vld [vmem:[%s1 + $0x6c0] sm:$0xff]
    %v279 = vld [vmem:[%s1 + $0x6c8] sm:$0xff]
    %v280 = vld [vmem:[%s1 + $0x6d0] sm:$0xff]
    %v281 = vld [vmem:[%s1 + $0x6d8] sm:$0xff]
    %v282 = vld [vmem:[%s1 + $0x6e0] sm:$0xff]
    %v283 = vld [vmem:[%s1 + $0x6e8] sm:$0xff]
    %v284 = vld [vmem:[%s1 + $0x6f0] sm:$0xff]
    %v285 = vld [vmem:[%s1 + $0x6f8] sm:$0xff]
    %v286 = vld [vmem:[#allocation2] sm:$0x7f]
    %v288 = vlaneseq
    %v289 = vshrl.u32 %v288, 7
    %v290 = vsub.s32 0, %v289
    %v291 = vrot.slane %v286, %v290
    %v292 = vlaneseq
    %v293 = vshrl.u32 %v292, 7
    %v294 = vsub.s32 1, %v293
    %v295 = vrot.slane %v286, %v294
    %v296 = vlaneseq
    %v297 = vshrl.u32 %v296, 7
    %v298 = vsub.s32 2, %v297
    %v299 = vrot.slane %v286, %v298
    %v300 = vlaneseq
    %v301 = vshrl.u32 %v300, 7
    %v302 = vsub.s32 3, %v301
    %v303 = vrot.slane %v286, %v302
    %v304 = vlaneseq
    %v305 = vshrl.u32 %v304, 7
    %v306 = vsub.s32 4, %v305
    %v307 = vrot.slane %v286, %v306
    %v308 = vlaneseq
    %v309 = vshrl.u32 %v308, 7
    %v310 = vsub.s32 5, %v309
    %v311 = vrot.slane %v286, %v310
    %v312 = vlaneseq
    %v313 = vshrl.u32 %v312, 7
    %v314 = vsub.s32 6, %v313
    %v315 = vrot.slane %v286, %v314
    %323 = vmatprep.subr.mxu0 %v168
    %324 = vmatpush1.msra.mxu0 %v167
    %325 = vmatprep.subr.mxu0 %v161
    %326 = vmatpush1.msra.mxu0 %v160
    %327 = vmatprep.subr.mxu0 %v154
    %328 = vmatpush1.msra.mxu0 %v153
    %329 = vmatprep.subr.mxu0 %v147
    %330 = vmatpush1.msra.mxu0 %v146
    %331 = vmatprep.subr.mxu0 %v140
    %332 = vmatpush1.msra.mxu0 %v139
    %333 = vmatprep.subr.mxu0 %v133
    %334 = vmatpush1.msra.mxu0 %v132
    %335 = vmatprep.subr.mxu0 %v126
    %336 = vmatpush1.msra.mxu0 %v125
    %337 = vmatprep.subr.mxu0 %v119
    %338 = vmatpush1.msra.mxu0 %v118
    %339 = vmatprep.subr.mxu0 %v112
    %340 = vmatpush1.msra.mxu0 %v111
    %341 = vmatprep.subr.mxu0 %v105
    %342 = vmatpush1.msra.mxu0 %v104
    %343 = vmatprep.subr.mxu0 %v98
    %344 = vmatpush1.msra.mxu0 %v97
    %345 = vmatprep.subr.mxu0 %v91
    %346 = vmatpush1.msra.mxu0 %v90
    %347 = vmatprep.subr.mxu0 %v84
    %348 = vmatpush1.msra.mxu0 %v83
    %349 = vmatprep.subr.mxu0 %v77
    %350 = vmatpush1.msra.mxu0 %v76
    %351 = vmatprep.subr.mxu0 %v70
    %352 = vmatpush1.msra.mxu0 %v69
    %353 = vmatprep.subr.mxu0 %v63
    %354 = vmatpush1.msra.mxu0 %v62
    %355 = vmatprep.subr.mxu0 %v280
    %356 = vmatpush2.msra.mxu0 %v279
    %357 = vmatprep.subr.mxu0 %v273
    %358 = vmatpush2.msra.mxu0 %v272
    %359 = vmatprep.subr.mxu0 %v266
    %360 = vmatpush2.msra.mxu0 %v265
    %361 = vmatprep.subr.mxu0 %v259
    %362 = vmatpush2.msra.mxu0 %v258
    %363 = vmatprep.subr.mxu0 %v252
    %364 = vmatpush2.msra.mxu0 %v251
    %365 = vmatprep.subr.mxu0 %v245
    %366 = vmatpush2.msra.mxu0 %v244
    %367 = vmatprep.subr.mxu0 %v238
    %368 = vmatpush2.msra.mxu0 %v237
    %369 = vmatprep.subr.mxu0 %v231
    %370 = vmatpush2.msra.mxu0 %v230
    %371 = vmatprep.subr.mxu0 %v224
    %372 = vmatpush2.msra.mxu0 %v223
    %373 = vmatprep.subr.mxu0 %v217
    %374 = vmatpush2.msra.mxu0 %v216
    %375 = vmatprep.subr.mxu0 %v210
    %376 = vmatpush2.msra.mxu0 %v209
    %377 = vmatprep.subr.mxu0 %v203
    %378 = vmatpush2.msra.mxu0 %v202
    %379 = vmatprep.subr.mxu0 %v196
    %380 = vmatpush2.msra.mxu0 %v195
    %381 = vmatprep.subr.mxu0 %v189
    %382 = vmatpush2.msra.mxu0 %v188
    %383 = vmatprep.subr.mxu0 %v182
    %384 = vmatpush2.msra.mxu0 %v181
    %385 = vmatprep.subr.mxu0 %v175
    %386 = vmatpush2.msra.mxu0 %v174
    %387 = vmatprep.mubr.f32.mxu0 %v61
    %388 = vmatmul.mubr.f32.gmra.mxu0 %v60
    %v389 = vpop.f32.mrf.mxu0
    %v390 = vadd.f32 %v291, %v389
    %v391 = vpop.f32.mrf.mxu0
    %v392 = vadd.f32 %v295, %v391
    %393 = vdwg.mxu0
    %394 = vmatprep.subr.mxu0 %v170
    %395 = vmatpush1.msra.mxu0 %v169
    %396 = vmatprep.subr.mxu0 %v163
    %397 = vmatpush1.msra.mxu0 %v162
    %398 = vmatprep.subr.mxu0 %v156
    %399 = vmatpush1.msra.mxu0 %v155
    %400 = vmatprep.subr.mxu0 %v149
    %401 = vmatpush1.msra.mxu0 %v148
    %402 = vmatprep.subr.mxu0 %v142
    %403 = vmatpush1.msra.mxu0 %v141
    %404 = vmatprep.subr.mxu0 %v135
    %405 = vmatpush1.msra.mxu0 %v134
    %406 = vmatprep.subr.mxu0 %v128
    %407 = vmatpush1.msra.mxu0 %v127
    %408 = vmatprep.subr.mxu0 %v121
    %409 = vmatpush1.msra.mxu0 %v120
    %410 = vmatprep.subr.mxu0 %v114
    %411 = vmatpush1.msra.mxu0 %v113
    %412 = vmatprep.subr.mxu0 %v107
    %413 = vmatpush1.msra.mxu0 %v106
    %414 = vmatprep.subr.mxu0 %v100
    %415 = vmatpush1.msra.mxu0 %v99
    %416 = vmatprep.subr.mxu0 %v93
    %417 = vmatpush1.msra.mxu0 %v92
    %418 = vmatprep.subr.mxu0 %v86
    %419 = vmatpush1.msra.mxu0 %v85
    %420 = vmatprep.subr.mxu0 %v79
    %421 = vmatpush1.msra.mxu0 %v78
    %422 = vmatprep.subr.mxu0 %v72
    %423 = vmatpush1.msra.mxu0 %v71
    %424 = vmatprep.subr.mxu0 %v65
    %425 = vmatpush1.msra.mxu0 %v64
    %426 = vmatprep.subr.mxu0 %v282
    %427 = vmatpush2.msra.mxu0 %v281
    %428 = vmatprep.subr.mxu0 %v275
    %429 = vmatpush2.msra.mxu0 %v274
    %430 = vmatprep.subr.mxu0 %v268
    %431 = vmatpush2.msra.mxu0 %v267
    %432 = vmatprep.subr.mxu0 %v261
    %433 = vmatpush2.msra.mxu0 %v260
    %434 = vmatprep.subr.mxu0 %v254
    %435 = vmatpush2.msra.mxu0 %v253
    %436 = vmatprep.subr.mxu0 %v247
    %437 = vmatpush2.msra.mxu0 %v246
    %438 = vmatprep.subr.mxu0 %v240
    %439 = vmatpush2.msra.mxu0 %v239
    %440 = vmatprep.subr.mxu0 %v233
    %441 = vmatpush2.msra.mxu0 %v232
    %442 = vmatprep.subr.mxu0 %v226
    %443 = vmatpush2.msra.mxu0 %v225
    %444 = vmatprep.subr.mxu0 %v219
    %445 = vmatpush2.msra.mxu0 %v218
    %446 = vmatprep.subr.mxu0 %v212
    %447 = vmatpush2.msra.mxu0 %v211
    %448 = vmatprep.subr.mxu0 %v205
    %449 = vmatpush2.msra.mxu0 %v204
    %450 = vmatprep.subr.mxu0 %v198
    %451 = vmatpush2.msra.mxu0 %v197
    %452 = vmatprep.subr.mxu0 %v191
    %453 = vmatpush2.msra.mxu0 %v190
    %454 = vmatprep.subr.mxu0 %v184
    %455 = vmatpush2.msra.mxu0 %v183
    %456 = vmatprep.subr.mxu0 %v177
    %457 = vmatpush2.msra.mxu0 %v176
    %458 = vmatprep.mubr.f32.mxu0 %v61
    %459 = vmatmul.mubr.f32.gmra.mxu0 %v60
    %v460 = vpop.f32.mrf.mxu0
    %v461 = vadd.f32 %v299, %v460
    %v462 = vpop.f32.mrf.mxu0
    %v463 = vadd.f32 %v303, %v462
    %464 = vdwg.mxu0
    %465 = vmatprep.subr.mxu0 %v172
    %466 = vmatpush1.msra.mxu0 %v171
    %467 = vmatprep.subr.mxu0 %v165
    %468 = vmatpush1.msra.mxu0 %v164
    %469 = vmatprep.subr.mxu0 %v158
    %470 = vmatpush1.msra.mxu0 %v157
    %471 = vmatprep.subr.mxu0 %v151
    %472 = vmatpush1.msra.mxu0 %v150
    %473 = vmatprep.subr.mxu0 %v144
    %474 = vmatpush1.msra.mxu0 %v143
    %475 = vmatprep.subr.mxu0 %v137
    %476 = vmatpush1.msra.mxu0 %v136
    %477 = vmatprep.subr.mxu0 %v130
    %478 = vmatpush1.msra.mxu0 %v129
    %479 = vmatprep.subr.mxu0 %v123
    %480 = vmatpush1.msra.mxu0 %v122
    %481 = vmatprep.subr.mxu0 %v116
    %482 = vmatpush1.msra.mxu0 %v115
    %483 = vmatprep.subr.mxu0 %v109
    %484 = vmatpush1.msra.mxu0 %v108
    %485 = vmatprep.subr.mxu0 %v102
    %486 = vmatpush1.msra.mxu0 %v101
    %487 = vmatprep.subr.mxu0 %v95
    %488 = vmatpush1.msra.mxu0 %v94
    %489 = vmatprep.subr.mxu0 %v88
    %490 = vmatpush1.msra.mxu0 %v87
    %491 = vmatprep.subr.mxu0 %v81
    %492 = vmatpush1.msra.mxu0 %v80
    %493 = vmatprep.subr.mxu0 %v74
    %494 = vmatpush1.msra.mxu0 %v73
    %495 = vmatprep.subr.mxu0 %v67
    %496 = vmatpush1.msra.mxu0 %v66
    %497 = vmatprep.subr.mxu0 %v284
    %498 = vmatpush2.msra.mxu0 %v283
    %499 = vmatprep.subr.mxu0 %v277
    %500 = vmatpush2.msra.mxu0 %v276
    %501 = vmatprep.subr.mxu0 %v270
    %502 = vmatpush2.msra.mxu0 %v269
    %503 = vmatprep.subr.mxu0 %v263
    %504 = vmatpush2.msra.mxu0 %v262
    %505 = vmatprep.subr.mxu0 %v256
    %506 = vmatpush2.msra.mxu0 %v255
    %507 = vmatprep.subr.mxu0 %v249
    %508 = vmatpush2.msra.mxu0 %v248
    %509 = vmatprep.subr.mxu0 %v242
    %510 = vmatpush2.msra.mxu0 %v241
    %511 = vmatprep.subr.mxu0 %v235
    %512 = vmatpush2.msra.mxu0 %v234
    %513 = vmatprep.subr.mxu0 %v228
    %514 = vmatpush2.msra.mxu0 %v227
    %515 = vmatprep.subr.mxu0 %v221
    %516 = vmatpush2.msra.mxu0 %v220
    %517 = vmatprep.subr.mxu0 %v214
    %518 = vmatpush2.msra.mxu0 %v213
    %519 = vmatprep.subr.mxu0 %v207
    %520 = vmatpush2.msra.mxu0 %v206
    %521 = vmatprep.subr.mxu0 %v200
    %522 = vmatpush2.msra.mxu0 %v199
    %523 = vmatprep.subr.mxu0 %v193
    %524 = vmatpush2.msra.mxu0 %v192
    %525 = vmatprep.subr.mxu0 %v186
    %526 = vmatpush2.msra.mxu0 %v185
    %527 = vmatprep.subr.mxu0 %v179
    %528 = vmatpush2.msra.mxu0 %v178
    %529 = vmatprep.mubr.f32.mxu0 %v61
    %530 = vmatmul.mubr.f32.gmra.mxu0 %v60
    %v531 = vpop.f32.mrf.mxu0
    %v532 = vadd.f32 %v307, %v531
    %v533 = vpop.f32.mrf.mxu0
    %v534 = vadd.f32 %v311, %v533
    %535 = vdwg.mxu0
    %536 = vmatprep.subr.mxu0 0.0
    %537 = vmatpush1.msra.mxu0 %v173
    %538 = vmatprep.subr.mxu0 0.0
    %539 = vmatpush1.msra.mxu0 %v166
    %540 = vmatprep.subr.mxu0 0.0
    %541 = vmatpush1.msra.mxu0 %v159
    %542 = vmatprep.subr.mxu0 0.0
    %543 = vmatpush1.msra.mxu0 %v152
    %544 = vmatprep.subr.mxu0 0.0
    %545 = vmatpush1.msra.mxu0 %v145
    %546 = vmatprep.subr.mxu0 0.0
    %547 = vmatpush1.msra.mxu0 %v138
    %548 = vmatprep.subr.mxu0 0.0
    %549 = vmatpush1.msra.mxu0 %v131
    %550 = vmatprep.subr.mxu0 0.0
    %551 = vmatpush1.msra.mxu0 %v124
    %552 = vmatprep.subr.mxu0 0.0
    %553 = vmatpush1.msra.mxu0 %v117
    %554 = vmatprep.subr.mxu0 0.0
    %555 = vmatpush1.msra.mxu0 %v110
    %556 = vmatprep.subr.mxu0 0.0
    %557 = vmatpush1.msra.mxu0 %v103
    %558 = vmatprep.subr.mxu0 0.0
    %559 = vmatpush1.msra.mxu0 %v96
    %560 = vmatprep.subr.mxu0 0.0
    %561 = vmatpush1.msra.mxu0 %v89
    %562 = vmatprep.subr.mxu0 0.0
    %563 = vmatpush1.msra.mxu0 %v82
    %564 = vmatprep.subr.mxu0 0.0
    %565 = vmatpush1.msra.mxu0 %v75
    %566 = vmatprep.subr.mxu0 0.0
    %567 = vmatpush1.msra.mxu0 %v68
    %568 = vmatprep.subr.mxu0 0.0
    %569 = vmatpush2.msra.mxu0 %v285
    %570 = vmatprep.subr.mxu0 0.0
    %571 = vmatpush2.msra.mxu0 %v278
    %572 = vmatprep.subr.mxu0 0.0
    %573 = vmatpush2.msra.mxu0 %v271
    %574 = vmatprep.subr.mxu0 0.0
    %575 = vmatpush2.msra.mxu0 %v264
    %576 = vmatprep.subr.mxu0 0.0
    %577 = vmatpush2.msra.mxu0 %v257
    %578 = vmatprep.subr.mxu0 0.0
    %579 = vmatpush2.msra.mxu0 %v250
    %580 = vmatprep.subr.mxu0 0.0
    %581 = vmatpush2.msra.mxu0 %v243
    %582 = vmatprep.subr.mxu0 0.0
    %583 = vmatpush2.msra.mxu0 %v236
    %584 = vmatprep.subr.mxu0 0.0
    %585 = vmatpush2.msra.mxu0 %v229
    %586 = vmatprep.subr.mxu0 0.0
    %587 = vmatpush2.msra.mxu0 %v222
    %588 = vmatprep.subr.mxu0 0.0
    %589 = vmatpush2.msra.mxu0 %v215
    %590 = vmatprep.subr.mxu0 0.0
    %591 = vmatpush2.msra.mxu0 %v208
    %592 = vmatprep.subr.mxu0 0.0
    %593 = vmatpush2.msra.mxu0 %v201
    %594 = vmatprep.subr.mxu0 0.0
    %595 = vmatpush2.msra.mxu0 %v194
    %596 = vmatprep.subr.mxu0 0.0
    %597 = vmatpush2.msra.mxu0 %v187
    %598 = vmatprep.subr.mxu0 0.0
    %599 = vmatpush2.msra.mxu0 %v180
    %600 = vmatprep.mubr.f32.mxu0 %v61
    %601 = vmatmul.mubr.f32.gmra.mxu0 %v60
    %v602 = vpop.f32.mrf.mxu0
    %v603 = vadd.f32 %v315, %v602
    %v604 = vpop.f32.mrf.mxu0
    %605 = vdwg.mxu0
    %v606 = vmax.f32 %v390, 0.0
    %v607 = vmax.f32 %v392, 0.0
    %v608 = vmax.f32 %v461, 0.0
    %v609 = vmax.f32 %v463, 0.0
    %v610 = vmax.f32 %v532, 0.0
    %v611 = vmax.f32 %v534, 0.0
    %v612 = vmax.f32 %v603, 0.0
    %v613 = vld [vmem:[%s3] sm:$0xff]
    %v614 = vld [vmem:[%s3 + $0x8] sm:$0xff]
    %v615 = vld [vmem:[%s3 + $0x10] sm:$0xff]
    %v616 = vld [vmem:[%s3 + $0x18] sm:$0xff]
    %v617 = vld [vmem:[%s3 + $0x20] sm:$0xff]
    %v618 = vld [vmem:[%s3 + $0x28] sm:$0xff]
    %v619 = vld [vmem:[%s3 + $0x30] sm:$0xff]
    %v620 = vld [vmem:[%s3 + $0x38] sm:$0xff]
    %v621 = vld [vmem:[%s3 + $0x40] sm:$0xff]
    %v622 = vld [vmem:[%s3 + $0x48] sm:$0xff]
    %v623 = vld [vmem:[%s3 + $0x50] sm:$0xff]
    %v624 = vld [vmem:[%s3 + $0x58] sm:$0xff]
    %v625 = vld [vmem:[%s3 + $0x60] sm:$0xff]
    %v626 = vld [vmem:[%s3 + $0x68] sm:$0xff]
    %v627 = vld [vmem:[%s3 + $0x70] sm:$0xff]
    %v628 = vld [vmem:[%s3 + $0x78] sm:$0xff]
    %v629 = vld [vmem:[%s3 + $0x80] sm:$0xff]
    %v630 = vld [vmem:[%s3 + $0x88] sm:$0xff]
    %v631 = vld [vmem:[%s3 + $0x90] sm:$0xff]
    %v632 = vld [vmem:[%s3 + $0x98] sm:$0xff]
    %v633 = vld [vmem:[%s3 + $0xa0] sm:$0xff]
    %v634 = vld [vmem:[%s3 + $0xa8] sm:$0xff]
    %v635 = vld [vmem:[%s3 + $0xb0] sm:$0xff]
    %v636 = vld [vmem:[%s3 + $0xb8] sm:$0xff]
    %v637 = vld [vmem:[%s3 + $0xc0] sm:$0xff]
    %v638 = vld [vmem:[%s3 + $0xc8] sm:$0xff]
    %v639 = vld [vmem:[%s3 + $0xd0] sm:$0xff]
    %v640 = vld [vmem:[%s3 + $0xd8] sm:$0xff]
    %v641 = vld [vmem:[%s3 + $0xe0] sm:$0xff]
    %v642 = vld [vmem:[%s3 + $0xe8] sm:$0xff]
    %v643 = vld [vmem:[%s3 + $0xf0] sm:$0xff]
    %v644 = vld [vmem:[%s3 + $0xf8] sm:$0xff]
    %v645 = vld [vmem:[%s3 + $0x100] sm:$0xff]
    %v646 = vld [vmem:[%s3 + $0x108] sm:$0xff]
    %v647 = vld [vmem:[%s3 + $0x110] sm:$0xff]
    %v648 = vld [vmem:[%s3 + $0x118] sm:$0xff]
    %v649 = vld [vmem:[%s3 + $0x120] sm:$0xff]
    %v650 = vld [vmem:[%s3 + $0x128] sm:$0xff]
    %v651 = vld [vmem:[%s3 + $0x130] sm:$0xff]
    %v652 = vld [vmem:[%s3 + $0x138] sm:$0xff]
    %v653 = vld [vmem:[%s3 + $0x140] sm:$0xff]
    %v654 = vld [vmem:[%s3 + $0x148] sm:$0xff]
    %v655 = vld [vmem:[%s3 + $0x150] sm:$0xff]
    %v656 = vld [vmem:[%s3 + $0x158] sm:$0xff]
    %v657 = vld [vmem:[%s3 + $0x160] sm:$0xff]
    %v658 = vld [vmem:[%s3 + $0x168] sm:$0xff]
    %v659 = vld [vmem:[%s3 + $0x170] sm:$0xff]
    %v660 = vld [vmem:[%s3 + $0x178] sm:$0xff]
    %v661 = vld [vmem:[%s3 + $0x180] sm:$0xff]
    %v662 = vld [vmem:[%s3 + $0x188] sm:$0xff]
    %v663 = vld [vmem:[%s3 + $0x190] sm:$0xff]
    %v664 = vld [vmem:[%s3 + $0x198] sm:$0xff]
    %v665 = vld [vmem:[%s3 + $0x1a0] sm:$0xff]
    %v666 = vld [vmem:[%s3 + $0x1a8] sm:$0xff]
    %v667 = vld [vmem:[%s3 + $0x1b0] sm:$0xff]
    %v668 = vld [vmem:[%s3 + $0x1b8] sm:$0xff]
    %v669 = vld [vmem:[%s3 + $0x1c0] sm:$0xff]
    %v670 = vld [vmem:[%s3 + $0x1c8] sm:$0xff]
    %v671 = vld [vmem:[%s3 + $0x1d0] sm:$0xff]
    %v672 = vld [vmem:[%s3 + $0x1d8] sm:$0xff]
    %v673 = vld [vmem:[%s3 + $0x1e0] sm:$0xff]
    %v674 = vld [vmem:[%s3 + $0x1e8] sm:$0xff]
    %v675 = vld [vmem:[%s3 + $0x1f0] sm:$0xff]
    %v676 = vld [vmem:[%s3 + $0x1f8] sm:$0xff]
    %v677 = vld [vmem:[%s3 + $0x200] sm:$0xff]
    %v678 = vld [vmem:[%s3 + $0x208] sm:$0xff]
    %v679 = vld [vmem:[%s3 + $0x210] sm:$0xff]
    %v680 = vld [vmem:[%s3 + $0x218] sm:$0xff]
    %v681 = vld [vmem:[%s3 + $0x220] sm:$0xff]
    %v682 = vld [vmem:[%s3 + $0x228] sm:$0xff]
    %v683 = vld [vmem:[%s3 + $0x230] sm:$0xff]
    %v684 = vld [vmem:[%s3 + $0x238] sm:$0xff]
    %v685 = vld [vmem:[%s3 + $0x240] sm:$0xff]
    %v686 = vld [vmem:[%s3 + $0x248] sm:$0xff]
    %v687 = vld [vmem:[%s3 + $0x250] sm:$0xff]
    %v688 = vld [vmem:[%s3 + $0x258] sm:$0xff]
    %v689 = vld [vmem:[%s3 + $0x260] sm:$0xff]
    %v690 = vld [vmem:[%s3 + $0x268] sm:$0xff]
    %v691 = vld [vmem:[%s3 + $0x270] sm:$0xff]
    %v692 = vld [vmem:[%s3 + $0x278] sm:$0xff]
    %v693 = vld [vmem:[%s3 + $0x280] sm:$0xff]
    %v694 = vld [vmem:[%s3 + $0x288] sm:$0xff]
    %v695 = vld [vmem:[%s3 + $0x290] sm:$0xff]
    %v696 = vld [vmem:[%s3 + $0x298] sm:$0xff]
    %v697 = vld [vmem:[%s3 + $0x2a0] sm:$0xff]
    %v698 = vld [vmem:[%s3 + $0x2a8] sm:$0xff]
    %v699 = vld [vmem:[%s3 + $0x2b0] sm:$0xff]
    %v700 = vld [vmem:[%s3 + $0x2b8] sm:$0xff]
    %v701 = vld [vmem:[%s3 + $0x2c0] sm:$0xff]
    %v702 = vld [vmem:[%s3 + $0x2c8] sm:$0xff]
    %v703 = vld [vmem:[%s3 + $0x2d0] sm:$0xff]
    %v704 = vld [vmem:[%s3 + $0x2d8] sm:$0xff]
    %v705 = vld [vmem:[%s3 + $0x2e0] sm:$0xff]
    %v706 = vld [vmem:[%s3 + $0x2e8] sm:$0xff]
    %v707 = vld [vmem:[%s3 + $0x2f0] sm:$0xff]
    %v708 = vld [vmem:[%s3 + $0x2f8] sm:$0xff]
    %v709 = vld [vmem:[%s3 + $0x300] sm:$0xff]
    %v710 = vld [vmem:[%s3 + $0x308] sm:$0xff]
    %v711 = vld [vmem:[%s3 + $0x310] sm:$0xff]
    %v712 = vld [vmem:[%s3 + $0x318] sm:$0xff]
    %v713 = vld [vmem:[%s3 + $0x320] sm:$0xff]
    %v714 = vld [vmem:[%s3 + $0x328] sm:$0xff]
    %v715 = vld [vmem:[%s3 + $0x330] sm:$0xff]
    %v716 = vld [vmem:[%s3 + $0x338] sm:$0xff]
    %v717 = vld [vmem:[%s3 + $0x340] sm:$0xff]
    %v718 = vld [vmem:[%s3 + $0x348] sm:$0xff]
    %v719 = vld [vmem:[%s3 + $0x350] sm:$0xff]
    %v720 = vld [vmem:[%s3 + $0x358] sm:$0xff]
    %v721 = vld [vmem:[%s3 + $0x360] sm:$0xff]
    %v722 = vld [vmem:[%s3 + $0x368] sm:$0xff]
    %v723 = vld [vmem:[%s3 + $0x370] sm:$0xff]
    %v724 = vld [vmem:[%s3 + $0x378] sm:$0xff]
    %v725 = vld [vmem:[%s3 + $0x380] sm:$0xff]
    %v726 = vld [vmem:[%s3 + $0x388] sm:$0xff]
    %v727 = vld [vmem:[%s3 + $0x390] sm:$0xff]
    %v728 = vld [vmem:[%s3 + $0x398] sm:$0xff]
    %v729 = vld [vmem:[%s3 + $0x3a0] sm:$0xff]
    %v730 = vld [vmem:[%s3 + $0x3a8] sm:$0xff]
    %v731 = vld [vmem:[%s3 + $0x3b0] sm:$0xff]
    %v732 = vld [vmem:[%s3 + $0x3b8] sm:$0xff]
    %v733 = vld [vmem:[%s3 + $0x3c0] sm:$0xff]
    %v734 = vld [vmem:[%s3 + $0x3c8] sm:$0xff]
    %v735 = vld [vmem:[%s3 + $0x3d0] sm:$0xff]
    %v736 = vld [vmem:[%s3 + $0x3d8] sm:$0xff]
    %v737 = vld [vmem:[%s3 + $0x3e0] sm:$0xff]
    %v738 = vld [vmem:[%s3 + $0x3e8] sm:$0xff]
    %v739 = vld [vmem:[%s3 + $0x3f0] sm:$0xff]
    %v740 = vld [vmem:[%s3 + $0x3f8] sm:$0xff]
    %v741 = vld [vmem:[%s3 + $0x400] sm:$0xff]
    %v742 = vld [vmem:[%s3 + $0x408] sm:$0xff]
    %v743 = vld [vmem:[%s3 + $0x410] sm:$0xff]
    %v744 = vld [vmem:[%s3 + $0x418] sm:$0xff]
    %v745 = vld [vmem:[%s3 + $0x420] sm:$0xff]
    %v746 = vld [vmem:[%s3 + $0x428] sm:$0xff]
    %v747 = vld [vmem:[%s3 + $0x430] sm:$0xff]
    %v748 = vld [vmem:[%s3 + $0x438] sm:$0xff]
    %v749 = vld [vmem:[%s3 + $0x440] sm:$0xff]
    %v750 = vld [vmem:[%s3 + $0x448] sm:$0xff]
    %v751 = vld [vmem:[%s3 + $0x450] sm:$0xff]
    %v752 = vld [vmem:[%s3 + $0x458] sm:$0xff]
    %v753 = vld [vmem:[%s3 + $0x460] sm:$0xff]
    %v754 = vld [vmem:[%s3 + $0x468] sm:$0xff]
    %v755 = vld [vmem:[%s3 + $0x470] sm:$0xff]
    %v756 = vld [vmem:[%s3 + $0x478] sm:$0xff]
    %v757 = vld [vmem:[%s3 + $0x480] sm:$0xff]
    %v758 = vld [vmem:[%s3 + $0x488] sm:$0xff]
    %v759 = vld [vmem:[%s3 + $0x490] sm:$0xff]
    %v760 = vld [vmem:[%s3 + $0x498] sm:$0xff]
    %v761 = vld [vmem:[%s3 + $0x4a0] sm:$0xff]
    %v762 = vld [vmem:[%s3 + $0x4a8] sm:$0xff]
    %v763 = vld [vmem:[%s3 + $0x4b0] sm:$0xff]
    %v764 = vld [vmem:[%s3 + $0x4b8] sm:$0xff]
    %v765 = vld [vmem:[%s3 + $0x4c0] sm:$0xff]
    %v766 = vld [vmem:[%s3 + $0x4c8] sm:$0xff]
    %v767 = vld [vmem:[%s3 + $0x4d0] sm:$0xff]
    %v768 = vld [vmem:[%s3 + $0x4d8] sm:$0xff]
    %v769 = vld [vmem:[%s3 + $0x4e0] sm:$0xff]
    %v770 = vld [vmem:[%s3 + $0x4e8] sm:$0xff]
    %v771 = vld [vmem:[%s3 + $0x4f0] sm:$0xff]
    %v772 = vld [vmem:[%s3 + $0x4f8] sm:$0xff]
    %v773 = vld [vmem:[%s3 + $0x500] sm:$0xff]
    %v774 = vld [vmem:[%s3 + $0x508] sm:$0xff]
    %v775 = vld [vmem:[%s3 + $0x510] sm:$0xff]
    %v776 = vld [vmem:[%s3 + $0x518] sm:$0xff]
    %v777 = vld [vmem:[%s3 + $0x520] sm:$0xff]
    %v778 = vld [vmem:[%s3 + $0x528] sm:$0xff]
    %v779 = vld [vmem:[%s3 + $0x530] sm:$0xff]
    %v780 = vld [vmem:[%s3 + $0x538] sm:$0xff]
    %v781 = vld [vmem:[%s3 + $0x540] sm:$0xff]
    %v782 = vld [vmem:[%s3 + $0x548] sm:$0xff]
    %v783 = vld [vmem:[%s3 + $0x550] sm:$0xff]
    %v784 = vld [vmem:[%s3 + $0x558] sm:$0xff]
    %v785 = vld [vmem:[%s3 + $0x560] sm:$0xff]
    %v786 = vld [vmem:[%s3 + $0x568] sm:$0xff]
    %v787 = vld [vmem:[%s3 + $0x570] sm:$0xff]
    %v788 = vld [vmem:[%s3 + $0x578] sm:$0xff]
    %v789 = vld [vmem:[%s3 + $0x580] sm:$0xff]
    %v790 = vld [vmem:[%s3 + $0x588] sm:$0xff]
    %v791 = vld [vmem:[%s3 + $0x590] sm:$0xff]
    %v792 = vld [vmem:[%s3 + $0x598] sm:$0xff]
    %v793 = vld [vmem:[%s3 + $0x5a0] sm:$0xff]
    %v794 = vld [vmem:[%s3 + $0x5a8] sm:$0xff]
    %v795 = vld [vmem:[%s3 + $0x5b0] sm:$0xff]
    %v796 = vld [vmem:[%s3 + $0x5b8] sm:$0xff]
    %v797 = vld [vmem:[%s3 + $0x5c0] sm:$0xff]
    %v798 = vld [vmem:[%s3 + $0x5c8] sm:$0xff]
    %v799 = vld [vmem:[%s3 + $0x5d0] sm:$0xff]
    %v800 = vld [vmem:[%s3 + $0x5d8] sm:$0xff]
    %v801 = vld [vmem:[%s3 + $0x5e0] sm:$0xff]
    %v802 = vld [vmem:[%s3 + $0x5e8] sm:$0xff]
    %v803 = vld [vmem:[%s3 + $0x5f0] sm:$0xff]
    %v804 = vld [vmem:[%s3 + $0x5f8] sm:$0xff]
    %v805 = vld [vmem:[%s3 + $0x600] sm:$0xff]
    %v806 = vld [vmem:[%s3 + $0x608] sm:$0xff]
    %v807 = vld [vmem:[%s3 + $0x610] sm:$0xff]
    %v808 = vld [vmem:[%s3 + $0x618] sm:$0xff]
    %v809 = vld [vmem:[%s3 + $0x620] sm:$0xff]
    %v810 = vld [vmem:[%s3 + $0x628] sm:$0xff]
    %v811 = vld [vmem:[%s3 + $0x630] sm:$0xff]
    %v812 = vld [vmem:[%s3 + $0x638] sm:$0xff]
    %v813 = vld [vmem:[%s3 + $0x640] sm:$0xff]
    %v814 = vld [vmem:[%s3 + $0x648] sm:$0xff]
    %v815 = vld [vmem:[%s3 + $0x650] sm:$0xff]
    %v816 = vld [vmem:[%s3 + $0x658] sm:$0xff]
    %v817 = vld [vmem:[%s3 + $0x660] sm:$0xff]
    %v818 = vld [vmem:[%s3 + $0x668] sm:$0xff]
    %v819 = vld [vmem:[%s3 + $0x670] sm:$0xff]
    %v820 = vld [vmem:[%s3 + $0x678] sm:$0xff]
    %v821 = vld [vmem:[%s3 + $0x680] sm:$0xff]
    %v822 = vld [vmem:[%s3 + $0x688] sm:$0xff]
    %v823 = vld [vmem:[%s3 + $0x690] sm:$0xff]
    %v824 = vld [vmem:[%s3 + $0x698] sm:$0xff]
    %v825 = vld [vmem:[%s3 + $0x6a0] sm:$0xff]
    %v826 = vld [vmem:[%s3 + $0x6a8] sm:$0xff]
    %v827 = vld [vmem:[%s3 + $0x6b0] sm:$0xff]
    %v828 = vld [vmem:[%s3 + $0x6b8] sm:$0xff]
    %v829 = vld [vmem:[%s3 + $0x6c0] sm:$0xff]
    %v830 = vld [vmem:[%s3 + $0x6c8] sm:$0xff]
    %v831 = vld [vmem:[%s3 + $0x6d0] sm:$0xff]
    %v832 = vld [vmem:[%s3 + $0x6d8] sm:$0xff]
    %v833 = vld [vmem:[%s3 + $0x6e0] sm:$0xff]
    %v834 = vld [vmem:[%s3 + $0x6e8] sm:$0xff]
    %v835 = vld [vmem:[%s3 + $0x6f0] sm:$0xff]
    %v836 = vld [vmem:[%s3 + $0x6f8] sm:$0xff]
    %v837 = vld [vmem:[%s3 + $0x700] sm:$0xff]
    %v838 = vld [vmem:[%s3 + $0x708] sm:$0xff]
    %v839 = vld [vmem:[%s3 + $0x710] sm:$0xff]
    %v840 = vld [vmem:[%s3 + $0x718] sm:$0xff]
    %v841 = vld [vmem:[%s3 + $0x720] sm:$0xff]
    %v842 = vld [vmem:[%s3 + $0x728] sm:$0xff]
    %v843 = vld [vmem:[%s3 + $0x730] sm:$0xff]
    %v844 = vld [vmem:[%s3 + $0x738] sm:$0xff]
    %v845 = vld [vmem:[%s3 + $0x740] sm:$0xff]
    %v846 = vld [vmem:[%s3 + $0x748] sm:$0xff]
    %v847 = vld [vmem:[%s3 + $0x750] sm:$0xff]
    %v848 = vld [vmem:[%s3 + $0x758] sm:$0xff]
    %v849 = vld [vmem:[%s3 + $0x760] sm:$0xff]
    %v850 = vld [vmem:[%s3 + $0x768] sm:$0xff]
    %v851 = vld [vmem:[%s3 + $0x770] sm:$0xff]
    %v852 = vld [vmem:[%s3 + $0x778] sm:$0xff]
    %v853 = vld [vmem:[%s3 + $0x780] sm:$0xff]
    %v854 = vld [vmem:[%s3 + $0x788] sm:$0xff]
    %v855 = vld [vmem:[%s3 + $0x790] sm:$0xff]
    %v856 = vld [vmem:[%s3 + $0x798] sm:$0xff]
    %v857 = vld [vmem:[%s3 + $0x7a0] sm:$0xff]
    %v858 = vld [vmem:[%s3 + $0x7a8] sm:$0xff]
    %v859 = vld [vmem:[%s3 + $0x7b0] sm:$0xff]
    %v860 = vld [vmem:[%s3 + $0x7b8] sm:$0xff]
    %v861 = vld [vmem:[%s3 + $0x7c0] sm:$0xff]
    %v862 = vld [vmem:[%s3 + $0x7c8] sm:$0xff]
    %v863 = vld [vmem:[%s3 + $0x7d0] sm:$0xff]
    %v864 = vld [vmem:[%s3 + $0x7d8] sm:$0xff]
    %v865 = vld [vmem:[%s3 + $0x7e0] sm:$0xff]
    %v866 = vld [vmem:[%s3 + $0x7e8] sm:$0xff]
    %v867 = vld [vmem:[%s3 + $0x7f0] sm:$0xff]
    %v868 = vld [vmem:[%s3 + $0x7f8] sm:$0xff]
    %v869 = vld [vmem:[%s3 + $0x800] sm:$0xff]
    %v870 = vld [vmem:[%s3 + $0x808] sm:$0xff]
    %v871 = vld [vmem:[%s3 + $0x810] sm:$0xff]
    %v872 = vld [vmem:[%s3 + $0x818] sm:$0xff]
    %v873 = vld [vmem:[%s3 + $0x820] sm:$0xff]
    %v874 = vld [vmem:[%s3 + $0x828] sm:$0xff]
    %v875 = vld [vmem:[%s3 + $0x830] sm:$0xff]
    %v876 = vld [vmem:[%s3 + $0x838] sm:$0xff]
    %v877 = vld [vmem:[%s3 + $0x840] sm:$0xff]
    %v878 = vld [vmem:[%s3 + $0x848] sm:$0xff]
    %v879 = vld [vmem:[%s3 + $0x850] sm:$0xff]
    %v880 = vld [vmem:[%s3 + $0x858] sm:$0xff]
    %v881 = vld [vmem:[%s3 + $0x860] sm:$0xff]
    %v882 = vld [vmem:[%s3 + $0x868] sm:$0xff]
    %v883 = vld [vmem:[%s3 + $0x870] sm:$0xff]
    %v884 = vld [vmem:[%s3 + $0x878] sm:$0xff]
    %v885 = vld [vmem:[%s3 + $0x880] sm:$0xff]
    %v886 = vld [vmem:[%s3 + $0x888] sm:$0xff]
    %v887 = vld [vmem:[%s3 + $0x890] sm:$0xff]
    %v888 = vld [vmem:[%s3 + $0x898] sm:$0xff]
    %v889 = vld [vmem:[%s3 + $0x8a0] sm:$0xff]
    %v890 = vld [vmem:[%s3 + $0x8a8] sm:$0xff]
    %v891 = vld [vmem:[%s3 + $0x8b0] sm:$0xff]
    %v892 = vld [vmem:[%s3 + $0x8b8] sm:$0xff]
    %v893 = vld [vmem:[%s3 + $0x8c0] sm:$0xff]
    %v894 = vld [vmem:[%s3 + $0x8c8] sm:$0xff]
    %v895 = vld [vmem:[%s3 + $0x8d0] sm:$0xff]
    %v896 = vld [vmem:[%s3 + $0x8d8] sm:$0xff]
    %v897 = vld [vmem:[%s3 + $0x8e0] sm:$0xff]
    %v898 = vld [vmem:[%s3 + $0x8e8] sm:$0xff]
    %v899 = vld [vmem:[%s3 + $0x8f0] sm:$0xff]
    %v900 = vld [vmem:[%s3 + $0x8f8] sm:$0xff]
    %v901 = vld [vmem:[%s3 + $0x900] sm:$0xff]
    %v902 = vld [vmem:[%s3 + $0x908] sm:$0xff]
    %v903 = vld [vmem:[%s3 + $0x910] sm:$0xff]
    %v904 = vld [vmem:[%s3 + $0x918] sm:$0xff]
    %v905 = vld [vmem:[%s3 + $0x920] sm:$0xff]
    %v906 = vld [vmem:[%s3 + $0x928] sm:$0xff]
    %v907 = vld [vmem:[%s3 + $0x930] sm:$0xff]
    %v908 = vld [vmem:[%s3 + $0x938] sm:$0xff]
    %v909 = vld [vmem:[%s3 + $0x940] sm:$0xff]
    %v910 = vld [vmem:[%s3 + $0x948] sm:$0xff]
    %v911 = vld [vmem:[%s3 + $0x950] sm:$0xff]
    %v912 = vld [vmem:[%s3 + $0x958] sm:$0xff]
    %v913 = vld [vmem:[%s3 + $0x960] sm:$0xff]
    %v914 = vld [vmem:[%s3 + $0x968] sm:$0xff]
    %v915 = vld [vmem:[%s3 + $0x970] sm:$0xff]
    %v916 = vld [vmem:[%s3 + $0x978] sm:$0xff]
    %v917 = vld [vmem:[%s3 + $0x980] sm:$0xff]
    %v918 = vld [vmem:[%s3 + $0x988] sm:$0xff]
    %v919 = vld [vmem:[%s3 + $0x990] sm:$0xff]
    %v920 = vld [vmem:[%s3 + $0x998] sm:$0xff]
    %v921 = vld [vmem:[%s3 + $0x9a0] sm:$0xff]
    %v922 = vld [vmem:[%s3 + $0x9a8] sm:$0xff]
    %v923 = vld [vmem:[%s3 + $0x9b0] sm:$0xff]
    %v924 = vld [vmem:[%s3 + $0x9b8] sm:$0xff]
    %v925 = vld [vmem:[%s3 + $0x9c0] sm:$0xff]
    %v926 = vld [vmem:[%s3 + $0x9c8] sm:$0xff]
    %v927 = vld [vmem:[%s3 + $0x9d0] sm:$0xff]
    %v928 = vld [vmem:[%s3 + $0x9d8] sm:$0xff]
    %v929 = vld [vmem:[%s3 + $0x9e0] sm:$0xff]
    %v930 = vld [vmem:[%s3 + $0x9e8] sm:$0xff]
    %v931 = vld [vmem:[%s3 + $0x9f0] sm:$0xff]
    %v932 = vld [vmem:[%s3 + $0x9f8] sm:$0xff]
    %v933 = vld [vmem:[%s3 + $0xa00] sm:$0xff]
    %v934 = vld [vmem:[%s3 + $0xa08] sm:$0xff]
    %v935 = vld [vmem:[%s3 + $0xa10] sm:$0xff]
    %v936 = vld [vmem:[%s3 + $0xa18] sm:$0xff]
    %v937 = vld [vmem:[%s3 + $0xa20] sm:$0xff]
    %v938 = vld [vmem:[%s3 + $0xa28] sm:$0xff]
    %v939 = vld [vmem:[%s3 + $0xa30] sm:$0xff]
    %v940 = vld [vmem:[%s3 + $0xa38] sm:$0xff]
    %v941 = vld [vmem:[%s3 + $0xa40] sm:$0xff]
    %v942 = vld [vmem:[%s3 + $0xa48] sm:$0xff]
    %v943 = vld [vmem:[%s3 + $0xa50] sm:$0xff]
    %v944 = vld [vmem:[%s3 + $0xa58] sm:$0xff]
    %v945 = vld [vmem:[%s3 + $0xa60] sm:$0xff]
    %v946 = vld [vmem:[%s3 + $0xa68] sm:$0xff]
    %v947 = vld [vmem:[%s3 + $0xa70] sm:$0xff]
    %v948 = vld [vmem:[%s3 + $0xa78] sm:$0xff]
    %v949 = vld [vmem:[%s3 + $0xa80] sm:$0xff]
    %v950 = vld [vmem:[%s3 + $0xa88] sm:$0xff]
    %v951 = vld [vmem:[%s3 + $0xa90] sm:$0xff]
    %v952 = vld [vmem:[%s3 + $0xa98] sm:$0xff]
    %v953 = vld [vmem:[%s3 + $0xaa0] sm:$0xff]
    %v954 = vld [vmem:[%s3 + $0xaa8] sm:$0xff]
    %v955 = vld [vmem:[%s3 + $0xab0] sm:$0xff]
    %v956 = vld [vmem:[%s3 + $0xab8] sm:$0xff]
    %v957 = vld [vmem:[%s3 + $0xac0] sm:$0xff]
    %v958 = vld [vmem:[%s3 + $0xac8] sm:$0xff]
    %v959 = vld [vmem:[%s3 + $0xad0] sm:$0xff]
    %v960 = vld [vmem:[%s3 + $0xad8] sm:$0xff]
    %v961 = vld [vmem:[%s3 + $0xae0] sm:$0xff]
    %v962 = vld [vmem:[%s3 + $0xae8] sm:$0xff]
    %v963 = vld [vmem:[%s3 + $0xaf0] sm:$0xff]
    %v964 = vld [vmem:[%s3 + $0xaf8] sm:$0xff]
    %v965 = vld [vmem:[%s3 + $0xb00] sm:$0xff]
    %v966 = vld [vmem:[%s3 + $0xb08] sm:$0xff]
    %v967 = vld [vmem:[%s3 + $0xb10] sm:$0xff]
    %v968 = vld [vmem:[%s3 + $0xb18] sm:$0xff]
    %v969 = vld [vmem:[%s3 + $0xb20] sm:$0xff]
    %v970 = vld [vmem:[%s3 + $0xb28] sm:$0xff]
    %v971 = vld [vmem:[%s3 + $0xb30] sm:$0xff]
    %v972 = vld [vmem:[%s3 + $0xb38] sm:$0xff]
    %v973 = vld [vmem:[%s3 + $0xb40] sm:$0xff]
    %v974 = vld [vmem:[%s3 + $0xb48] sm:$0xff]
    %v975 = vld [vmem:[%s3 + $0xb50] sm:$0xff]
    %v976 = vld [vmem:[%s3 + $0xb58] sm:$0xff]
    %v977 = vld [vmem:[%s3 + $0xb60] sm:$0xff]
    %v978 = vld [vmem:[%s3 + $0xb68] sm:$0xff]
    %v979 = vld [vmem:[%s3 + $0xb70] sm:$0xff]
    %v980 = vld [vmem:[%s3 + $0xb78] sm:$0xff]
    %v981 = vld [vmem:[%s3 + $0xb80] sm:$0xff]
    %v982 = vld [vmem:[%s3 + $0xb88] sm:$0xff]
    %v983 = vld [vmem:[%s3 + $0xb90] sm:$0xff]
    %v984 = vld [vmem:[%s3 + $0xb98] sm:$0xff]
    %v985 = vld [vmem:[%s3 + $0xba0] sm:$0xff]
    %v986 = vld [vmem:[%s3 + $0xba8] sm:$0xff]
    %v987 = vld [vmem:[%s3 + $0xbb0] sm:$0xff]
    %v988 = vld [vmem:[%s3 + $0xbb8] sm:$0xff]
    %v989 = vld [vmem:[%s3 + $0xbc0] sm:$0xff]
    %v990 = vld [vmem:[%s3 + $0xbc8] sm:$0xff]
    %v991 = vld [vmem:[%s3 + $0xbd0] sm:$0xff]
    %v992 = vld [vmem:[%s3 + $0xbd8] sm:$0xff]
    %v993 = vld [vmem:[%s3 + $0xbe0] sm:$0xff]
    %v994 = vld [vmem:[%s3 + $0xbe8] sm:$0xff]
    %v995 = vld [vmem:[%s3 + $0xbf0] sm:$0xff]
    %v996 = vld [vmem:[%s3 + $0xbf8] sm:$0xff]
    %v997 = vld [vmem:[%s3 + $0xc00] sm:$0xff]
    %v998 = vld [vmem:[%s3 + $0xc08] sm:$0xff]
    %v999 = vld [vmem:[%s3 + $0xc10] sm:$0xff]
    %v1000 = vld [vmem:[%s3 + $0xc18] sm:$0xff]
    %v1001 = vld [vmem:[%s3 + $0xc20] sm:$0xff]
    %v1002 = vld [vmem:[%s3 + $0xc28] sm:$0xff]
    %v1003 = vld [vmem:[%s3 + $0xc30] sm:$0xff]
    %v1004 = vld [vmem:[%s3 + $0xc38] sm:$0xff]
    %v1005 = vld [vmem:[%s3 + $0xc40] sm:$0xff]
    %v1006 = vld [vmem:[%s3 + $0xc48] sm:$0xff]
    %v1007 = vld [vmem:[%s3 + $0xc50] sm:$0xff]
    %v1008 = vld [vmem:[%s3 + $0xc58] sm:$0xff]
    %v1009 = vld [vmem:[%s3 + $0xc60] sm:$0xff]
    %v1010 = vld [vmem:[%s3 + $0xc68] sm:$0xff]
    %v1011 = vld [vmem:[%s3 + $0xc70] sm:$0xff]
    %v1012 = vld [vmem:[%s3 + $0xc78] sm:$0xff]
    %v1013 = vld [vmem:[%s3 + $0xc80] sm:$0xff]
    %v1014 = vld [vmem:[%s3 + $0xc88] sm:$0xff]
    %v1015 = vld [vmem:[%s3 + $0xc90] sm:$0xff]
    %v1016 = vld [vmem:[%s3 + $0xc98] sm:$0xff]
    %v1017 = vld [vmem:[%s3 + $0xca0] sm:$0xff]
    %v1018 = vld [vmem:[%s3 + $0xca8] sm:$0xff]
    %v1019 = vld [vmem:[%s3 + $0xcb0] sm:$0xff]
    %v1020 = vld [vmem:[%s3 + $0xcb8] sm:$0xff]
    %v1021 = vld [vmem:[%s3 + $0xcc0] sm:$0xff]
    %v1022 = vld [vmem:[%s3 + $0xcc8] sm:$0xff]
    %v1023 = vld [vmem:[%s3 + $0xcd0] sm:$0xff]
    %v1024 = vld [vmem:[%s3 + $0xcd8] sm:$0xff]
    %v1025 = vld [vmem:[%s3 + $0xce0] sm:$0xff]
    %v1026 = vld [vmem:[%s3 + $0xce8] sm:$0xff]
    %v1027 = vld [vmem:[%s3 + $0xcf0] sm:$0xff]
    %v1028 = vld [vmem:[%s3 + $0xcf8] sm:$0xff]
    %v1029 = vld [vmem:[%s3 + $0xd00] sm:$0xff]
    %v1030 = vld [vmem:[%s3 + $0xd08] sm:$0xff]
    %v1031 = vld [vmem:[%s3 + $0xd10] sm:$0xff]
    %v1032 = vld [vmem:[%s3 + $0xd18] sm:$0xff]
    %v1033 = vld [vmem:[%s3 + $0xd20] sm:$0xff]
    %v1034 = vld [vmem:[%s3 + $0xd28] sm:$0xff]
    %v1035 = vld [vmem:[%s3 + $0xd30] sm:$0xff]
    %v1036 = vld [vmem:[%s3 + $0xd38] sm:$0xff]
    %v1037 = vld [vmem:[%s3 + $0xd40] sm:$0xff]
    %v1038 = vld [vmem:[%s3 + $0xd48] sm:$0xff]
    %v1039 = vld [vmem:[%s3 + $0xd50] sm:$0xff]
    %v1040 = vld [vmem:[%s3 + $0xd58] sm:$0xff]
    %v1041 = vld [vmem:[%s3 + $0xd60] sm:$0xff]
    %v1042 = vld [vmem:[%s3 + $0xd68] sm:$0xff]
    %v1043 = vld [vmem:[%s3 + $0xd70] sm:$0xff]
    %v1044 = vld [vmem:[%s3 + $0xd78] sm:$0xff]
    %v1045 = vld [vmem:[%s3 + $0xd80] sm:$0xff]
    %v1046 = vld [vmem:[%s3 + $0xd88] sm:$0xff]
    %v1047 = vld [vmem:[%s3 + $0xd90] sm:$0xff]
    %v1048 = vld [vmem:[%s3 + $0xd98] sm:$0xff]
    %v1049 = vld [vmem:[%s3 + $0xda0] sm:$0xff]
    %v1050 = vld [vmem:[%s3 + $0xda8] sm:$0xff]
    %v1051 = vld [vmem:[%s3 + $0xdb0] sm:$0xff]
    %v1052 = vld [vmem:[%s3 + $0xdb8] sm:$0xff]
    %v1053 = vld [vmem:[%s3 + $0xdc0] sm:$0xff]
    %v1054 = vld [vmem:[%s3 + $0xdc8] sm:$0xff]
    %v1055 = vld [vmem:[%s3 + $0xdd0] sm:$0xff]
    %v1056 = vld [vmem:[%s3 + $0xdd8] sm:$0xff]
    %v1057 = vld [vmem:[%s3 + $0xde0] sm:$0xff]
    %v1058 = vld [vmem:[%s3 + $0xde8] sm:$0xff]
    %v1059 = vld [vmem:[%s3 + $0xdf0] sm:$0xff]
    %v1060 = vld [vmem:[%s3 + $0xdf8] sm:$0xff]
    %v1061 = vld [vmem:[%s3 + $0xe00] sm:$0xff]
    %v1062 = vld [vmem:[%s3 + $0xe08] sm:$0xff]
    %v1063 = vld [vmem:[%s3 + $0xe10] sm:$0xff]
    %v1064 = vld [vmem:[%s3 + $0xe18] sm:$0xff]
    %v1065 = vld [vmem:[%s3 + $0xe20] sm:$0xff]
    %v1066 = vld [vmem:[%s3 + $0xe28] sm:$0xff]
    %v1067 = vld [vmem:[%s3 + $0xe30] sm:$0xff]
    %v1068 = vld [vmem:[%s3 + $0xe38] sm:$0xff]
    %v1069 = vld [vmem:[%s3 + $0xe40] sm:$0xff]
    %v1070 = vld [vmem:[%s3 + $0xe48] sm:$0xff]
    %v1071 = vld [vmem:[%s3 + $0xe50] sm:$0xff]
    %v1072 = vld [vmem:[%s3 + $0xe58] sm:$0xff]
    %v1073 = vld [vmem:[%s3 + $0xe60] sm:$0xff]
    %v1074 = vld [vmem:[%s3 + $0xe68] sm:$0xff]
    %v1075 = vld [vmem:[%s3 + $0xe70] sm:$0xff]
    %v1076 = vld [vmem:[%s3 + $0xe78] sm:$0xff]
    %v1077 = vld [vmem:[%s3 + $0xe80] sm:$0xff]
    %v1078 = vld [vmem:[%s3 + $0xe88] sm:$0xff]
    %v1079 = vld [vmem:[%s3 + $0xe90] sm:$0xff]
    %v1080 = vld [vmem:[%s3 + $0xe98] sm:$0xff]
    %v1081 = vld [vmem:[%s3 + $0xea0] sm:$0xff]
    %v1082 = vld [vmem:[%s3 + $0xea8] sm:$0xff]
    %v1083 = vld [vmem:[%s3 + $0xeb0] sm:$0xff]
    %v1084 = vld [vmem:[%s3 + $0xeb8] sm:$0xff]
    %v1085 = vld [vmem:[%s3 + $0xec0] sm:$0xff]
    %v1086 = vld [vmem:[%s3 + $0xec8] sm:$0xff]
    %v1087 = vld [vmem:[%s3 + $0xed0] sm:$0xff]
    %v1088 = vld [vmem:[%s3 + $0xed8] sm:$0xff]
    %v1089 = vld [vmem:[%s3 + $0xee0] sm:$0xff]
    %v1090 = vld [vmem:[%s3 + $0xee8] sm:$0xff]
    %v1091 = vld [vmem:[%s3 + $0xef0] sm:$0xff]
    %v1092 = vld [vmem:[%s3 + $0xef8] sm:$0xff]
    %v1093 = vld [vmem:[%s3 + $0xf00] sm:$0xff]
    %v1094 = vld [vmem:[%s3 + $0xf08] sm:$0xff]
    %v1095 = vld [vmem:[%s3 + $0xf10] sm:$0xff]
    %v1096 = vld [vmem:[%s3 + $0xf18] sm:$0xff]
    %v1097 = vld [vmem:[%s3 + $0xf20] sm:$0xff]
    %v1098 = vld [vmem:[%s3 + $0xf28] sm:$0xff]
    %v1099 = vld [vmem:[%s3 + $0xf30] sm:$0xff]
    %v1100 = vld [vmem:[%s3 + $0xf38] sm:$0xff]
    %v1101 = vld [vmem:[%s3 + $0xf40] sm:$0xff]
    %v1102 = vld [vmem:[%s3 + $0xf48] sm:$0xff]
    %v1103 = vld [vmem:[%s4] sm:$0x1f]
    %v1105 = vlaneseq
    %v1106 = vshrl.u32 %v1105, 7
    %v1107 = vsub.s32 0, %v1106
    %v1108 = vrot.slane %v1103, %v1107
    %v1109 = vlaneseq
    %v1110 = vshrl.u32 %v1109, 7
    %v1111 = vsub.s32 1, %v1110
    %v1112 = vrot.slane %v1103, %v1111
    %v1113 = vlaneseq
    %v1114 = vshrl.u32 %v1113, 7
    %v1115 = vsub.s32 2, %v1114
    %v1116 = vrot.slane %v1103, %v1115
    %v1117 = vlaneseq
    %v1118 = vshrl.u32 %v1117, 7
    %v1119 = vsub.s32 3, %v1118
    %v1120 = vrot.slane %v1103, %v1119
    %v1121 = vlaneseq
    %v1122 = vshrl.u32 %v1121, 7
    %v1123 = vsub.s32 4, %v1122
    %v1124 = vrot.slane %v1103, %v1123
    %vm1130 = vcmask 130048
    %v1132 = vsel %vm1130, %v612, 0
    %1134 = vmatprep.subr.mxu0 %v689
    %1135 = vmatpush1.msra.mxu0 %v688
    %1136 = vmatprep.subr.mxu0 %v684
    %1137 = vmatpush1.msra.mxu0 %v683
    %1138 = vmatprep.subr.mxu0 %v679
    %1139 = vmatpush1.msra.mxu0 %v678
    %1140 = vmatprep.subr.mxu0 %v674
    %1141 = vmatpush1.msra.mxu0 %v673
    %1142 = vmatprep.subr.mxu0 %v669
    %1143 = vmatpush1.msra.mxu0 %v668
    %1144 = vmatprep.subr.mxu0 %v664
    %1145 = vmatpush1.msra.mxu0 %v663
    %1146 = vmatprep.subr.mxu0 %v659
    %1147 = vmatpush1.msra.mxu0 %v658
    %1148 = vmatprep.subr.mxu0 %v654
    %1149 = vmatpush1.msra.mxu0 %v653
    %1150 = vmatprep.subr.mxu0 %v649
    %1151 = vmatpush1.msra.mxu0 %v648
    %1152 = vmatprep.subr.mxu0 %v644
    %1153 = vmatpush1.msra.mxu0 %v643
    %1154 = vmatprep.subr.mxu0 %v639
    %1155 = vmatpush1.msra.mxu0 %v638
    %1156 = vmatprep.subr.mxu0 %v634
    %1157 = vmatpush1.msra.mxu0 %v633
    %1158 = vmatprep.subr.mxu0 %v629
    %1159 = vmatpush1.msra.mxu0 %v628
    %1160 = vmatprep.subr.mxu0 %v624
    %1161 = vmatpush1.msra.mxu0 %v623
    %1162 = vmatprep.subr.mxu0 %v619
    %1163 = vmatpush1.msra.mxu0 %v618
    %1164 = vmatprep.subr.mxu0 %v614
    %1165 = vmatpush1.msra.mxu0 %v613
    %1166 = vmatprep.subr.mxu0 %v769
    %1167 = vmatpush2.msra.mxu0 %v768
    %1168 = vmatprep.subr.mxu0 %v764
    %1169 = vmatpush2.msra.mxu0 %v763
    %1170 = vmatprep.subr.mxu0 %v759
    %1171 = vmatpush2.msra.mxu0 %v758
    %1172 = vmatprep.subr.mxu0 %v754
    %1173 = vmatpush2.msra.mxu0 %v753
    %1174 = vmatprep.subr.mxu0 %v749
    %1175 = vmatpush2.msra.mxu0 %v748
    %1176 = vmatprep.subr.mxu0 %v744
    %1177 = vmatpush2.msra.mxu0 %v743
    %1178 = vmatprep.subr.mxu0 %v739
    %1179 = vmatpush2.msra.mxu0 %v738
    %1180 = vmatprep.subr.mxu0 %v734
    %1181 = vmatpush2.msra.mxu0 %v733
    %1182 = vmatprep.subr.mxu0 %v729
    %1183 = vmatpush2.msra.mxu0 %v728
    %1184 = vmatprep.subr.mxu0 %v724
    %1185 = vmatpush2.msra.mxu0 %v723
    %1186 = vmatprep.subr.mxu0 %v719
    %1187 = vmatpush2.msra.mxu0 %v718
    %1188 = vmatprep.subr.mxu0 %v714
    %1189 = vmatpush2.msra.mxu0 %v713
    %1190 = vmatprep.subr.mxu0 %v709
    %1191 = vmatpush2.msra.mxu0 %v708
    %1192 = vmatprep.subr.mxu0 %v704
    %1193 = vmatpush2.msra.mxu0 %v703
    %1194 = vmatprep.subr.mxu0 %v699
    %1195 = vmatpush2.msra.mxu0 %v698
    %1196 = vmatprep.subr.mxu0 %v694
    %1197 = vmatpush2.msra.mxu0 %v693
    %1198 = vmatprep.mubr.f32.mxu0 %v607
    %1199 = vmatmul.mubr.f32.gmra.mxu0 %v606
    %v1200 = vpop.f32.mrf.mxu0
    %v1201 = vadd.f32 %v1108, %v1200
    %v1202 = vpop.f32.mrf.mxu0
    %v1203 = vadd.f32 %v1112, %v1202
    %1204 = vdwg.mxu0
    %1205 = vmatprep.subr.mxu0 %v849
    %1206 = vmatpush1.msra.mxu0 %v848
    %1207 = vmatprep.subr.mxu0 %v844
    %1208 = vmatpush1.msra.mxu0 %v843
    %1209 = vmatprep.subr.mxu0 %v839
    %1210 = vmatpush1.msra.mxu0 %v838
    %1211 = vmatprep.subr.mxu0 %v834
    %1212 = vmatpush1.msra.mxu0 %v833
    %1213 = vmatprep.subr.mxu0 %v829
    %1214 = vmatpush1.msra.mxu0 %v828
    %1215 = vmatprep.subr.mxu0 %v824
    %1216 = vmatpush1.msra.mxu0 %v823
    %1217 = vmatprep.subr.mxu0 %v819
    %1218 = vmatpush1.msra.mxu0 %v818
    %1219 = vmatprep.subr.mxu0 %v814
    %1220 = vmatpush1.msra.mxu0 %v813
    %1221 = vmatprep.subr.mxu0 %v809
    %1222 = vmatpush1.msra.mxu0 %v808
    %1223 = vmatprep.subr.mxu0 %v804
    %1224 = vmatpush1.msra.mxu0 %v803
    %1225 = vmatprep.subr.mxu0 %v799
    %1226 = vmatpush1.msra.mxu0 %v798
    %1227 = vmatprep.subr.mxu0 %v794
    %1228 = vmatpush1.msra.mxu0 %v793
    %1229 = vmatprep.subr.mxu0 %v789
    %1230 = vmatpush1.msra.mxu0 %v788
    %1231 = vmatprep.subr.mxu0 %v784
    %1232 = vmatpush1.msra.mxu0 %v783
    %1233 = vmatprep.subr.mxu0 %v779
    %1234 = vmatpush1.msra.mxu0 %v778
    %1235 = vmatprep.subr.mxu0 %v774
    %1236 = vmatpush1.msra.mxu0 %v773
    %1237 = vmatprep.subr.mxu0 %v929
    %1238 = vmatpush2.msra.mxu0 %v928
    %1239 = vmatprep.subr.mxu0 %v924
    %1240 = vmatpush2.msra.mxu0 %v923
    %1241 = vmatprep.subr.mxu0 %v919
    %1242 = vmatpush2.msra.mxu0 %v918
    %1243 = vmatprep.subr.mxu0 %v914
    %1244 = vmatpush2.msra.mxu0 %v913
    %1245 = vmatprep.subr.mxu0 %v909
    %1246 = vmatpush2.msra.mxu0 %v908
    %1247 = vmatprep.subr.mxu0 %v904
    %1248 = vmatpush2.msra.mxu0 %v903
    %1249 = vmatprep.subr.mxu0 %v899
    %1250 = vmatpush2.msra.mxu0 %v898
    %1251 = vmatprep.subr.mxu0 %v894
    %1252 = vmatpush2.msra.mxu0 %v893
    %1253 = vmatprep.subr.mxu0 %v889
    %1254 = vmatpush2.msra.mxu0 %v888
    %1255 = vmatprep.subr.mxu0 %v884
    %1256 = vmatpush2.msra.mxu0 %v883
    %1257 = vmatprep.subr.mxu0 %v879
    %1258 = vmatpush2.msra.mxu0 %v878
    %1259 = vmatprep.subr.mxu0 %v874
    %1260 = vmatpush2.msra.mxu0 %v873
    %1261 = vmatprep.subr.mxu0 %v869
    %1262 = vmatpush2.msra.mxu0 %v868
    %1263 = vmatprep.subr.mxu0 %v864
    %1264 = vmatpush2.msra.mxu0 %v863
    %1265 = vmatprep.subr.mxu0 %v859
    %1266 = vmatpush2.msra.mxu0 %v858
    %1267 = vmatprep.subr.mxu0 %v854
    %1268 = vmatpush2.msra.mxu0 %v853
    %1269 = vmatprep.mubr.f32.mxu0 %v609
    %1270 = vmatmul.mubr.f32.gmra.mxu0 %v608
    %v1271 = vpop.f32.mrf.mxu0
    %v1272 = vadd.f32 %v1201, %v1271
    %v1273 = vpop.f32.mrf.mxu0
    %v1274 = vadd.f32 %v1203, %v1273
    %1275 = vdwg.mxu0
    %1276 = vmatprep.subr.mxu0 %v1009
    %1277 = vmatpush1.msra.mxu0 %v1008
    %1278 = vmatprep.subr.mxu0 %v1004
    %1279 = vmatpush1.msra.mxu0 %v1003
    %1280 = vmatprep.subr.mxu0 %v999
    %1281 = vmatpush1.msra.mxu0 %v998
    %1282 = vmatprep.subr.mxu0 %v994
    %1283 = vmatpush1.msra.mxu0 %v993
    %1284 = vmatprep.subr.mxu0 %v989
    %1285 = vmatpush1.msra.mxu0 %v988
    %1286 = vmatprep.subr.mxu0 %v984
    %1287 = vmatpush1.msra.mxu0 %v983
    %1288 = vmatprep.subr.mxu0 %v979
    %1289 = vmatpush1.msra.mxu0 %v978
    %1290 = vmatprep.subr.mxu0 %v974
    %1291 = vmatpush1.msra.mxu0 %v973
    %1292 = vmatprep.subr.mxu0 %v969
    %1293 = vmatpush1.msra.mxu0 %v968
    %1294 = vmatprep.subr.mxu0 %v964
    %1295 = vmatpush1.msra.mxu0 %v963
    %1296 = vmatprep.subr.mxu0 %v959
    %1297 = vmatpush1.msra.mxu0 %v958
    %1298 = vmatprep.subr.mxu0 %v954
    %1299 = vmatpush1.msra.mxu0 %v953
    %1300 = vmatprep.subr.mxu0 %v949
    %1301 = vmatpush1.msra.mxu0 %v948
    %1302 = vmatprep.subr.mxu0 %v944
    %1303 = vmatpush1.msra.mxu0 %v943
    %1304 = vmatprep.subr.mxu0 %v939
    %1305 = vmatpush1.msra.mxu0 %v938
    %1306 = vmatprep.subr.mxu0 %v934
    %1307 = vmatpush1.msra.mxu0 %v933
    %1308 = vmatprep.subr.mxu0 %v1089
    %1309 = vmatpush2.msra.mxu0 %v1088
    %1310 = vmatprep.subr.mxu0 %v1084
    %1311 = vmatpush2.msra.mxu0 %v1083
    %1312 = vmatprep.subr.mxu0 %v1079
    %1313 = vmatpush2.msra.mxu0 %v1078
    %1314 = vmatprep.subr.mxu0 %v1074
    %1315 = vmatpush2.msra.mxu0 %v1073
    %1316 = vmatprep.subr.mxu0 %v1069
    %1317 = vmatpush2.msra.mxu0 %v1068
    %1318 = vmatprep.subr.mxu0 %v1064
    %1319 = vmatpush2.msra.mxu0 %v1063
    %1320 = vmatprep.subr.mxu0 %v1059
    %1321 = vmatpush2.msra.mxu0 %v1058
    %1322 = vmatprep.subr.mxu0 %v1054
    %1323 = vmatpush2.msra.mxu0 %v1053
    %1324 = vmatprep.subr.mxu0 %v1049
    %1325 = vmatpush2.msra.mxu0 %v1048
    %1326 = vmatprep.subr.mxu0 %v1044
    %1327 = vmatpush2.msra.mxu0 %v1043
    %1328 = vmatprep.subr.mxu0 %v1039
    %1329 = vmatpush2.msra.mxu0 %v1038
    %1330 = vmatprep.subr.mxu0 %v1034
    %1331 = vmatpush2.msra.mxu0 %v1033
    %1332 = vmatprep.subr.mxu0 %v1029
    %1333 = vmatpush2.msra.mxu0 %v1028
    %1334 = vmatprep.subr.mxu0 %v1024
    %1335 = vmatpush2.msra.mxu0 %v1023
    %1336 = vmatprep.subr.mxu0 %v1019
    %1337 = vmatpush2.msra.mxu0 %v1018
    %1338 = vmatprep.subr.mxu0 %v1014
    %1339 = vmatpush2.msra.mxu0 %v1013
    %1340 = vmatprep.mubr.f32.mxu0 %v611
    %1341 = vmatmul.mubr.f32.gmra.mxu0 %v610
    %v1342 = vpop.f32.mrf.mxu0
    %v1343 = vadd.f32 %v1272, %v1342
    %v1344 = vpop.f32.mrf.mxu0
    %v1345 = vadd.f32 %v1274, %v1344
    %1346 = vdwg.mxu0
    %1347 = vmatprep.subr.mxu0 0.0
    %1348 = vmatpush1.msra.mxu0 0.0
    %1349 = vmatprep.subr.mxu0 0.0
    %1350 = vmatpush1.msra.mxu0 0.0
    %1351 = vmatprep.subr.mxu0 0.0
    %1352 = vmatpush1.msra.mxu0 0.0
    %1353 = vmatprep.subr.mxu0 0.0
    %1354 = vmatpush1.msra.mxu0 0.0
    %1355 = vmatprep.subr.mxu0 0.0
    %1356 = vmatpush1.msra.mxu0 0.0
    %1357 = vmatprep.subr.mxu0 0.0
    %1358 = vmatpush1.msra.mxu0 0.0
    %1359 = vmatprep.subr.mxu0 0.0
    %1360 = vmatpush1.msra.mxu0 0.0
    %1361 = vmatprep.subr.mxu0 0.0
    %1362 = vmatpush1.msra.mxu0 0.0
    %1363 = vmatprep.subr.mxu0 0.0
    %1364 = vmatpush1.msra.mxu0 0.0
    %1365 = vmatprep.subr.mxu0 0.0
    %1366 = vmatpush1.msra.mxu0 0.0
    %1367 = vmatprep.subr.mxu0 0.0
    %1368 = vmatpush1.msra.mxu0 0.0
    %1369 = vmatprep.subr.mxu0 0.0
    %1370 = vmatpush1.msra.mxu0 0.0
    %1371 = vmatprep.subr.mxu0 0.0
    %1372 = vmatpush1.msra.mxu0 0.0
    %1373 = vmatprep.subr.mxu0 0.0
    %1374 = vmatpush1.msra.mxu0 0.0
    %1375 = vmatprep.subr.mxu0 %v1099
    %1376 = vmatpush1.msra.mxu0 %v1098
    %1377 = vmatprep.subr.mxu0 %v1094
    %1378 = vmatpush1.msra.mxu0 %v1093
    %1379 = vmatprep.subr.mxu0 0.0
    %1380 = vmatpush2.msra.mxu0 0.0
    %1381 = vmatprep.subr.mxu0 0.0
    %1382 = vmatpush2.msra.mxu0 0.0
    %1383 = vmatprep.subr.mxu0 0.0
    %1384 = vmatpush2.msra.mxu0 0.0
    %1385 = vmatprep.subr.mxu0 0.0
    %1386 = vmatpush2.msra.mxu0 0.0
    %1387 = vmatprep.subr.mxu0 0.0
    %1388 = vmatpush2.msra.mxu0 0.0
    %1389 = vmatprep.subr.mxu0 0.0
    %1390 = vmatpush2.msra.mxu0 0.0
    %1391 = vmatprep.subr.mxu0 0.0
    %1392 = vmatpush2.msra.mxu0 0.0
    %1393 = vmatprep.subr.mxu0 0.0
    %1394 = vmatpush2.msra.mxu0 0.0
    %1395 = vmatprep.subr.mxu0 0.0
    %1396 = vmatpush2.msra.mxu0 0.0
    %1397 = vmatprep.subr.mxu0 0.0
    %1398 = vmatpush2.msra.mxu0 0.0
    %1399 = vmatprep.subr.mxu0 0.0
    %1400 = vmatpush2.msra.mxu0 0.0
    %1401 = vmatprep.subr.mxu0 0.0
    %1402 = vmatpush2.msra.mxu0 0.0
    %1403 = vmatprep.subr.mxu0 0.0
    %1404 = vmatpush2.msra.mxu0 0.0
    %1405 = vmatprep.subr.mxu0 0.0
    %1406 = vmatpush2.msra.mxu0 0.0
    %1407 = vmatprep.subr.mxu0 0.0
    %1408 = vmatpush2.msra.mxu0 0.0
    %1409 = vmatprep.subr.mxu0 0.0
    %1410 = vmatpush2.msra.mxu0 0.0
    %1411 = vmatprep.mubr.f32.mxu0 0.0
    %1412 = vmatmul.mubr.f32.gmra.mxu0 %v1132
    %v1413 = vpop.f32.mrf.mxu0
    %v1414 = vadd.f32 %v1343, %v1413
    %v1415 = vpop.f32.mrf.mxu0
    %v1416 = vadd.f32 %v1345, %v1415
    %1417 = vdwg.mxu0
    %1418 = vmatprep.subr.mxu0 %v691
    %1419 = vmatpush1.msra.mxu0 %v690
    %1420 = vmatprep.subr.mxu0 %v686
    %1421 = vmatpush1.msra.mxu0 %v685
    %1422 = vmatprep.subr.mxu0 %v681
    %1423 = vmatpush1.msra.mxu0 %v680
    %1424 = vmatprep.subr.mxu0 %v676
    %1425 = vmatpush1.msra.mxu0 %v675
    %1426 = vmatprep.subr.mxu0 %v671
    %1427 = vmatpush1.msra.mxu0 %v670
    %1428 = vmatprep.subr.mxu0 %v666
    %1429 = vmatpush1.msra.mxu0 %v665
    %1430 = vmatprep.subr.mxu0 %v661
    %1431 = vmatpush1.msra.mxu0 %v660
    %1432 = vmatprep.subr.mxu0 %v656
    %1433 = vmatpush1.msra.mxu0 %v655
    %1434 = vmatprep.subr.mxu0 %v651
    %1435 = vmatpush1.msra.mxu0 %v650
    %1436 = vmatprep.subr.mxu0 %v646
    %1437 = vmatpush1.msra.mxu0 %v645
    %1438 = vmatprep.subr.mxu0 %v641
    %1439 = vmatpush1.msra.mxu0 %v640
    %1440 = vmatprep.subr.mxu0 %v636
    %1441 = vmatpush1.msra.mxu0 %v635
    %1442 = vmatprep.subr.mxu0 %v631
    %1443 = vmatpush1.msra.mxu0 %v630
    %1444 = vmatprep.subr.mxu0 %v626
    %1445 = vmatpush1.msra.mxu0 %v625
    %1446 = vmatprep.subr.mxu0 %v621
    %1447 = vmatpush1.msra.mxu0 %v620
    %1448 = vmatprep.subr.mxu0 %v616
    %1449 = vmatpush1.msra.mxu0 %v615
    %1450 = vmatprep.subr.mxu0 %v771
    %1451 = vmatpush2.msra.mxu0 %v770
    %1452 = vmatprep.subr.mxu0 %v766
    %1453 = vmatpush2.msra.mxu0 %v765
    %1454 = vmatprep.subr.mxu0 %v761
    %1455 = vmatpush2.msra.mxu0 %v760
    %1456 = vmatprep.subr.mxu0 %v756
    %1457 = vmatpush2.msra.mxu0 %v755
    %1458 = vmatprep.subr.mxu0 %v751
    %1459 = vmatpush2.msra.mxu0 %v750
    %1460 = vmatprep.subr.mxu0 %v746
    %1461 = vmatpush2.msra.mxu0 %v745
    %1462 = vmatprep.subr.mxu0 %v741
    %1463 = vmatpush2.msra.mxu0 %v740
    %1464 = vmatprep.subr.mxu0 %v736
    %1465 = vmatpush2.msra.mxu0 %v735
    %1466 = vmatprep.subr.mxu0 %v731
    %1467 = vmatpush2.msra.mxu0 %v730
    %1468 = vmatprep.subr.mxu0 %v726
    %1469 = vmatpush2.msra.mxu0 %v725
    %1470 = vmatprep.subr.mxu0 %v721
    %1471 = vmatpush2.msra.mxu0 %v720
    %1472 = vmatprep.subr.mxu0 %v716
    %1473 = vmatpush2.msra.mxu0 %v715
    %1474 = vmatprep.subr.mxu0 %v711
    %1475 = vmatpush2.msra.mxu0 %v710
    %1476 = vmatprep.subr.mxu0 %v706
    %1477 = vmatpush2.msra.mxu0 %v705
    %1478 = vmatprep.subr.mxu0 %v701
    %1479 = vmatpush2.msra.mxu0 %v700
    %1480 = vmatprep.subr.mxu0 %v696
    %1481 = vmatpush2.msra.mxu0 %v695
    %1482 = vmatprep.mubr.f32.mxu0 %v607
    %1483 = vmatmul.mubr.f32.gmra.mxu0 %v606
    %v1484 = vpop.f32.mrf.mxu0
    %v1485 = vadd.f32 %v1116, %v1484
    %v1486 = vpop.f32.mrf.mxu0
    %v1487 = vadd.f32 %v1120, %v1486
    %1488 = vdwg.mxu0
    %1489 = vmatprep.subr.mxu0 %v851
    %1490 = vmatpush1.msra.mxu0 %v850
    %1491 = vmatprep.subr.mxu0 %v846
    %1492 = vmatpush1.msra.mxu0 %v845
    %1493 = vmatprep.subr.mxu0 %v841
    %1494 = vmatpush1.msra.mxu0 %v840
    %1495 = vmatprep.subr.mxu0 %v836
    %1496 = vmatpush1.msra.mxu0 %v835
    %1497 = vmatprep.subr.mxu0 %v831
    %1498 = vmatpush1.msra.mxu0 %v830
    %1499 = vmatprep.subr.mxu0 %v826
    %1500 = vmatpush1.msra.mxu0 %v825
    %1501 = vmatprep.subr.mxu0 %v821
    %1502 = vmatpush1.msra.mxu0 %v820
    %1503 = vmatprep.subr.mxu0 %v816
    %1504 = vmatpush1.msra.mxu0 %v815
    %1505 = vmatprep.subr.mxu0 %v811
    %1506 = vmatpush1.msra.mxu0 %v810
    %1507 = vmatprep.subr.mxu0 %v806
    %1508 = vmatpush1.msra.mxu0 %v805
    %1509 = vmatprep.subr.mxu0 %v801
    %1510 = vmatpush1.msra.mxu0 %v800
    %1511 = vmatprep.subr.mxu0 %v796
    %1512 = vmatpush1.msra.mxu0 %v795
    %1513 = vmatprep.subr.mxu0 %v791
    %1514 = vmatpush1.msra.mxu0 %v790
    %1515 = vmatprep.subr.mxu0 %v786
    %1516 = vmatpush1.msra.mxu0 %v785
    %1517 = vmatprep.subr.mxu0 %v781
    %1518 = vmatpush1.msra.mxu0 %v780
    %1519 = vmatprep.subr.mxu0 %v776
    %1520 = vmatpush1.msra.mxu0 %v775
    %1521 = vmatprep.subr.mxu0 %v931
    %1522 = vmatpush2.msra.mxu0 %v930
    %1523 = vmatprep.subr.mxu0 %v926
    %1524 = vmatpush2.msra.mxu0 %v925
    %1525 = vmatprep.subr.mxu0 %v921
    %1526 = vmatpush2.msra.mxu0 %v920
    %1527 = vmatprep.subr.mxu0 %v916
    %1528 = vmatpush2.msra.mxu0 %v915
    %1529 = vmatprep.subr.mxu0 %v911
    %1530 = vmatpush2.msra.mxu0 %v910
    %1531 = vmatprep.subr.mxu0 %v906
    %1532 = vmatpush2.msra.mxu0 %v905
    %1533 = vmatprep.subr.mxu0 %v901
    %1534 = vmatpush2.msra.mxu0 %v900
    %1535 = vmatprep.subr.mxu0 %v896
    %1536 = vmatpush2.msra.mxu0 %v895
    %1537 = vmatprep.subr.mxu0 %v891
    %1538 = vmatpush2.msra.mxu0 %v890
    %1539 = vmatprep.subr.mxu0 %v886
    %1540 = vmatpush2.msra.mxu0 %v885
    %1541 = vmatprep.subr.mxu0 %v881
    %1542 = vmatpush2.msra.mxu0 %v880
    %1543 = vmatprep.subr.mxu0 %v876
    %1544 = vmatpush2.msra.mxu0 %v875
    %1545 = vmatprep.subr.mxu0 %v871
    %1546 = vmatpush2.msra.mxu0 %v870
    %1547 = vmatprep.subr.mxu0 %v866
    %1548 = vmatpush2.msra.mxu0 %v865
    %1549 = vmatprep.subr.mxu0 %v861
    %1550 = vmatpush2.msra.mxu0 %v860
    %1551 = vmatprep.subr.mxu0 %v856
    %1552 = vmatpush2.msra.mxu0 %v855
    %1553 = vmatprep.mubr.f32.mxu0 %v609
    %1554 = vmatmul.mubr.f32.gmra.mxu0 %v608
    %v1555 = vpop.f32.mrf.mxu0
    %v1556 = vadd.f32 %v1485, %v1555
    %v1557 = vpop.f32.mrf.mxu0
    %v1558 = vadd.f32 %v1487, %v1557
    %1559 = vdwg.mxu0
    %1560 = vmatprep.subr.mxu0 %v1011
    %1561 = vmatpush1.msra.mxu0 %v1010
    %1562 = vmatprep.subr.mxu0 %v1006
    %1563 = vmatpush1.msra.mxu0 %v1005
    %1564 = vmatprep.subr.mxu0 %v1001
    %1565 = vmatpush1.msra.mxu0 %v1000
    %1566 = vmatprep.subr.mxu0 %v996
    %1567 = vmatpush1.msra.mxu0 %v995
    %1568 = vmatprep.subr.mxu0 %v991
    %1569 = vmatpush1.msra.mxu0 %v990
    %1570 = vmatprep.subr.mxu0 %v986
    %1571 = vmatpush1.msra.mxu0 %v985
    %1572 = vmatprep.subr.mxu0 %v981
    %1573 = vmatpush1.msra.mxu0 %v980
    %1574 = vmatprep.subr.mxu0 %v976
    %1575 = vmatpush1.msra.mxu0 %v975
    %1576 = vmatprep.subr.mxu0 %v971
    %1577 = vmatpush1.msra.mxu0 %v970
    %1578 = vmatprep.subr.mxu0 %v966
    %1579 = vmatpush1.msra.mxu0 %v965
    %1580 = vmatprep.subr.mxu0 %v961
    %1581 = vmatpush1.msra.mxu0 %v960
    %1582 = vmatprep.subr.mxu0 %v956
    %1583 = vmatpush1.msra.mxu0 %v955
    %1584 = vmatprep.subr.mxu0 %v951
    %1585 = vmatpush1.msra.mxu0 %v950
    %1586 = vmatprep.subr.mxu0 %v946
    %1587 = vmatpush1.msra.mxu0 %v945
    %1588 = vmatprep.subr.mxu0 %v941
    %1589 = vmatpush1.msra.mxu0 %v940
    %1590 = vmatprep.subr.mxu0 %v936
    %1591 = vmatpush1.msra.mxu0 %v935
    %1592 = vmatprep.subr.mxu0 %v1091
    %1593 = vmatpush2.msra.mxu0 %v1090
    %1594 = vmatprep.subr.mxu0 %v1086
    %1595 = vmatpush2.msra.mxu0 %v1085
    %1596 = vmatprep.subr.mxu0 %v1081
    %1597 = vmatpush2.msra.mxu0 %v1080
    %1598 = vmatprep.subr.mxu0 %v1076
    %1599 = vmatpush2.msra.mxu0 %v1075
    %1600 = vmatprep.subr.mxu0 %v1071
    %1601 = vmatpush2.msra.mxu0 %v1070
    %1602 = vmatprep.subr.mxu0 %v1066
    %1603 = vmatpush2.msra.mxu0 %v1065
    %1604 = vmatprep.subr.mxu0 %v1061
    %1605 = vmatpush2.msra.mxu0 %v1060
    %1606 = vmatprep.subr.mxu0 %v1056
    %1607 = vmatpush2.msra.mxu0 %v1055
    %1608 = vmatprep.subr.mxu0 %v1051
    %1609 = vmatpush2.msra.mxu0 %v1050
    %1610 = vmatprep.subr.mxu0 %v1046
    %1611 = vmatpush2.msra.mxu0 %v1045
    %1612 = vmatprep.subr.mxu0 %v1041
    %1613 = vmatpush2.msra.mxu0 %v1040
    %1614 = vmatprep.subr.mxu0 %v1036
    %1615 = vmatpush2.msra.mxu0 %v1035
    %1616 = vmatprep.subr.mxu0 %v1031
    %1617 = vmatpush2.msra.mxu0 %v1030
    %1618 = vmatprep.subr.mxu0 %v1026
    %1619 = vmatpush2.msra.mxu0 %v1025
    %1620 = vmatprep.subr.mxu0 %v1021
    %1621 = vmatpush2.msra.mxu0 %v1020
    %1622 = vmatprep.subr.mxu0 %v1016
    %1623 = vmatpush2.msra.mxu0 %v1015
    %1624 = vmatprep.mubr.f32.mxu0 %v611
    %1625 = vmatmul.mubr.f32.gmra.mxu0 %v610
    %v1626 = vpop.f32.mrf.mxu0
    %v1627 = vadd.f32 %v1556, %v1626
    %v1628 = vpop.f32.mrf.mxu0
    %v1629 = vadd.f32 %v1558, %v1628
    %1630 = vdwg.mxu0
    %1631 = vmatprep.subr.mxu0 0.0
    %1632 = vmatpush1.msra.mxu0 0.0
    %1633 = vmatprep.subr.mxu0 0.0
    %1634 = vmatpush1.msra.mxu0 0.0
    %1635 = vmatprep.subr.mxu0 0.0
    %1636 = vmatpush1.msra.mxu0 0.0
    %1637 = vmatprep.subr.mxu0 0.0
    %1638 = vmatpush1.msra.mxu0 0.0
    %1639 = vmatprep.subr.mxu0 0.0
    %1640 = vmatpush1.msra.mxu0 0.0
    %1641 = vmatprep.subr.mxu0 0.0
    %1642 = vmatpush1.msra.mxu0 0.0
    %1643 = vmatprep.subr.mxu0 0.0
    %1644 = vmatpush1.msra.mxu0 0.0
    %1645 = vmatprep.subr.mxu0 0.0
    %1646 = vmatpush1.msra.mxu0 0.0
    %1647 = vmatprep.subr.mxu0 0.0
    %1648 = vmatpush1.msra.mxu0 0.0
    %1649 = vmatprep.subr.mxu0 0.0
    %1650 = vmatpush1.msra.mxu0 0.0
    %1651 = vmatprep.subr.mxu0 0.0
    %1652 = vmatpush1.msra.mxu0 0.0
    %1653 = vmatprep.subr.mxu0 0.0
    %1654 = vmatpush1.msra.mxu0 0.0
    %1655 = vmatprep.subr.mxu0 0.0
    %1656 = vmatpush1.msra.mxu0 0.0
    %1657 = vmatprep.subr.mxu0 0.0
    %1658 = vmatpush1.msra.mxu0 0.0
    %1659 = vmatprep.subr.mxu0 %v1101
    %1660 = vmatpush1.msra.mxu0 %v1100
    %1661 = vmatprep.subr.mxu0 %v1096
    %1662 = vmatpush1.msra.mxu0 %v1095
    %1663 = vmatprep.subr.mxu0 0.0
    %1664 = vmatpush2.msra.mxu0 0.0
    %1665 = vmatprep.subr.mxu0 0.0
    %1666 = vmatpush2.msra.mxu0 0.0
    %1667 = vmatprep.subr.mxu0 0.0
    %1668 = vmatpush2.msra.mxu0 0.0
    %1669 = vmatprep.subr.mxu0 0.0
    %1670 = vmatpush2.msra.mxu0 0.0
    %1671 = vmatprep.subr.mxu0 0.0
    %1672 = vmatpush2.msra.mxu0 0.0
    %1673 = vmatprep.subr.mxu0 0.0
    %1674 = vmatpush2.msra.mxu0 0.0
    %1675 = vmatprep.subr.mxu0 0.0
    %1676 = vmatpush2.msra.mxu0 0.0
    %1677 = vmatprep.subr.mxu0 0.0
    %1678 = vmatpush2.msra.mxu0 0.0
    %1679 = vmatprep.subr.mxu0 0.0
    %1680 = vmatpush2.msra.mxu0 0.0
    %1681 = vmatprep.subr.mxu0 0.0
    %1682 = vmatpush2.msra.mxu0 0.0
    %1683 = vmatprep.subr.mxu0 0.0
    %1684 = vmatpush2.msra.mxu0 0.0
    %1685 = vmatprep.subr.mxu0 0.0
    %1686 = vmatpush2.msra.mxu0 0.0
    %1687 = vmatprep.subr.mxu0 0.0
    %1688 = vmatpush2.msra.mxu0 0.0
    %1689 = vmatprep.subr.mxu0 0.0
    %1690 = vmatpush2.msra.mxu0 0.0
    %1691 = vmatprep.subr.mxu0 0.0
    %1692 = vmatpush2.msra.mxu0 0.0
    %1693 = vmatprep.subr.mxu0 0.0
    %1694 = vmatpush2.msra.mxu0 0.0
    %1695 = vmatprep.mubr.f32.mxu0 0.0
    %1696 = vmatmul.mubr.f32.gmra.mxu0 %v1132
    %v1697 = vpop.f32.mrf.mxu0
    %v1698 = vadd.f32 %v1627, %v1697
    %v1699 = vpop.f32.mrf.mxu0
    %v1700 = vadd.f32 %v1629, %v1699
    %1701 = vdwg.mxu0
    %1702 = vmatprep.subr.mxu0 0.0
    %1703 = vmatpush1.msra.mxu0 %v692
    %1704 = vmatprep.subr.mxu0 0.0
    %1705 = vmatpush1.msra.mxu0 %v687
    %1706 = vmatprep.subr.mxu0 0.0
    %1707 = vmatpush1.msra.mxu0 %v682
    %1708 = vmatprep.subr.mxu0 0.0
    %1709 = vmatpush1.msra.mxu0 %v677
    %1710 = vmatprep.subr.mxu0 0.0
    %1711 = vmatpush1.msra.mxu0 %v672
    %1712 = vmatprep.subr.mxu0 0.0
    %1713 = vmatpush1.msra.mxu0 %v667
    %1714 = vmatprep.subr.mxu0 0.0
    %1715 = vmatpush1.msra.mxu0 %v662
    %1716 = vmatprep.subr.mxu0 0.0
    %1717 = vmatpush1.msra.mxu0 %v657
    %1718 = vmatprep.subr.mxu0 0.0
    %1719 = vmatpush1.msra.mxu0 %v652
    %1720 = vmatprep.subr.mxu0 0.0
    %1721 = vmatpush1.msra.mxu0 %v647
    %1722 = vmatprep.subr.mxu0 0.0
    %1723 = vmatpush1.msra.mxu0 %v642
    %1724 = vmatprep.subr.mxu0 0.0
    %1725 = vmatpush1.msra.mxu0 %v637
    %1726 = vmatprep.subr.mxu0 0.0
    %1727 = vmatpush1.msra.mxu0 %v632
    %1728 = vmatprep.subr.mxu0 0.0
    %1729 = vmatpush1.msra.mxu0 %v627
    %1730 = vmatprep.subr.mxu0 0.0
    %1731 = vmatpush1.msra.mxu0 %v622
    %1732 = vmatprep.subr.mxu0 0.0
    %1733 = vmatpush1.msra.mxu0 %v617
    %1734 = vmatprep.subr.mxu0 0.0
    %1735 = vmatpush2.msra.mxu0 %v772
    %1736 = vmatprep.subr.mxu0 0.0
    %1737 = vmatpush2.msra.mxu0 %v767
    %1738 = vmatprep.subr.mxu0 0.0
    %1739 = vmatpush2.msra.mxu0 %v762
    %1740 = vmatprep.subr.mxu0 0.0
    %1741 = vmatpush2.msra.mxu0 %v757
    %1742 = vmatprep.subr.mxu0 0.0
    %1743 = vmatpush2.msra.mxu0 %v752
    %1744 = vmatprep.subr.mxu0 0.0
    %1745 = vmatpush2.msra.mxu0 %v747
    %1746 = vmatprep.subr.mxu0 0.0
    %1747 = vmatpush2.msra.mxu0 %v742
    %1748 = vmatprep.subr.mxu0 0.0
    %1749 = vmatpush2.msra.mxu0 %v737
    %1750 = vmatprep.subr.mxu0 0.0
    %1751 = vmatpush2.msra.mxu0 %v732
    %1752 = vmatprep.subr.mxu0 0.0
    %1753 = vmatpush2.msra.mxu0 %v727
    %1754 = vmatprep.subr.mxu0 0.0
    %1755 = vmatpush2.msra.mxu0 %v722
    %1756 = vmatprep.subr.mxu0 0.0
    %1757 = vmatpush2.msra.mxu0 %v717
    %1758 = vmatprep.subr.mxu0 0.0
    %1759 = vmatpush2.msra.mxu0 %v712
    %1760 = vmatprep.subr.mxu0 0.0
    %1761 = vmatpush2.msra.mxu0 %v707
    %1762 = vmatprep.subr.mxu0 0.0
    %1763 = vmatpush2.msra.mxu0 %v702
    %1764 = vmatprep.subr.mxu0 0.0
    %1765 = vmatpush2.msra.mxu0 %v697
    %1766 = vmatprep.mubr.f32.mxu0 %v607
    %1767 = vmatmul.mubr.f32.gmra.mxu0 %v606
    %v1768 = vpop.f32.mrf.mxu0
    %v1769 = vadd.f32 %v1124, %v1768
    %v1770 = vpop.f32.mrf.mxu0
    %1771 = vdwg.mxu0
    %1772 = vmatprep.subr.mxu0 0.0
    %1773 = vmatpush1.msra.mxu0 %v852
    %1774 = vmatprep.subr.mxu0 0.0
    %1775 = vmatpush1.msra.mxu0 %v847
    %1776 = vmatprep.subr.mxu0 0.0
    %1777 = vmatpush1.msra.mxu0 %v842
    %1778 = vmatprep.subr.mxu0 0.0
    %1779 = vmatpush1.msra.mxu0 %v837
    %1780 = vmatprep.subr.mxu0 0.0
    %1781 = vmatpush1.msra.mxu0 %v832
    %1782 = vmatprep.subr.mxu0 0.0
    %1783 = vmatpush1.msra.mxu0 %v827
    %1784 = vmatprep.subr.mxu0 0.0
    %1785 = vmatpush1.msra.mxu0 %v822
    %1786 = vmatprep.subr.mxu0 0.0
    %1787 = vmatpush1.msra.mxu0 %v817
    %1788 = vmatprep.subr.mxu0 0.0
    %1789 = vmatpush1.msra.mxu0 %v812
    %1790 = vmatprep.subr.mxu0 0.0
    %1791 = vmatpush1.msra.mxu0 %v807
    %1792 = vmatprep.subr.mxu0 0.0
    %1793 = vmatpush1.msra.mxu0 %v802
    %1794 = vmatprep.subr.mxu0 0.0
    %1795 = vmatpush1.msra.mxu0 %v797
    %1796 = vmatprep.subr.mxu0 0.0
    %1797 = vmatpush1.msra.mxu0 %v792
    %1798 = vmatprep.subr.mxu0 0.0
    %1799 = vmatpush1.msra.mxu0 %v787
    %1800 = vmatprep.subr.mxu0 0.0
    %1801 = vmatpush1.msra.mxu0 %v782
    %1802 = vmatprep.subr.mxu0 0.0
    %1803 = vmatpush1.msra.mxu0 %v777
    %1804 = vmatprep.subr.mxu0 0.0
    %1805 = vmatpush2.msra.mxu0 %v932
    %1806 = vmatprep.subr.mxu0 0.0
    %1807 = vmatpush2.msra.mxu0 %v927
    %1808 = vmatprep.subr.mxu0 0.0
    %1809 = vmatpush2.msra.mxu0 %v922
    %1810 = vmatprep.subr.mxu0 0.0
    %1811 = vmatpush2.msra.mxu0 %v917
    %1812 = vmatprep.subr.mxu0 0.0
    %1813 = vmatpush2.msra.mxu0 %v912
    %1814 = vmatprep.subr.mxu0 0.0
    %1815 = vmatpush2.msra.mxu0 %v907
    %1816 = vmatprep.subr.mxu0 0.0
    %1817 = vmatpush2.msra.mxu0 %v902
    %1818 = vmatprep.subr.mxu0 0.0
    %1819 = vmatpush2.msra.mxu0 %v897
    %1820 = vmatprep.subr.mxu0 0.0
    %1821 = vmatpush2.msra.mxu0 %v892
    %1822 = vmatprep.subr.mxu0 0.0
    %1823 = vmatpush2.msra.mxu0 %v887
    %1824 = vmatprep.subr.mxu0 0.0
    %1825 = vmatpush2.msra.mxu0 %v882
    %1826 = vmatprep.subr.mxu0 0.0
    %1827 = vmatpush2.msra.mxu0 %v877
    %1828 = vmatprep.subr.mxu0 0.0
    %1829 = vmatpush2.msra.mxu0 %v872
    %1830 = vmatprep.subr.mxu0 0.0
    %1831 = vmatpush2.msra.mxu0 %v867
    %1832 = vmatprep.subr.mxu0 0.0
    %1833 = vmatpush2.msra.mxu0 %v862
    %1834 = vmatprep.subr.mxu0 0.0
    %1835 = vmatpush2.msra.mxu0 %v857
    %1836 = vmatprep.mubr.f32.mxu0 %v609
    %1837 = vmatmul.mubr.f32.gmra.mxu0 %v608
    %v1838 = vpop.f32.mrf.mxu0
    %v1839 = vadd.f32 %v1769, %v1838
    %v1840 = vpop.f32.mrf.mxu0
    %1841 = vdwg.mxu0
    %1842 = vmatprep.subr.mxu0 0.0
    %1843 = vmatpush1.msra.mxu0 %v1012
    %1844 = vmatprep.subr.mxu0 0.0
    %1845 = vmatpush1.msra.mxu0 %v1007
    %1846 = vmatprep.subr.mxu0 0.0
    %1847 = vmatpush1.msra.mxu0 %v1002
    %1848 = vmatprep.subr.mxu0 0.0
    %1849 = vmatpush1.msra.mxu0 %v997
    %1850 = vmatprep.subr.mxu0 0.0
    %1851 = vmatpush1.msra.mxu0 %v992
    %1852 = vmatprep.subr.mxu0 0.0
    %1853 = vmatpush1.msra.mxu0 %v987
    %1854 = vmatprep.subr.mxu0 0.0
    %1855 = vmatpush1.msra.mxu0 %v982
    %1856 = vmatprep.subr.mxu0 0.0
    %1857 = vmatpush1.msra.mxu0 %v977
    %1858 = vmatprep.subr.mxu0 0.0
    %1859 = vmatpush1.msra.mxu0 %v972
    %1860 = vmatprep.subr.mxu0 0.0
    %1861 = vmatpush1.msra.mxu0 %v967
    %1862 = vmatprep.subr.mxu0 0.0
    %1863 = vmatpush1.msra.mxu0 %v962
    %1864 = vmatprep.subr.mxu0 0.0
    %1865 = vmatpush1.msra.mxu0 %v957
    %1866 = vmatprep.subr.mxu0 0.0
    %1867 = vmatpush1.msra.mxu0 %v952
    %1868 = vmatprep.subr.mxu0 0.0
    %1869 = vmatpush1.msra.mxu0 %v947
    %1870 = vmatprep.subr.mxu0 0.0
    %1871 = vmatpush1.msra.mxu0 %v942
    %1872 = vmatprep.subr.mxu0 0.0
    %1873 = vmatpush1.msra.mxu0 %v937
    %1874 = vmatprep.subr.mxu0 0.0
    %1875 = vmatpush2.msra.mxu0 %v1092
    %1876 = vmatprep.subr.mxu0 0.0
    %1877 = vmatpush2.msra.mxu0 %v1087
    %1878 = vmatprep.subr.mxu0 0.0
    %1879 = vmatpush2.msra.mxu0 %v1082
    %1880 = vmatprep.subr.mxu0 0.0
    %1881 = vmatpush2.msra.mxu0 %v1077
    %1882 = vmatprep.subr.mxu0 0.0
    %1883 = vmatpush2.msra.mxu0 %v1072
    %1884 = vmatprep.subr.mxu0 0.0
    %1885 = vmatpush2.msra.mxu0 %v1067
    %1886 = vmatprep.subr.mxu0 0.0
    %1887 = vmatpush2.msra.mxu0 %v1062
    %1888 = vmatprep.subr.mxu0 0.0
    %1889 = vmatpush2.msra.mxu0 %v1057
    %1890 = vmatprep.subr.mxu0 0.0
    %1891 = vmatpush2.msra.mxu0 %v1052
    %1892 = vmatprep.subr.mxu0 0.0
    %1893 = vmatpush2.msra.mxu0 %v1047
    %1894 = vmatprep.subr.mxu0 0.0
    %1895 = vmatpush2.msra.mxu0 %v1042
    %1896 = vmatprep.subr.mxu0 0.0
    %1897 = vmatpush2.msra.mxu0 %v1037
    %1898 = vmatprep.subr.mxu0 0.0
    %1899 = vmatpush2.msra.mxu0 %v1032
    %1900 = vmatprep.subr.mxu0 0.0
    %1901 = vmatpush2.msra.mxu0 %v1027
    %1902 = vmatprep.subr.mxu0 0.0
    %1903 = vmatpush2.msra.mxu0 %v1022
    %1904 = vmatprep.subr.mxu0 0.0
    %1905 = vmatpush2.msra.mxu0 %v1017
    %1906 = vmatprep.mubr.f32.mxu0 %v611
    %1907 = vmatmul.mubr.f32.gmra.mxu0 %v610
    %v1908 = vpop.f32.mrf.mxu0
    %v1909 = vadd.f32 %v1839, %v1908
    %v1910 = vpop.f32.mrf.mxu0
    %1911 = vdwg.mxu0
    %1912 = vmatprep.subr.mxu0 0.0
    %1913 = vmatpush1.msra.mxu0 0.0
    %1914 = vmatprep.subr.mxu0 0.0
    %1915 = vmatpush1.msra.mxu0 0.0
    %1916 = vmatprep.subr.mxu0 0.0
    %1917 = vmatpush1.msra.mxu0 0.0
    %1918 = vmatprep.subr.mxu0 0.0
    %1919 = vmatpush1.msra.mxu0 0.0
    %1920 = vmatprep.subr.mxu0 0.0
    %1921 = vmatpush1.msra.mxu0 0.0
    %1922 = vmatprep.subr.mxu0 0.0
    %1923 = vmatpush1.msra.mxu0 0.0
    %1924 = vmatprep.subr.mxu0 0.0
    %1925 = vmatpush1.msra.mxu0 0.0
    %1926 = vmatprep.subr.mxu0 0.0
    %1927 = vmatpush1.msra.mxu0 0.0
    %1928 = vmatprep.subr.mxu0 0.0
    %1929 = vmatpush1.msra.mxu0 0.0
    %1930 = vmatprep.subr.mxu0 0.0
    %1931 = vmatpush1.msra.mxu0 0.0
    %1932 = vmatprep.subr.mxu0 0.0
    %1933 = vmatpush1.msra.mxu0 0.0
    %1934 = vmatprep.subr.mxu0 0.0
    %1935 = vmatpush1.msra.mxu0 0.0
    %1936 = vmatprep.subr.mxu0 0.0
    %1937 = vmatpush1.msra.mxu0 0.0
    %1938 = vmatprep.subr.mxu0 0.0
    %1939 = vmatpush1.msra.mxu0 0.0
    %1940 = vmatprep.subr.mxu0 0.0
    %1941 = vmatpush1.msra.mxu0 %v1102
    %1942 = vmatprep.subr.mxu0 0.0
    %1943 = vmatpush1.msra.mxu0 %v1097
    %1944 = vmatprep.subr.mxu0 0.0
    %1945 = vmatpush2.msra.mxu0 0.0
    %1946 = vmatprep.subr.mxu0 0.0
    %1947 = vmatpush2.msra.mxu0 0.0
    %1948 = vmatprep.subr.mxu0 0.0
    %1949 = vmatpush2.msra.mxu0 0.0
    %1950 = vmatprep.subr.mxu0 0.0
    %1951 = vmatpush2.msra.mxu0 0.0
    %1952 = vmatprep.subr.mxu0 0.0
    %1953 = vmatpush2.msra.mxu0 0.0
    %1954 = vmatprep.subr.mxu0 0.0
    %1955 = vmatpush2.msra.mxu0 0.0
    %1956 = vmatprep.subr.mxu0 0.0
    %1957 = vmatpush2.msra.mxu0 0.0
    %1958 = vmatprep.subr.mxu0 0.0
    %1959 = vmatpush2.msra.mxu0 0.0
    %1960 = vmatprep.subr.mxu0 0.0
    %1961 = vmatpush2.msra.mxu0 0.0
    %1962 = vmatprep.subr.mxu0 0.0
    %1963 = vmatpush2.msra.mxu0 0.0
    %1964 = vmatprep.subr.mxu0 0.0
    %1965 = vmatpush2.msra.mxu0 0.0
    %1966 = vmatprep.subr.mxu0 0.0
    %1967 = vmatpush2.msra.mxu0 0.0
    %1968 = vmatprep.subr.mxu0 0.0
    %1969 = vmatpush2.msra.mxu0 0.0
    %1970 = vmatprep.subr.mxu0 0.0
    %1971 = vmatpush2.msra.mxu0 0.0
    %1972 = vmatprep.subr.mxu0 0.0
    %1973 = vmatpush2.msra.mxu0 0.0
    %1974 = vmatprep.subr.mxu0 0.0
    %1975 = vmatpush2.msra.mxu0 0.0
    %1976 = vmatprep.mubr.f32.mxu0 0.0
    %1977 = vmatmul.mubr.f32.gmra.mxu0 %v1132
    %v1978 = vpop.f32.mrf.mxu0
    %v1979 = vadd.f32 %v1909, %v1978
    %v1980 = vpop.f32.mrf.mxu0
    %1981 = vdwg.mxu0
    %v1982 = vmax.f32 %v1414, 0.0
    %v1983 = vmax.f32 %v1416, 0.0
    %v1984 = vmax.f32 %v1698, 0.0
    %v1985 = vmax.f32 %v1700, 0.0
    %v1986 = vmax.f32 %v1979, 0.0
    %v1987 = vpack.c.bf16 %v1982, %v1982
    %v1988 = vpack.c.bf16 %v1983, %v1983
    %v1989 = vpack.c.bf16 %v1984, %v1984
    %v1990 = vpack.c.bf16 %v1985, %v1985
    %v1991 = vpack.c.bf16 %v1986, %v1986
    %v1992 = vld [vmem:[#allocation5] sm:$0xff]
    %v1993 = vld [vmem:[#allocation5 + $0x8] sm:$0xff]
    %v1994 = vld [vmem:[#allocation5 + $0x10] sm:$0xff]
    %v1995 = vld [vmem:[#allocation5 + $0x18] sm:$0xff]
    %v1996 = vld [vmem:[#allocation5 + $0x20] sm:$0xff]
    %v1997 = vld [vmem:[#allocation5 + $0x28] sm:$0xff]
    %v1998 = vld [vmem:[#allocation5 + $0x30] sm:$0xff]
    %v1999 = vld [vmem:[#allocation5 + $0x38] sm:$0xff]
    %v2000 = vld [vmem:[#allocation5 + $0x40] sm:$0xff]
    %v2001 = vld [vmem:[#allocation5 + $0x48] sm:$0xff]
    %v2002 = vld [vmem:[#allocation5 + $0x50] sm:$0xff]
    %v2003 = vld [vmem:[#allocation5 + $0x58] sm:$0xff]
    %v2004 = vld [vmem:[#allocation5 + $0x60] sm:$0xff]
    %v2005 = vld [vmem:[#allocation5 + $0x68] sm:$0xff]
    %v2006 = vld [vmem:[#allocation5 + $0x70] sm:$0xff]
    %v2007 = vld [vmem:[#allocation5 + $0x78] sm:$0xff]
    %v2008 = vld [vmem:[#allocation5 + $0x80] sm:$0xff]
    %v2009 = vld [vmem:[#allocation5 + $0x88] sm:$0xff]
    %v2010 = vld [vmem:[#allocation5 + $0x90] sm:$0xff]
    %v2011 = vld [vmem:[#allocation5 + $0x98] sm:$0xff]
    %v2012 = vld [vmem:[#allocation5 + $0xa0] sm:$0xff]
    %v2013 = vld [vmem:[#allocation5 + $0xa8] sm:$0xff]
    %v2014 = vld [vmem:[#allocation5 + $0xb0] sm:$0xff]
    %v2015 = vld [vmem:[#allocation5 + $0xb8] sm:$0xff]
    %v2016 = vld [vmem:[#allocation5 + $0xc0] sm:$0xff]
    %v2017 = vld [vmem:[#allocation5 + $0xc8] sm:$0xff]
    %v2018 = vld [vmem:[#allocation5 + $0xd0] sm:$0xff]
    %v2019 = vld [vmem:[#allocation5 + $0xd8] sm:$0xff]
    %v2020 = vld [vmem:[#allocation5 + $0xe0] sm:$0xff]
    %v2021 = vld [vmem:[#allocation5 + $0xe8] sm:$0xff]
    %v2022 = vld [vmem:[#allocation5 + $0xf0] sm:$0xff]
    %v2023 = vld [vmem:[#allocation5 + $0xf8] sm:$0xff]
    %v2024 = vld [vmem:[#allocation5 + $0x100] sm:$0xff]
    %v2025 = vld [vmem:[#allocation5 + $0x108] sm:$0xff]
    %v2026 = vld [vmem:[#allocation5 + $0x110] sm:$0xff]
    %v2027 = vld [vmem:[#allocation5 + $0x118] sm:$0xff]
    %v2028 = vld [vmem:[#allocation5 + $0x120] sm:$0xff]
    %v2029 = vld [vmem:[#allocation5 + $0x128] sm:$0xff]
    %v2030 = vld [vmem:[#allocation5 + $0x130] sm:$0xff]
    %v2031 = vld [vmem:[#allocation5 + $0x138] sm:$0xff]
    %v2032 = vld [vmem:[#allocation5 + $0x140] sm:$0xff]
    %v2033 = vld [vmem:[#allocation5 + $0x148] sm:$0xff]
    %v2034 = vld [vmem:[#allocation5 + $0x150] sm:$0xff]
    %v2035 = vld [vmem:[#allocation5 + $0x158] sm:$0xff]
    %v2036 = vld [vmem:[#allocation5 + $0x160] sm:$0xff]
    %v2037 = vld [vmem:[#allocation5 + $0x168] sm:$0xff]
    %v2038 = vld [vmem:[#allocation5 + $0x170] sm:$0xff]
    %v2039 = vld [vmem:[#allocation5 + $0x178] sm:$0xff]
    %v2040 = vld [vmem:[#allocation5 + $0x180] sm:$0xff]
    %v2041 = vld [vmem:[#allocation5 + $0x188] sm:$0xff]
    %v2042 = vld [vmem:[#allocation5 + $0x190] sm:$0xff]
    %v2043 = vld [vmem:[#allocation5 + $0x198] sm:$0xff]
    %v2044 = vld [vmem:[#allocation5 + $0x1a0] sm:$0xff]
    %v2045 = vld [vmem:[#allocation5 + $0x1a8] sm:$0xff]
    %v2046 = vld [vmem:[#allocation5 + $0x1b0] sm:$0xff]
    %v2047 = vld [vmem:[#allocation5 + $0x1b8] sm:$0xff]
    %v2048 = vld [vmem:[#allocation5 + $0x1c0] sm:$0xff]
    %v2049 = vld [vmem:[#allocation5 + $0x1c8] sm:$0xff]
    %v2050 = vld [vmem:[#allocation5 + $0x1d0] sm:$0xff]
    %v2051 = vld [vmem:[#allocation5 + $0x1d8] sm:$0xff]
    %v2052 = vld [vmem:[#allocation5 + $0x1e0] sm:$0xff]
    %v2053 = vld [vmem:[#allocation5 + $0x1e8] sm:$0xff]
    %v2054 = vld [vmem:[#allocation5 + $0x1f0] sm:$0xff]
    %v2055 = vld [vmem:[#allocation5 + $0x1f8] sm:$0xff]
    %v2056 = vld [vmem:[#allocation5 + $0x200] sm:$0xff]
    %v2057 = vld [vmem:[#allocation5 + $0x208] sm:$0xff]
    %v2058 = vld [vmem:[#allocation5 + $0x210] sm:$0xff]
    %v2059 = vld [vmem:[#allocation5 + $0x218] sm:$0xff]
    %v2060 = vld [vmem:[#allocation5 + $0x220] sm:$0xff]
    %v2061 = vld [vmem:[#allocation5 + $0x228] sm:$0xff]
    %v2062 = vld [vmem:[#allocation5 + $0x230] sm:$0xff]
    %v2063 = vld [vmem:[#allocation5 + $0x238] sm:$0xff]
    %v2064 = vld [vmem:[#allocation5 + $0x240] sm:$0xff]
    %v2065 = vld [vmem:[#allocation5 + $0x248] sm:$0xff]
    %v2066 = vld [vmem:[#allocation5 + $0x250] sm:$0xff]
    %v2067 = vld [vmem:[#allocation5 + $0x258] sm:$0xff]
    %v2068 = vld [vmem:[#allocation5 + $0x260] sm:$0xff]
    %v2069 = vld [vmem:[#allocation5 + $0x268] sm:$0xff]
    %v2070 = vld [vmem:[#allocation5 + $0x270] sm:$0xff]
    %v2071 = vld [vmem:[#allocation5 + $0x278] sm:$0xff]
    %v2072 = vld [vmem:[#allocation5 + $0x280] sm:$0xff]
    %v2073 = vld [vmem:[#allocation5 + $0x288] sm:$0xff]
    %v2074 = vld [vmem:[#allocation5 + $0x290] sm:$0xff]
    %v2075 = vld [vmem:[#allocation5 + $0x298] sm:$0xff]
    %v2076 = vld [vmem:[#allocation5 + $0x2a0] sm:$0xff]
    %v2077 = vld [vmem:[#allocation5 + $0x2a8] sm:$0xff]
    %v2078 = vld [vmem:[#allocation5 + $0x2b0] sm:$0xff]
    %v2079 = vld [vmem:[#allocation5 + $0x2b8] sm:$0xff]
    %v2080 = vld [vmem:[#allocation5 + $0x2c0] sm:$0xff]
    %v2081 = vld [vmem:[#allocation5 + $0x2c8] sm:$0xff]
    %v2082 = vld [vmem:[#allocation5 + $0x2d0] sm:$0xff]
    %v2083 = vld [vmem:[#allocation5 + $0x2d8] sm:$0xff]
    %v2084 = vld [vmem:[#allocation5 + $0x2e0] sm:$0xff]
    %v2085 = vld [vmem:[#allocation5 + $0x2e8] sm:$0xff]
    %v2086 = vld [vmem:[#allocation5 + $0x2f0] sm:$0xff]
    %v2087 = vld [vmem:[#allocation5 + $0x2f8] sm:$0xff]
    %v2088 = vld [vmem:[#allocation5 + $0x300] sm:$0xff]
    %v2089 = vld [vmem:[#allocation5 + $0x308] sm:$0xff]
    %v2090 = vld [vmem:[#allocation5 + $0x310] sm:$0xff]
    %v2091 = vld [vmem:[#allocation5 + $0x318] sm:$0xff]
    %v2092 = vld [vmem:[#allocation5 + $0x320] sm:$0xff]
    %v2093 = vld [vmem:[#allocation5 + $0x328] sm:$0xff]
    %v2094 = vld [vmem:[#allocation5 + $0x330] sm:$0xff]
    %v2095 = vld [vmem:[#allocation5 + $0x338] sm:$0xff]
    %v2096 = vld [vmem:[#allocation5 + $0x340] sm:$0xff]
    %v2097 = vld [vmem:[#allocation5 + $0x348] sm:$0xff]
    %v2098 = vld [vmem:[#allocation5 + $0x350] sm:$0xff]
    %v2099 = vld [vmem:[#allocation5 + $0x358] sm:$0xff]
    %v2100 = vld [vmem:[#allocation5 + $0x360] sm:$0xff]
    %v2101 = vld [vmem:[#allocation5 + $0x368] sm:$0xff]
    %v2102 = vld [vmem:[#allocation5 + $0x370] sm:$0xff]
    %v2103 = vld [vmem:[#allocation5 + $0x378] sm:$0xff]
    %v2104 = vld [vmem:[#allocation5 + $0x380] sm:$0xff]
    %v2105 = vld [vmem:[#allocation5 + $0x388] sm:$0xff]
    %v2106 = vld [vmem:[#allocation5 + $0x390] sm:$0xff]
    %v2107 = vld [vmem:[#allocation5 + $0x398] sm:$0xff]
    %v2108 = vld [vmem:[#allocation5 + $0x3a0] sm:$0xff]
    %v2109 = vld [vmem:[#allocation5 + $0x3a8] sm:$0xff]
    %v2110 = vld [vmem:[#allocation5 + $0x3b0] sm:$0xff]
    %v2111 = vld [vmem:[#allocation5 + $0x3b8] sm:$0xff]
    %v2112 = vld [vmem:[#allocation5 + $0x3c0] sm:$0xff]
    %v2113 = vld [vmem:[#allocation5 + $0x3c8] sm:$0xff]
    %v2114 = vld [vmem:[#allocation5 + $0x3d0] sm:$0xff]
    %v2115 = vld [vmem:[#allocation5 + $0x3d8] sm:$0xff]
    %v2116 = vld [vmem:[#allocation5 + $0x3e0] sm:$0xff]
    %v2117 = vld [vmem:[#allocation5 + $0x3e8] sm:$0xff]
    %v2118 = vld [vmem:[#allocation5 + $0x3f0] sm:$0xff]
    %v2119 = vld [vmem:[#allocation5 + $0x3f8] sm:$0xff]
    %v2120 = vld [vmem:[#allocation5 + $0x400] sm:$0xff]
    %v2121 = vld [vmem:[#allocation5 + $0x408] sm:$0xff]
    %v2122 = vld [vmem:[#allocation5 + $0x410] sm:$0xff]
    %v2123 = vld [vmem:[#allocation5 + $0x418] sm:$0xff]
    %v2124 = vld [vmem:[#allocation5 + $0x420] sm:$0xff]
    %v2125 = vld [vmem:[#allocation5 + $0x428] sm:$0xff]
    %v2126 = vld [vmem:[#allocation5 + $0x430] sm:$0xff]
    %v2127 = vld [vmem:[#allocation5 + $0x438] sm:$0xff]
    %v2128 = vld [vmem:[#allocation5 + $0x440] sm:$0xff]
    %v2129 = vld [vmem:[#allocation5 + $0x448] sm:$0xff]
    %v2130 = vld [vmem:[#allocation5 + $0x450] sm:$0xff]
    %v2131 = vld [vmem:[#allocation5 + $0x458] sm:$0xff]
    %v2132 = vld [vmem:[#allocation5 + $0x460] sm:$0xff]
    %v2133 = vld [vmem:[#allocation5 + $0x468] sm:$0xff]
    %v2134 = vld [vmem:[#allocation5 + $0x470] sm:$0xff]
    %v2135 = vld [vmem:[#allocation5 + $0x478] sm:$0xff]
    %v2136 = vld [vmem:[%s6] sm:$0xf]
    %v2138 = vlaneseq
    %v2139 = vshrl.u32 %v2138, 7
    %v2140 = vsub.s32 0, %v2139
    %v2141 = vrot.slane %v2136, %v2140
    %v2142 = vlaneseq
    %v2143 = vshrl.u32 %v2142, 7
    %v2144 = vsub.s32 1, %v2143
    %v2145 = vrot.slane %v2136, %v2144
    %v2146 = vlaneseq
    %v2147 = vshrl.u32 %v2146, 7
    %v2148 = vsub.s32 2, %v2147
    %v2149 = vrot.slane %v2136, %v2148
    %v2150 = vlaneseq
    %v2151 = vshrl.u32 %v2150, 7
    %v2152 = vsub.s32 3, %v2151
    %v2153 = vrot.slane %v2136, %v2152
    %v2302 = vunpack.c.l.b16 %v1992
    %v2303 = vunpack.c.h.b16 %v1992
    %v2304 = vunpack.c.l.b16 %v1993
    %v2305 = vunpack.c.h.b16 %v1993
    %v2306 = vunpack.c.l.b16 %v1994
    %v2307 = vunpack.c.h.b16 %v1994
    %v2308 = vunpack.c.l.b16 %v1995
    %v2309 = vunpack.c.h.b16 %v1995
    %v2310 = vunpack.c.l.b16 %v1996
    %v2311 = vunpack.c.h.b16 %v1996
    %v2312 = vunpack.c.l.b16 %v1997
    %v2313 = vunpack.c.h.b16 %v1997
    %v2314 = vunpack.c.l.b16 %v1998
    %v2315 = vunpack.c.h.b16 %v1998
    %v2316 = vunpack.c.l.b16 %v1999
    %v2317 = vunpack.c.h.b16 %v1999
    %v2318 = vunpack.c.l.b16 %v2000
    %v2319 = vunpack.c.h.b16 %v2000
    %v2320 = vunpack.c.l.b16 %v2001
    %v2321 = vunpack.c.h.b16 %v2001
    %v2322 = vunpack.c.l.b16 %v2002
    %v2323 = vunpack.c.h.b16 %v2002
    %v2324 = vunpack.c.l.b16 %v2003
    %v2325 = vunpack.c.h.b16 %v2003
    %v2326 = vunpack.c.l.b16 %v2004
    %v2327 = vunpack.c.h.b16 %v2004
    %v2328 = vunpack.c.l.b16 %v2005
    %v2329 = vunpack.c.h.b16 %v2005
    %v2330 = vunpack.c.l.b16 %v2006
    %v2331 = vunpack.c.h.b16 %v2006
    %v2332 = vunpack.c.l.b16 %v2007
    %v2333 = vunpack.c.h.b16 %v2007
    %v2334 = vunpack.c.l.b16 %v2008
    %v2335 = vunpack.c.h.b16 %v2008
    %v2336 = vunpack.c.l.b16 %v2009
    %v2337 = vunpack.c.h.b16 %v2009
    %v2338 = vunpack.c.l.b16 %v2010
    %v2339 = vunpack.c.h.b16 %v2010
    %v2340 = vunpack.c.l.b16 %v2011
    %v2341 = vunpack.c.h.b16 %v2011
    %v2342 = vunpack.c.l.b16 %v2012
    %v2343 = vunpack.c.h.b16 %v2012
    %v2344 = vunpack.c.l.b16 %v2013
    %v2345 = vunpack.c.h.b16 %v2013
    %v2346 = vunpack.c.l.b16 %v2014
    %v2347 = vunpack.c.h.b16 %v2014
    %v2348 = vunpack.c.l.b16 %v2015
    %v2349 = vunpack.c.h.b16 %v2015
    %v2350 = vunpack.c.l.b16 %v2016
    %v2351 = vunpack.c.h.b16 %v2016
    %v2352 = vunpack.c.l.b16 %v2017
    %v2353 = vunpack.c.h.b16 %v2017
    %v2354 = vunpack.c.l.b16 %v2018
    %v2355 = vunpack.c.h.b16 %v2018
    %v2356 = vunpack.c.l.b16 %v2019
    %v2357 = vunpack.c.h.b16 %v2019
    %v2358 = vunpack.c.l.b16 %v2020
    %v2359 = vunpack.c.h.b16 %v2020
    %v2360 = vunpack.c.l.b16 %v2021
    %v2361 = vunpack.c.h.b16 %v2021
    %v2362 = vunpack.c.l.b16 %v2022
    %v2363 = vunpack.c.h.b16 %v2022
    %v2364 = vunpack.c.l.b16 %v2023
    %v2365 = vunpack.c.h.b16 %v2023
    %v2366 = vunpack.c.l.b16 %v2024
    %v2367 = vunpack.c.h.b16 %v2024
    %v2368 = vunpack.c.l.b16 %v2025
    %v2369 = vunpack.c.h.b16 %v2025
    %v2370 = vunpack.c.l.b16 %v2026
    %v2371 = vunpack.c.h.b16 %v2026
    %v2372 = vunpack.c.l.b16 %v2027
    %v2373 = vunpack.c.h.b16 %v2027
    %v2374 = vunpack.c.l.b16 %v2028
    %v2375 = vunpack.c.h.b16 %v2028
    %v2376 = vunpack.c.l.b16 %v2029
    %v2377 = vunpack.c.h.b16 %v2029
    %v2378 = vunpack.c.l.b16 %v2030
    %v2379 = vunpack.c.h.b16 %v2030
    %v2380 = vunpack.c.l.b16 %v2031
    %v2381 = vunpack.c.h.b16 %v2031
    %v2382 = vunpack.c.l.b16 %v2032
    %v2383 = vunpack.c.h.b16 %v2032
    %v2384 = vunpack.c.l.b16 %v2033
    %v2385 = vunpack.c.h.b16 %v2033
    %v2386 = vunpack.c.l.b16 %v2034
    %v2387 = vunpack.c.h.b16 %v2034
    %v2388 = vunpack.c.l.b16 %v2035
    %v2389 = vunpack.c.h.b16 %v2035
    %v2390 = vunpack.c.l.b16 %v2036
    %v2391 = vunpack.c.h.b16 %v2036
    %v2392 = vunpack.c.l.b16 %v2037
    %v2393 = vunpack.c.h.b16 %v2037
    %v2394 = vunpack.c.l.b16 %v2038
    %v2395 = vunpack.c.h.b16 %v2038
    %v2396 = vunpack.c.l.b16 %v2039
    %v2397 = vunpack.c.h.b16 %v2039
    %v2398 = vunpack.c.l.b16 %v2040
    %v2399 = vunpack.c.h.b16 %v2040
    %v2400 = vunpack.c.l.b16 %v2041
    %v2401 = vunpack.c.h.b16 %v2041
    %v2402 = vunpack.c.l.b16 %v2042
    %v2403 = vunpack.c.h.b16 %v2042
    %v2404 = vunpack.c.l.b16 %v2043
    %v2405 = vunpack.c.h.b16 %v2043
    %v2406 = vunpack.c.l.b16 %v2044
    %v2407 = vunpack.c.h.b16 %v2044
    %v2408 = vunpack.c.l.b16 %v2045
    %v2409 = vunpack.c.h.b16 %v2045
    %v2410 = vunpack.c.l.b16 %v2046
    %v2411 = vunpack.c.h.b16 %v2046
    %v2412 = vunpack.c.l.b16 %v2047
    %v2413 = vunpack.c.h.b16 %v2047
    %v2414 = vunpack.c.l.b16 %v2048
    %v2415 = vunpack.c.h.b16 %v2048
    %v2416 = vunpack.c.l.b16 %v2049
    %v2417 = vunpack.c.h.b16 %v2049
    %v2418 = vunpack.c.l.b16 %v2050
    %v2419 = vunpack.c.h.b16 %v2050
    %v2420 = vunpack.c.l.b16 %v2051
    %v2421 = vunpack.c.h.b16 %v2051
    %v2422 = vunpack.c.l.b16 %v2052
    %v2423 = vunpack.c.h.b16 %v2052
    %v2424 = vunpack.c.l.b16 %v2053
    %v2425 = vunpack.c.h.b16 %v2053
    %v2426 = vunpack.c.l.b16 %v2054
    %v2427 = vunpack.c.h.b16 %v2054
    %v2428 = vunpack.c.l.b16 %v2055
    %v2429 = vunpack.c.h.b16 %v2055
    %v2430 = vunpack.c.l.b16 %v2056
    %v2431 = vunpack.c.h.b16 %v2056
    %v2432 = vunpack.c.l.b16 %v2057
    %v2433 = vunpack.c.h.b16 %v2057
    %v2434 = vunpack.c.l.b16 %v2058
    %v2435 = vunpack.c.h.b16 %v2058
    %v2436 = vunpack.c.l.b16 %v2059
    %v2437 = vunpack.c.h.b16 %v2059
    %v2438 = vunpack.c.l.b16 %v2060
    %v2439 = vunpack.c.h.b16 %v2060
    %v2440 = vunpack.c.l.b16 %v2061
    %v2441 = vunpack.c.h.b16 %v2061
    %v2442 = vunpack.c.l.b16 %v2062
    %v2443 = vunpack.c.h.b16 %v2062
    %v2444 = vunpack.c.l.b16 %v2063
    %v2445 = vunpack.c.h.b16 %v2063
    %v2446 = vunpack.c.l.b16 %v2064
    %v2447 = vunpack.c.h.b16 %v2064
    %v2448 = vunpack.c.l.b16 %v2065
    %v2449 = vunpack.c.h.b16 %v2065
    %v2450 = vunpack.c.l.b16 %v2066
    %v2451 = vunpack.c.h.b16 %v2066
    %v2452 = vunpack.c.l.b16 %v2067
    %v2453 = vunpack.c.h.b16 %v2067
    %v2454 = vunpack.c.l.b16 %v2068
    %v2455 = vunpack.c.h.b16 %v2068
    %v2456 = vunpack.c.l.b16 %v2069
    %v2457 = vunpack.c.h.b16 %v2069
    %v2458 = vunpack.c.l.b16 %v2070
    %v2459 = vunpack.c.h.b16 %v2070
    %v2460 = vunpack.c.l.b16 %v2071
    %v2461 = vunpack.c.h.b16 %v2071
    %v2462 = vunpack.c.l.b16 %v2072
    %v2463 = vunpack.c.h.b16 %v2072
    %v2464 = vunpack.c.l.b16 %v2073
    %v2465 = vunpack.c.h.b16 %v2073
    %v2466 = vunpack.c.l.b16 %v2074
    %v2467 = vunpack.c.h.b16 %v2074
    %v2468 = vunpack.c.l.b16 %v2075
    %v2469 = vunpack.c.h.b16 %v2075
    %v2470 = vunpack.c.l.b16 %v2076
    %v2471 = vunpack.c.h.b16 %v2076
    %v2472 = vunpack.c.l.b16 %v2077
    %v2473 = vunpack.c.h.b16 %v2077
    %v2474 = vunpack.c.l.b16 %v2078
    %v2475 = vunpack.c.h.b16 %v2078
    %v2476 = vunpack.c.l.b16 %v2079
    %v2477 = vunpack.c.h.b16 %v2079
    %v2478 = vunpack.c.l.b16 %v2080
    %v2479 = vunpack.c.h.b16 %v2080
    %v2480 = vunpack.c.l.b16 %v2081
    %v2481 = vunpack.c.h.b16 %v2081
    %v2482 = vunpack.c.l.b16 %v2082
    %v2483 = vunpack.c.h.b16 %v2082
    %v2484 = vunpack.c.l.b16 %v2083
    %v2485 = vunpack.c.h.b16 %v2083
    %v2486 = vunpack.c.l.b16 %v2084
    %v2487 = vunpack.c.h.b16 %v2084
    %v2488 = vunpack.c.l.b16 %v2085
    %v2489 = vunpack.c.h.b16 %v2085
    %v2490 = vunpack.c.l.b16 %v2086
    %v2491 = vunpack.c.h.b16 %v2086
    %v2492 = vunpack.c.l.b16 %v2087
    %v2493 = vunpack.c.h.b16 %v2087
    %v2494 = vunpack.c.l.b16 %v2088
    %v2495 = vunpack.c.h.b16 %v2088
    %v2496 = vunpack.c.l.b16 %v2089
    %v2497 = vunpack.c.h.b16 %v2089
    %v2498 = vunpack.c.l.b16 %v2090
    %v2499 = vunpack.c.h.b16 %v2090
    %v2500 = vunpack.c.l.b16 %v2091
    %v2501 = vunpack.c.h.b16 %v2091
    %v2502 = vunpack.c.l.b16 %v2092
    %v2503 = vunpack.c.h.b16 %v2092
    %v2504 = vunpack.c.l.b16 %v2093
    %v2505 = vunpack.c.h.b16 %v2093
    %v2506 = vunpack.c.l.b16 %v2094
    %v2507 = vunpack.c.h.b16 %v2094
    %v2508 = vunpack.c.l.b16 %v2095
    %v2509 = vunpack.c.h.b16 %v2095
    %v2510 = vunpack.c.l.b16 %v2096
    %v2511 = vunpack.c.h.b16 %v2096
    %v2512 = vunpack.c.l.b16 %v2097
    %v2513 = vunpack.c.h.b16 %v2097
    %v2514 = vunpack.c.l.b16 %v2098
    %v2515 = vunpack.c.h.b16 %v2098
    %v2516 = vunpack.c.l.b16 %v2099
    %v2517 = vunpack.c.h.b16 %v2099
    %v2518 = vunpack.c.l.b16 %v2100
    %v2519 = vunpack.c.h.b16 %v2100
    %v2520 = vunpack.c.l.b16 %v2101
    %v2521 = vunpack.c.h.b16 %v2101
    %v2522 = vunpack.c.l.b16 %v2102
    %v2523 = vunpack.c.h.b16 %v2102
    %v2524 = vunpack.c.l.b16 %v2103
    %v2525 = vunpack.c.h.b16 %v2103
    %v2526 = vunpack.c.l.b16 %v2104
    %v2527 = vunpack.c.h.b16 %v2104
    %v2528 = vunpack.c.l.b16 %v2105
    %v2529 = vunpack.c.h.b16 %v2105
    %v2530 = vunpack.c.l.b16 %v2106
    %v2531 = vunpack.c.h.b16 %v2106
    %v2532 = vunpack.c.l.b16 %v2107
    %v2533 = vunpack.c.h.b16 %v2107
    %v2534 = vunpack.c.l.b16 %v2108
    %v2535 = vunpack.c.h.b16 %v2108
    %v2536 = vunpack.c.l.b16 %v2109
    %v2537 = vunpack.c.h.b16 %v2109
    %v2538 = vunpack.c.l.b16 %v2110
    %v2539 = vunpack.c.h.b16 %v2110
    %v2540 = vunpack.c.l.b16 %v2111
    %v2541 = vunpack.c.h.b16 %v2111
    %v2542 = vunpack.c.l.b16 %v2112
    %v2543 = vunpack.c.h.b16 %v2112
    %v2544 = vunpack.c.l.b16 %v2113
    %v2545 = vunpack.c.h.b16 %v2113
    %v2546 = vunpack.c.l.b16 %v2114
    %v2547 = vunpack.c.h.b16 %v2114
    %v2548 = vunpack.c.l.b16 %v2115
    %v2549 = vunpack.c.h.b16 %v2115
    %v2550 = vunpack.c.l.b16 %v2116
    %v2551 = vunpack.c.h.b16 %v2116
    %v2552 = vunpack.c.l.b16 %v2117
    %v2553 = vunpack.c.h.b16 %v2117
    %v2554 = vunpack.c.l.b16 %v2118
    %v2555 = vunpack.c.h.b16 %v2118
    %v2556 = vunpack.c.l.b16 %v2119
    %v2557 = vunpack.c.h.b16 %v2119
    %v2558 = vunpack.c.l.b16 %v2120
    %v2559 = vunpack.c.h.b16 %v2120
    %v2560 = vunpack.c.l.b16 %v2121
    %v2561 = vunpack.c.h.b16 %v2121
    %v2562 = vunpack.c.l.b16 %v2122
    %v2563 = vunpack.c.h.b16 %v2122
    %v2564 = vunpack.c.l.b16 %v2123
    %v2565 = vunpack.c.h.b16 %v2123
    %v2566 = vunpack.c.l.b16 %v2124
    %v2567 = vunpack.c.h.b16 %v2124
    %v2568 = vunpack.c.l.b16 %v2125
    %v2569 = vunpack.c.h.b16 %v2125
    %v2570 = vunpack.c.l.b16 %v2126
    %v2571 = vunpack.c.h.b16 %v2126
    %v2572 = vunpack.c.l.b16 %v2127
    %v2573 = vunpack.c.h.b16 %v2127
    %v2574 = vunpack.c.l.b16 %v2128
    %v2575 = vunpack.c.h.b16 %v2128
    %v2576 = vunpack.c.l.b16 %v2129
    %v2577 = vunpack.c.h.b16 %v2129
    %v2578 = vunpack.c.l.b16 %v2130
    %v2579 = vunpack.c.h.b16 %v2130
    %v2580 = vunpack.c.l.b16 %v2131
    %v2581 = vunpack.c.h.b16 %v2131
    %v2582 = vunpack.c.l.b16 %v2132
    %v2583 = vunpack.c.h.b16 %v2132
    %v2584 = vunpack.c.l.b16 %v2133
    %v2585 = vunpack.c.h.b16 %v2133
    %v2586 = vunpack.c.l.b16 %v2134
    %v2587 = vunpack.c.h.b16 %v2134
    %v2588 = vunpack.c.l.b16 %v2135
    %v2589 = vunpack.c.h.b16 %v2135
    %v2590 = vpack.c.b16 %v2306, %v2302
    %v2591 = vpack.c.b16 %v2307, %v2303
    %v2592 = vpack.c.b16 %v2308, %v2304
    %v2593 = vpack.c.b16 %v2309, %v2305
    %v2594 = vpack.c.b16 %v2314, %v2310
    %v2595 = vpack.c.b16 %v2315, %v2311
    %v2596 = vpack.c.b16 %v2316, %v2312
    %v2597 = vpack.c.b16 %v2317, %v2313
    %v2598 = vpack.c.b16 %v2322, %v2318
    %v2599 = vpack.c.b16 %v2323, %v2319
    %v2600 = vpack.c.b16 %v2324, %v2320
    %v2601 = vpack.c.b16 %v2325, %v2321
    %v2602 = vpack.c.b16 %v2330, %v2326
    %v2603 = vpack.c.b16 %v2331, %v2327
    %v2604 = vpack.c.b16 %v2332, %v2328
    %v2605 = vpack.c.b16 %v2333, %v2329
    %v2606 = vpack.c.b16 %v2338, %v2334
    %v2607 = vpack.c.b16 %v2339, %v2335
    %v2608 = vpack.c.b16 %v2340, %v2336
    %v2609 = vpack.c.b16 %v2341, %v2337
    %v2610 = vpack.c.b16 %v2346, %v2342
    %v2611 = vpack.c.b16 %v2347, %v2343
    %v2612 = vpack.c.b16 %v2348, %v2344
    %v2613 = vpack.c.b16 %v2349, %v2345
    %v2614 = vpack.c.b16 %v2354, %v2350
    %v2615 = vpack.c.b16 %v2355, %v2351
    %v2616 = vpack.c.b16 %v2356, %v2352
    %v2617 = vpack.c.b16 %v2357, %v2353
    %v2618 = vpack.c.b16 %v2362, %v2358
    %v2619 = vpack.c.b16 %v2363, %v2359
    %v2620 = vpack.c.b16 %v2364, %v2360
    %v2621 = vpack.c.b16 %v2365, %v2361
    %v2622 = vpack.c.b16 %v2370, %v2366
    %v2623 = vpack.c.b16 %v2371, %v2367
    %v2624 = vpack.c.b16 %v2372, %v2368
    %v2625 = vpack.c.b16 %v2373, %v2369
    %v2626 = vpack.c.b16 %v2378, %v2374
    %v2627 = vpack.c.b16 %v2379, %v2375
    %v2628 = vpack.c.b16 %v2380, %v2376
    %v2629 = vpack.c.b16 %v2381, %v2377
    %v2630 = vpack.c.b16 %v2386, %v2382
    %v2631 = vpack.c.b16 %v2387, %v2383
    %v2632 = vpack.c.b16 %v2388, %v2384
    %v2633 = vpack.c.b16 %v2389, %v2385
    %v2634 = vpack.c.b16 %v2394, %v2390
    %v2635 = vpack.c.b16 %v2395, %v2391
    %v2636 = vpack.c.b16 %v2396, %v2392
    %v2637 = vpack.c.b16 %v2397, %v2393
    %v2638 = vpack.c.b16 %v2402, %v2398
    %v2639 = vpack.c.b16 %v2403, %v2399
    %v2640 = vpack.c.b16 %v2404, %v2400
    %v2641 = vpack.c.b16 %v2405, %v2401
    %v2642 = vpack.c.b16 %v2410, %v2406
    %v2643 = vpack.c.b16 %v2411, %v2407
    %v2644 = vpack.c.b16 %v2412, %v2408
    %v2645 = vpack.c.b16 %v2413, %v2409
    %v2646 = vpack.c.b16 %v2418, %v2414
    %v2647 = vpack.c.b16 %v2419, %v2415
    %v2648 = vpack.c.b16 %v2420, %v2416
    %v2649 = vpack.c.b16 %v2421, %v2417
    %v2650 = vpack.c.b16 %v2426, %v2422
    %v2651 = vpack.c.b16 %v2427, %v2423
    %v2652 = vpack.c.b16 %v2428, %v2424
    %v2653 = vpack.c.b16 %v2429, %v2425
    %v2654 = vpack.c.b16 %v2434, %v2430
    %v2655 = vpack.c.b16 %v2435, %v2431
    %v2656 = vpack.c.b16 %v2436, %v2432
    %v2657 = vpack.c.b16 %v2437, %v2433
    %v2658 = vpack.c.b16 %v2442, %v2438
    %v2659 = vpack.c.b16 %v2443, %v2439
    %v2660 = vpack.c.b16 %v2444, %v2440
    %v2661 = vpack.c.b16 %v2445, %v2441
    %v2662 = vpack.c.b16 %v2450, %v2446
    %v2663 = vpack.c.b16 %v2451, %v2447
    %v2664 = vpack.c.b16 %v2452, %v2448
    %v2665 = vpack.c.b16 %v2453, %v2449
    %v2666 = vpack.c.b16 %v2458, %v2454
    %v2667 = vpack.c.b16 %v2459, %v2455
    %v2668 = vpack.c.b16 %v2460, %v2456
    %v2669 = vpack.c.b16 %v2461, %v2457
    %v2670 = vpack.c.b16 %v2466, %v2462
    %v2671 = vpack.c.b16 %v2467, %v2463
    %v2672 = vpack.c.b16 %v2468, %v2464
    %v2673 = vpack.c.b16 %v2469, %v2465
    %v2674 = vpack.c.b16 %v2474, %v2470
    %v2675 = vpack.c.b16 %v2475, %v2471
    %v2676 = vpack.c.b16 %v2476, %v2472
    %v2677 = vpack.c.b16 %v2477, %v2473
    %v2678 = vpack.c.b16 %v2482, %v2478
    %v2679 = vpack.c.b16 %v2483, %v2479
    %v2680 = vpack.c.b16 %v2484, %v2480
    %v2681 = vpack.c.b16 %v2485, %v2481
    %v2682 = vpack.c.b16 %v2490, %v2486
    %v2683 = vpack.c.b16 %v2491, %v2487
    %v2684 = vpack.c.b16 %v2492, %v2488
    %v2685 = vpack.c.b16 %v2493, %v2489
    %v2686 = vpack.c.b16 %v2498, %v2494
    %v2687 = vpack.c.b16 %v2499, %v2495
    %v2688 = vpack.c.b16 %v2500, %v2496
    %v2689 = vpack.c.b16 %v2501, %v2497
    %v2690 = vpack.c.b16 %v2506, %v2502
    %v2691 = vpack.c.b16 %v2507, %v2503
    %v2692 = vpack.c.b16 %v2508, %v2504
    %v2693 = vpack.c.b16 %v2509, %v2505
    %v2694 = vpack.c.b16 %v2514, %v2510
    %v2695 = vpack.c.b16 %v2515, %v2511
    %v2696 = vpack.c.b16 %v2516, %v2512
    %v2697 = vpack.c.b16 %v2517, %v2513
    %v2698 = vpack.c.b16 %v2522, %v2518
    %v2699 = vpack.c.b16 %v2523, %v2519
    %v2700 = vpack.c.b16 %v2524, %v2520
    %v2701 = vpack.c.b16 %v2525, %v2521
    %v2702 = vpack.c.b16 %v2530, %v2526
    %v2703 = vpack.c.b16 %v2531, %v2527
    %v2704 = vpack.c.b16 %v2532, %v2528
    %v2705 = vpack.c.b16 %v2533, %v2529
    %v2706 = vpack.c.b16 %v2538, %v2534
    %v2707 = vpack.c.b16 %v2539, %v2535
    %v2708 = vpack.c.b16 %v2540, %v2536
    %v2709 = vpack.c.b16 %v2541, %v2537
    %v2710 = vpack.c.b16 %v2546, %v2542
    %v2711 = vpack.c.b16 %v2547, %v2543
    %v2712 = vpack.c.b16 %v2548, %v2544
    %v2713 = vpack.c.b16 %v2549, %v2545
    %v2714 = vpack.c.b16 %v2554, %v2550
    %v2715 = vpack.c.b16 %v2555, %v2551
    %v2716 = vpack.c.b16 %v2556, %v2552
    %v2717 = vpack.c.b16 %v2557, %v2553
    %v2718 = vpack.c.b16 %v2562, %v2558
    %v2719 = vpack.c.b16 %v2563, %v2559
    %v2720 = vpack.c.b16 %v2564, %v2560
    %v2721 = vpack.c.b16 %v2565, %v2561
    %v2722 = vpack.c.b16 %v2570, %v2566
    %v2723 = vpack.c.b16 %v2571, %v2567
    %v2724 = vpack.c.b16 %v2572, %v2568
    %v2725 = vpack.c.b16 %v2573, %v2569
    %v2726 = vpack.c.b16 %v2578, %v2574
    %v2727 = vpack.c.b16 %v2579, %v2575
    %v2728 = vpack.c.b16 %v2580, %v2576
    %v2729 = vpack.c.b16 %v2581, %v2577
    %v2730 = vpack.c.b16 %v2586, %v2582
    %v2731 = vpack.c.b16 %v2587, %v2583
    %v2732 = vpack.c.b16 %v2588, %v2584
    %v2733 = vpack.c.b16 %v2589, %v2585
    %vm2878 = vcmask 523264
    %v2880 = vsel %vm2878, %v1991, 0
    %2882 = vmatprep.subr.bf16.mxu0 %v2619
    %2883 = vmatpush1.bf16.msra.mxu0 %v2618
    %2884 = vmatprep.subr.bf16.mxu0 %v2615
    %2885 = vmatpush1.bf16.msra.mxu0 %v2614
    %2886 = vmatprep.subr.bf16.mxu0 %v2611
    %2887 = vmatpush1.bf16.msra.mxu0 %v2610
    %2888 = vmatprep.subr.bf16.mxu0 %v2607
    %2889 = vmatpush1.bf16.msra.mxu0 %v2606
    %2890 = vmatprep.subr.bf16.mxu0 %v2603
    %2891 = vmatpush1.bf16.msra.mxu0 %v2602
    %2892 = vmatprep.subr.bf16.mxu0 %v2599
    %2893 = vmatpush1.bf16.msra.mxu0 %v2598
    %2894 = vmatprep.subr.bf16.mxu0 %v2595
    %2895 = vmatpush1.bf16.msra.mxu0 %v2594
    %2896 = vmatprep.subr.bf16.mxu0 %v2591
    %2897 = vmatpush1.bf16.msra.mxu0 %v2590
    %2898 = vmatprep.subr.bf16.mxu0 %v2651
    %2899 = vmatpush2.bf16.msra.mxu0 %v2650
    %2900 = vmatprep.subr.bf16.mxu0 %v2647
    %2901 = vmatpush2.bf16.msra.mxu0 %v2646
    %2902 = vmatprep.subr.bf16.mxu0 %v2643
    %2903 = vmatpush2.bf16.msra.mxu0 %v2642
    %2904 = vmatprep.subr.bf16.mxu0 %v2639
    %2905 = vmatpush2.bf16.msra.mxu0 %v2638
    %2906 = vmatprep.subr.bf16.mxu0 %v2635
    %2907 = vmatpush2.bf16.msra.mxu0 %v2634
    %2908 = vmatprep.subr.bf16.mxu0 %v2631
    %2909 = vmatpush2.bf16.msra.mxu0 %v2630
    %2910 = vmatprep.subr.bf16.mxu0 %v2627
    %2911 = vmatpush2.bf16.msra.mxu0 %v2626
    %2912 = vmatprep.subr.bf16.mxu0 %v2623
    %2913 = vmatpush2.bf16.msra.mxu0 %v2622
    %2914 = vmatprep.mubr.bf16.mxu0 %v1988
    %2915 = vmatmul.mubr.bf16.gmra.mxu0 %v1987
    %v2916 = vpop.f32.mrf.mxu0
    %v2917 = vadd.f32 %v2141, %v2916
    %v2918 = vpop.f32.mrf.mxu0
    %v2919 = vadd.f32 %v2145, %v2918
    %v2920 = vpop.f32.mrf.mxu0
    %v2921 = vpop.f32.mrf.mxu0
    %2922 = vdwg.mxu0
    %2923 = vmatprep.subr.bf16.mxu0 %v2683
    %2924 = vmatpush1.bf16.msra.mxu0 %v2682
    %2925 = vmatprep.subr.bf16.mxu0 %v2679
    %2926 = vmatpush1.bf16.msra.mxu0 %v2678
    %2927 = vmatprep.subr.bf16.mxu0 %v2675
    %2928 = vmatpush1.bf16.msra.mxu0 %v2674
    %2929 = vmatprep.subr.bf16.mxu0 %v2671
    %2930 = vmatpush1.bf16.msra.mxu0 %v2670
    %2931 = vmatprep.subr.bf16.mxu0 %v2667
    %2932 = vmatpush1.bf16.msra.mxu0 %v2666
    %2933 = vmatprep.subr.bf16.mxu0 %v2663
    %2934 = vmatpush1.bf16.msra.mxu0 %v2662
    %2935 = vmatprep.subr.bf16.mxu0 %v2659
    %2936 = vmatpush1.bf16.msra.mxu0 %v2658
    %2937 = vmatprep.subr.bf16.mxu0 %v2655
    %2938 = vmatpush1.bf16.msra.mxu0 %v2654
    %2939 = vmatprep.subr.bf16.mxu0 %v2715
    %2940 = vmatpush2.bf16.msra.mxu0 %v2714
    %2941 = vmatprep.subr.bf16.mxu0 %v2711
    %2942 = vmatpush2.bf16.msra.mxu0 %v2710
    %2943 = vmatprep.subr.bf16.mxu0 %v2707
    %2944 = vmatpush2.bf16.msra.mxu0 %v2706
    %2945 = vmatprep.subr.bf16.mxu0 %v2703
    %2946 = vmatpush2.bf16.msra.mxu0 %v2702
    %2947 = vmatprep.subr.bf16.mxu0 %v2699
    %2948 = vmatpush2.bf16.msra.mxu0 %v2698
    %2949 = vmatprep.subr.bf16.mxu0 %v2695
    %2950 = vmatpush2.bf16.msra.mxu0 %v2694
    %2951 = vmatprep.subr.bf16.mxu0 %v2691
    %2952 = vmatpush2.bf16.msra.mxu0 %v2690
    %2953 = vmatprep.subr.bf16.mxu0 %v2687
    %2954 = vmatpush2.bf16.msra.mxu0 %v2686
    %2955 = vmatprep.mubr.bf16.mxu0 %v1990
    %2956 = vmatmul.mubr.bf16.gmra.mxu0 %v1989
    %v2957 = vpop.f32.mrf.mxu0
    %v2958 = vadd.f32 %v2917, %v2957
    %v2959 = vpop.f32.mrf.mxu0
    %v2960 = vadd.f32 %v2919, %v2959
    %v2961 = vpop.f32.mrf.mxu0
    %v2962 = vpop.f32.mrf.mxu0
    %2963 = vdwg.mxu0
    %2964 = vmatprep.subr.bf16.mxu0 0
    %2965 = vmatpush1.bf16.msra.mxu0 0
    %2966 = vmatprep.subr.bf16.mxu0 0
    %2967 = vmatpush1.bf16.msra.mxu0 0
    %2968 = vmatprep.subr.bf16.mxu0 0
    %2969 = vmatpush1.bf16.msra.mxu0 0
    %2970 = vmatprep.subr.bf16.mxu0 0
    %2971 = vmatpush1.bf16.msra.mxu0 0
    %2972 = vmatprep.subr.bf16.mxu0 %v2731
    %2973 = vmatpush1.bf16.msra.mxu0 %v2730
    %2974 = vmatprep.subr.bf16.mxu0 %v2727
    %2975 = vmatpush1.bf16.msra.mxu0 %v2726
    %2976 = vmatprep.subr.bf16.mxu0 %v2723
    %2977 = vmatpush1.bf16.msra.mxu0 %v2722
    %2978 = vmatprep.subr.bf16.mxu0 %v2719
    %2979 = vmatpush1.bf16.msra.mxu0 %v2718
    %2980 = vmatprep.subr.bf16.mxu0 0
    %2981 = vmatpush2.bf16.msra.mxu0 0
    %2982 = vmatprep.subr.bf16.mxu0 0
    %2983 = vmatpush2.bf16.msra.mxu0 0
    %2984 = vmatprep.subr.bf16.mxu0 0
    %2985 = vmatpush2.bf16.msra.mxu0 0
    %2986 = vmatprep.subr.bf16.mxu0 0
    %2987 = vmatpush2.bf16.msra.mxu0 0
    %2988 = vmatprep.subr.bf16.mxu0 0
    %2989 = vmatpush2.bf16.msra.mxu0 0
    %2990 = vmatprep.subr.bf16.mxu0 0
    %2991 = vmatpush2.bf16.msra.mxu0 0
    %2992 = vmatprep.subr.bf16.mxu0 0
    %2993 = vmatpush2.bf16.msra.mxu0 0
    %2994 = vmatprep.subr.bf16.mxu0 0
    %2995 = vmatpush2.bf16.msra.mxu0 0
    %2996 = vmatprep.mubr.bf16.mxu0 0
    %2997 = vmatmul.mubr.bf16.gmra.mxu0 %v2880
    %v2998 = vpop.f32.mrf.mxu0
    %v2999 = vadd.f32 %v2958, %v2998
    %v3000 = vpop.f32.mrf.mxu0
    %v3001 = vadd.f32 %v2960, %v3000
    %v3002 = vpop.f32.mrf.mxu0
    %v3003 = vpop.f32.mrf.mxu0
    %3004 = vdwg.mxu0
    %3005 = vmatprep.subr.bf16.mxu0 %v2621
    %3006 = vmatpush1.bf16.msra.mxu0 %v2620
    %3007 = vmatprep.subr.bf16.mxu0 %v2617
    %3008 = vmatpush1.bf16.msra.mxu0 %v2616
    %3009 = vmatprep.subr.bf16.mxu0 %v2613
    %3010 = vmatpush1.bf16.msra.mxu0 %v2612
    %3011 = vmatprep.subr.bf16.mxu0 %v2609
    %3012 = vmatpush1.bf16.msra.mxu0 %v2608
    %3013 = vmatprep.subr.bf16.mxu0 %v2605
    %3014 = vmatpush1.bf16.msra.mxu0 %v2604
    %3015 = vmatprep.subr.bf16.mxu0 %v2601
    %3016 = vmatpush1.bf16.msra.mxu0 %v2600
    %3017 = vmatprep.subr.bf16.mxu0 %v2597
    %3018 = vmatpush1.bf16.msra.mxu0 %v2596
    %3019 = vmatprep.subr.bf16.mxu0 %v2593
    %3020 = vmatpush1.bf16.msra.mxu0 %v2592
    %3021 = vmatprep.subr.bf16.mxu0 %v2653
    %3022 = vmatpush2.bf16.msra.mxu0 %v2652
    %3023 = vmatprep.subr.bf16.mxu0 %v2649
    %3024 = vmatpush2.bf16.msra.mxu0 %v2648
    %3025 = vmatprep.subr.bf16.mxu0 %v2645
    %3026 = vmatpush2.bf16.msra.mxu0 %v2644
    %3027 = vmatprep.subr.bf16.mxu0 %v2641
    %3028 = vmatpush2.bf16.msra.mxu0 %v2640
    %3029 = vmatprep.subr.bf16.mxu0 %v2637
    %3030 = vmatpush2.bf16.msra.mxu0 %v2636
    %3031 = vmatprep.subr.bf16.mxu0 %v2633
    %3032 = vmatpush2.bf16.msra.mxu0 %v2632
    %3033 = vmatprep.subr.bf16.mxu0 %v2629
    %3034 = vmatpush2.bf16.msra.mxu0 %v2628
    %3035 = vmatprep.subr.bf16.mxu0 %v2625
    %3036 = vmatpush2.bf16.msra.mxu0 %v2624
    %3037 = vmatprep.mubr.bf16.mxu0 %v1988
    %3038 = vmatmul.mubr.bf16.gmra.mxu0 %v1987
    %v3039 = vpop.f32.mrf.mxu0
    %v3040 = vadd.f32 %v2149, %v3039
    %v3041 = vpop.f32.mrf.mxu0
    %v3042 = vadd.f32 %v2153, %v3041
    %v3043 = vpop.f32.mrf.mxu0
    %v3044 = vpop.f32.mrf.mxu0
    %3045 = vdwg.mxu0
    %3046 = vmatprep.subr.bf16.mxu0 %v2685
    %3047 = vmatpush1.bf16.msra.mxu0 %v2684
    %3048 = vmatprep.subr.bf16.mxu0 %v2681
    %3049 = vmatpush1.bf16.msra.mxu0 %v2680
    %3050 = vmatprep.subr.bf16.mxu0 %v2677
    %3051 = vmatpush1.bf16.msra.mxu0 %v2676
    %3052 = vmatprep.subr.bf16.mxu0 %v2673
    %3053 = vmatpush1.bf16.msra.mxu0 %v2672
    %3054 = vmatprep.subr.bf16.mxu0 %v2669
    %3055 = vmatpush1.bf16.msra.mxu0 %v2668
    %3056 = vmatprep.subr.bf16.mxu0 %v2665
    %3057 = vmatpush1.bf16.msra.mxu0 %v2664
    %3058 = vmatprep.subr.bf16.mxu0 %v2661
    %3059 = vmatpush1.bf16.msra.mxu0 %v2660
    %3060 = vmatprep.subr.bf16.mxu0 %v2657
    %3061 = vmatpush1.bf16.msra.mxu0 %v2656
    %3062 = vmatprep.subr.bf16.mxu0 %v2717
    %3063 = vmatpush2.bf16.msra.mxu0 %v2716
    %3064 = vmatprep.subr.bf16.mxu0 %v2713
    %3065 = vmatpush2.bf16.msra.mxu0 %v2712
    %3066 = vmatprep.subr.bf16.mxu0 %v2709
    %3067 = vmatpush2.bf16.msra.mxu0 %v2708
    %3068 = vmatprep.subr.bf16.mxu0 %v2705
    %3069 = vmatpush2.bf16.msra.mxu0 %v2704
    %3070 = vmatprep.subr.bf16.mxu0 %v2701
    %3071 = vmatpush2.bf16.msra.mxu0 %v2700
    %3072 = vmatprep.subr.bf16.mxu0 %v2697
    %3073 = vmatpush2.bf16.msra.mxu0 %v2696
    %3074 = vmatprep.subr.bf16.mxu0 %v2693
    %3075 = vmatpush2.bf16.msra.mxu0 %v2692
    %3076 = vmatprep.subr.bf16.mxu0 %v2689
    %3077 = vmatpush2.bf16.msra.mxu0 %v2688
    %3078 = vmatprep.mubr.bf16.mxu0 %v1990
    %3079 = vmatmul.mubr.bf16.gmra.mxu0 %v1989
    %v3080 = vpop.f32.mrf.mxu0
    %v3081 = vadd.f32 %v3040, %v3080
    %v3082 = vpop.f32.mrf.mxu0
    %v3083 = vadd.f32 %v3042, %v3082
    %v3084 = vpop.f32.mrf.mxu0
    %v3085 = vpop.f32.mrf.mxu0
    %3086 = vdwg.mxu0
    %3087 = vmatprep.subr.bf16.mxu0 0
    %3088 = vmatpush1.bf16.msra.mxu0 0
    %3089 = vmatprep.subr.bf16.mxu0 0
    %3090 = vmatpush1.bf16.msra.mxu0 0
    %3091 = vmatprep.subr.bf16.mxu0 0
    %3092 = vmatpush1.bf16.msra.mxu0 0
    %3093 = vmatprep.subr.bf16.mxu0 0
    %3094 = vmatpush1.bf16.msra.mxu0 0
    %3095 = vmatprep.subr.bf16.mxu0 %v2733
    %3096 = vmatpush1.bf16.msra.mxu0 %v2732
    %3097 = vmatprep.subr.bf16.mxu0 %v2729
    %3098 = vmatpush1.bf16.msra.mxu0 %v2728
    %3099 = vmatprep.subr.bf16.mxu0 %v2725
    %3100 = vmatpush1.bf16.msra.mxu0 %v2724
    %3101 = vmatprep.subr.bf16.mxu0 %v2721
    %3102 = vmatpush1.bf16.msra.mxu0 %v2720
    %3103 = vmatprep.subr.bf16.mxu0 0
    %3104 = vmatpush2.bf16.msra.mxu0 0
    %3105 = vmatprep.subr.bf16.mxu0 0
    %3106 = vmatpush2.bf16.msra.mxu0 0
    %3107 = vmatprep.subr.bf16.mxu0 0
    %3108 = vmatpush2.bf16.msra.mxu0 0
    %3109 = vmatprep.subr.bf16.mxu0 0
    %3110 = vmatpush2.bf16.msra.mxu0 0
    %3111 = vmatprep.subr.bf16.mxu0 0
    %3112 = vmatpush2.bf16.msra.mxu0 0
    %3113 = vmatprep.subr.bf16.mxu0 0
    %3114 = vmatpush2.bf16.msra.mxu0 0
    %3115 = vmatprep.subr.bf16.mxu0 0
    %3116 = vmatpush2.bf16.msra.mxu0 0
    %3117 = vmatprep.subr.bf16.mxu0 0
    %3118 = vmatpush2.bf16.msra.mxu0 0
    %3119 = vmatprep.mubr.bf16.mxu0 0
    %3120 = vmatmul.mubr.bf16.gmra.mxu0 %v2880
    %v3121 = vpop.f32.mrf.mxu0
    %v3122 = vadd.f32 %v3081, %v3121
    %v3123 = vpop.f32.mrf.mxu0
    %v3124 = vadd.f32 %v3083, %v3123
    %v3125 = vpop.f32.mrf.mxu0
    %v3126 = vpop.f32.mrf.mxu0
    %3127 = vdwg.mxu0
    %v3128 = vmax.f32 %v2999, 0.0
    %v3129 = vmax.f32 %v3001, 0.0
    %v3130 = vmax.f32 %v3122, 0.0
    %v3131 = vmax.f32 %v3124, 0.0
    %v3132 = vld [vmem:[%s7] sm:$0xff]
    %v3133 = vld [vmem:[%s7 + $0x8] sm:$0xff]
    %v3134 = vld [vmem:[%s7 + $0x10] sm:$0xff]
    %v3135 = vld [vmem:[%s7 + $0x18] sm:$0xff]
    %v3136 = vld [vmem:[%s7 + $0x20] sm:$0xff]
    %v3137 = vld [vmem:[%s7 + $0x28] sm:$0xff]
    %v3138 = vld [vmem:[%s7 + $0x30] sm:$0xff]
    %v3139 = vld [vmem:[%s7 + $0x38] sm:$0xff]
    %v3140 = vld [vmem:[%s7 + $0x40] sm:$0xff]
    %v3141 = vld [vmem:[%s7 + $0x48] sm:$0xff]
    %v3142 = vld [vmem:[%s7 + $0x50] sm:$0xff]
    %v3143 = vld [vmem:[%s7 + $0x58] sm:$0xff]
    %v3144 = vld [vmem:[%s7 + $0x60] sm:$0xff]
    %v3145 = vld [vmem:[%s7 + $0x68] sm:$0xff]
    %v3146 = vld [vmem:[%s7 + $0x70] sm:$0xff]
    %v3147 = vld [vmem:[%s7 + $0x78] sm:$0xff]
    %v3148 = vld [vmem:[%s7 + $0x80] sm:$0xff]
    %v3149 = vld [vmem:[%s7 + $0x88] sm:$0xff]
    %v3150 = vld [vmem:[%s7 + $0x90] sm:$0xff]
    %v3151 = vld [vmem:[%s7 + $0x98] sm:$0xff]
    %v3152 = vld [vmem:[%s7 + $0xa0] sm:$0xff]
    %v3153 = vld [vmem:[%s7 + $0xa8] sm:$0xff]
    %v3154 = vld [vmem:[%s7 + $0xb0] sm:$0xff]
    %v3155 = vld [vmem:[%s7 + $0xb8] sm:$0xff]
    %v3156 = vld [vmem:[%s7 + $0xc0] sm:$0xff]
    %v3157 = vld [vmem:[%s7 + $0xc8] sm:$0xff]
    %v3158 = vld [vmem:[%s7 + $0xd0] sm:$0xff]
    %v3159 = vld [vmem:[%s7 + $0xd8] sm:$0xff]
    %v3160 = vld [vmem:[%s7 + $0xe0] sm:$0xff]
    %v3161 = vld [vmem:[%s7 + $0xe8] sm:$0xff]
    %v3162 = vld [vmem:[%s7 + $0xf0] sm:$0xff]
    %v3163 = vld [vmem:[%s7 + $0xf8] sm:$0xff]
    %v3164 = vld [vmem:[%s7 + $0x100] sm:$0xff]
    %v3165 = vld [vmem:[%s7 + $0x108] sm:$0xff]
    %v3166 = vld [vmem:[%s7 + $0x110] sm:$0xff]
    %v3167 = vld [vmem:[%s7 + $0x118] sm:$0xff]
    %v3168 = vld [vmem:[%s7 + $0x120] sm:$0xff]
    %v3169 = vld [vmem:[%s7 + $0x128] sm:$0xff]
    %v3170 = vld [vmem:[%s7 + $0x130] sm:$0xff]
    %v3171 = vld [vmem:[%s7 + $0x138] sm:$0xff]
    %v3172 = vld [vmem:[%s7 + $0x140] sm:$0xff]
    %v3173 = vld [vmem:[%s7 + $0x148] sm:$0xff]
    %v3174 = vld [vmem:[%s7 + $0x150] sm:$0xff]
    %v3175 = vld [vmem:[%s7 + $0x158] sm:$0xff]
    %v3176 = vld [vmem:[%s7 + $0x160] sm:$0xff]
    %v3177 = vld [vmem:[%s7 + $0x168] sm:$0xff]
    %v3178 = vld [vmem:[%s7 + $0x170] sm:$0xff]
    %v3179 = vld [vmem:[%s7 + $0x178] sm:$0xff]
    %v3180 = vld [vmem:[%s7 + $0x180] sm:$0xff]
    %v3181 = vld [vmem:[%s7 + $0x188] sm:$0xff]
    %v3182 = vld [vmem:[%s7 + $0x190] sm:$0xff]
    %v3183 = vld [vmem:[%s7 + $0x198] sm:$0xff]
    %v3184 = vld [vmem:[%s7 + $0x1a0] sm:$0xff]
    %v3185 = vld [vmem:[%s7 + $0x1a8] sm:$0xff]
    %v3186 = vld [vmem:[%s7 + $0x1b0] sm:$0xff]
    %v3187 = vld [vmem:[%s7 + $0x1b8] sm:$0xff]
    %v3188 = vld [vmem:[%s7 + $0x1c0] sm:$0xff]
    %v3189 = vld [vmem:[%s7 + $0x1c8] sm:$0xff]
    %v3190 = vld [vmem:[%s7 + $0x1d0] sm:$0xff]
    %v3191 = vld [vmem:[%s7 + $0x1d8] sm:$0xff]
    %v3192 = vld [vmem:[%s7 + $0x1e0] sm:$0xff]
    %v3193 = vld [vmem:[%s7 + $0x1e8] sm:$0xff]
    %v3194 = vld [vmem:[%s7 + $0x1f0] sm:$0xff]
    %v3195 = vld [vmem:[%s7 + $0x1f8] sm:$0xff]
    %v3196 = vld [vmem:[%s8] sm:$0x1]
    %v3198 = vlaneseq
    %v3199 = vshrl.u32 %v3198, 7
    %v3200 = vsub.s32 0, %v3199
    %v3201 = vrot.slane %v3196, %v3200
    %3203 = vmatprep.subr.mxu0 0.0
    %3204 = vmatpush1.msra.mxu0 %v3147
    %3205 = vmatprep.subr.mxu0 0.0
    %3206 = vmatpush1.msra.mxu0 %v3146
    %3207 = vmatprep.subr.mxu0 0.0
    %3208 = vmatpush1.msra.mxu0 %v3145
    %3209 = vmatprep.subr.mxu0 0.0
    %3210 = vmatpush1.msra.mxu0 %v3144
    %3211 = vmatprep.subr.mxu0 0.0
    %3212 = vmatpush1.msra.mxu0 %v3143
    %3213 = vmatprep.subr.mxu0 0.0
    %3214 = vmatpush1.msra.mxu0 %v3142
    %3215 = vmatprep.subr.mxu0 0.0
    %3216 = vmatpush1.msra.mxu0 %v3141
    %3217 = vmatprep.subr.mxu0 0.0
    %3218 = vmatpush1.msra.mxu0 %v3140
    %3219 = vmatprep.subr.mxu0 0.0
    %3220 = vmatpush1.msra.mxu0 %v3139
    %3221 = vmatprep.subr.mxu0 0.0
    %3222 = vmatpush1.msra.mxu0 %v3138
    %3223 = vmatprep.subr.mxu0 0.0
    %3224 = vmatpush1.msra.mxu0 %v3137
    %3225 = vmatprep.subr.mxu0 0.0
    %3226 = vmatpush1.msra.mxu0 %v3136
    %3227 = vmatprep.subr.mxu0 0.0
    %3228 = vmatpush1.msra.mxu0 %v3135
    %3229 = vmatprep.subr.mxu0 0.0
    %3230 = vmatpush1.msra.mxu0 %v3134
    %3231 = vmatprep.subr.mxu0 0.0
    %3232 = vmatpush1.msra.mxu0 %v3133
    %3233 = vmatprep.subr.mxu0 0.0
    %3234 = vmatpush1.msra.mxu0 %v3132
    %3235 = vmatprep.subr.mxu0 0.0
    %3236 = vmatpush2.msra.mxu0 %v3163
    %3237 = vmatprep.subr.mxu0 0.0
    %3238 = vmatpush2.msra.mxu0 %v3162
    %3239 = vmatprep.subr.mxu0 0.0
    %3240 = vmatpush2.msra.mxu0 %v3161
    %3241 = vmatprep.subr.mxu0 0.0
    %3242 = vmatpush2.msra.mxu0 %v3160
    %3243 = vmatprep.subr.mxu0 0.0
    %3244 = vmatpush2.msra.mxu0 %v3159
    %3245 = vmatprep.subr.mxu0 0.0
    %3246 = vmatpush2.msra.mxu0 %v3158
    %3247 = vmatprep.subr.mxu0 0.0
    %3248 = vmatpush2.msra.mxu0 %v3157
    %3249 = vmatprep.subr.mxu0 0.0
    %3250 = vmatpush2.msra.mxu0 %v3156
    %3251 = vmatprep.subr.mxu0 0.0
    %3252 = vmatpush2.msra.mxu0 %v3155
    %3253 = vmatprep.subr.mxu0 0.0
    %3254 = vmatpush2.msra.mxu0 %v3154
    %3255 = vmatprep.subr.mxu0 0.0
    %3256 = vmatpush2.msra.mxu0 %v3153
    %3257 = vmatprep.subr.mxu0 0.0
    %3258 = vmatpush2.msra.mxu0 %v3152
    %3259 = vmatprep.subr.mxu0 0.0
    %3260 = vmatpush2.msra.mxu0 %v3151
    %3261 = vmatprep.subr.mxu0 0.0
    %3262 = vmatpush2.msra.mxu0 %v3150
    %3263 = vmatprep.subr.mxu0 0.0
    %3264 = vmatpush2.msra.mxu0 %v3149
    %3265 = vmatprep.subr.mxu0 0.0
    %3266 = vmatpush2.msra.mxu0 %v3148
    %3267 = vmatprep.mubr.f32.mxu0 %v3129
    %3268 = vmatmul.mubr.f32.gmra.mxu0 %v3128
    %v3269 = vpop.f32.mrf.mxu0
    %v3270 = vadd.f32 %v3201, %v3269
    %v3271 = vpop.f32.mrf.mxu0
    %3272 = vdwg.mxu0
    %3273 = vmatprep.subr.mxu0 0.0
    %3274 = vmatpush1.msra.mxu0 %v3179
    %3275 = vmatprep.subr.mxu0 0.0
    %3276 = vmatpush1.msra.mxu0 %v3178
    %3277 = vmatprep.subr.mxu0 0.0
    %3278 = vmatpush1.msra.mxu0 %v3177
    %3279 = vmatprep.subr.mxu0 0.0
    %3280 = vmatpush1.msra.mxu0 %v3176
    %3281 = vmatprep.subr.mxu0 0.0
    %3282 = vmatpush1.msra.mxu0 %v3175
    %3283 = vmatprep.subr.mxu0 0.0
    %3284 = vmatpush1.msra.mxu0 %v3174
    %3285 = vmatprep.subr.mxu0 0.0
    %3286 = vmatpush1.msra.mxu0 %v3173
    %3287 = vmatprep.subr.mxu0 0.0
    %3288 = vmatpush1.msra.mxu0 %v3172
    %3289 = vmatprep.subr.mxu0 0.0
    %3290 = vmatpush1.msra.mxu0 %v3171
    %3291 = vmatprep.subr.mxu0 0.0
    %3292 = vmatpush1.msra.mxu0 %v3170
    %3293 = vmatprep.subr.mxu0 0.0
    %3294 = vmatpush1.msra.mxu0 %v3169
    %3295 = vmatprep.subr.mxu0 0.0
    %3296 = vmatpush1.msra.mxu0 %v3168
    %3297 = vmatprep.subr.mxu0 0.0
    %3298 = vmatpush1.msra.mxu0 %v3167
    %3299 = vmatprep.subr.mxu0 0.0
    %3300 = vmatpush1.msra.mxu0 %v3166
    %3301 = vmatprep.subr.mxu0 0.0
    %3302 = vmatpush1.msra.mxu0 %v3165
    %3303 = vmatprep.subr.mxu0 0.0
    %3304 = vmatpush1.msra.mxu0 %v3164
    %3305 = vmatprep.subr.mxu0 0.0
    %3306 = vmatpush2.msra.mxu0 %v3195
    %3307 = vmatprep.subr.mxu0 0.0
    %3308 = vmatpush2.msra.mxu0 %v3194
    %3309 = vmatprep.subr.mxu0 0.0
    %3310 = vmatpush2.msra.mxu0 %v3193
    %3311 = vmatprep.subr.mxu0 0.0
    %3312 = vmatpush2.msra.mxu0 %v3192
    %3313 = vmatprep.subr.mxu0 0.0
    %3314 = vmatpush2.msra.mxu0 %v3191
    %3315 = vmatprep.subr.mxu0 0.0
    %3316 = vmatpush2.msra.mxu0 %v3190
    %3317 = vmatprep.subr.mxu0 0.0
    %3318 = vmatpush2.msra.mxu0 %v3189
    %3319 = vmatprep.subr.mxu0 0.0
    %3320 = vmatpush2.msra.mxu0 %v3188
    %3321 = vmatprep.subr.mxu0 0.0
    %3322 = vmatpush2.msra.mxu0 %v3187
    %3323 = vmatprep.subr.mxu0 0.0
    %3324 = vmatpush2.msra.mxu0 %v3186
    %3325 = vmatprep.subr.mxu0 0.0
    %3326 = vmatpush2.msra.mxu0 %v3185
    %3327 = vmatprep.subr.mxu0 0.0
    %3328 = vmatpush2.msra.mxu0 %v3184
    %3329 = vmatprep.subr.mxu0 0.0
    %3330 = vmatpush2.msra.mxu0 %v3183
    %3331 = vmatprep.subr.mxu0 0.0
    %3332 = vmatpush2.msra.mxu0 %v3182
    %3333 = vmatprep.subr.mxu0 0.0
    %3334 = vmatpush2.msra.mxu0 %v3181
    %3335 = vmatprep.subr.mxu0 0.0
    %3336 = vmatpush2.msra.mxu0 %v3180
    %3337 = vmatprep.mubr.f32.mxu0 %v3131
    %3338 = vmatmul.mubr.f32.gmra.mxu0 %v3130
    %v3339 = vpop.f32.mrf.mxu0
    %v3340 = vadd.f32 %v3270, %v3339
    %v3341 = vpop.f32.mrf.mxu0
    %3342 = vdwg.mxu0
    %vm3343 = vcmask 80896
    %v3344 = vsel %vm3343, %v3340, -inf
    %3345 = vmax.xlane.f32.xlu0 %v3344
    %v3346 = vpop.xlane.xlu0 %3345
    %v3347 = vsub.f32 %v3340, %v3346
    %v3348 = vmul.f32 %v3347, 1.442695
    %v3349 = vpow.pop %v3348
    %v3350 = vsel %vm3343, %v3349, 0.0
    %3351 = vadd.xlane.f32.xlu0 %v3350
    %v3352 = vpop.xlane.xlu0 %3351
    %v3353 = vrcp.pop %v3352
    %v3354 = vmul.f32 %v3349, %v3353
    %3355 = vst.msk [vmem:[#allocation7] sm:$0xff] %vm3343, %v3354
    // Predicated region
    $region46: #{tpu_custom_call.1} parent=1 // pred_check
      _
    $region47: #{tpu_custom_call.1} parent=1 // pred_check_branch
      %3357 = sbr.rel (0) target = $region49
    $region48: #{tpu_custom_call.1} parent=1 // pred_region
      %s3359 = ssub.s32 128, 128
      %3360 = vsyncadd [#allocation4], %s3359
      %s3362 = sshll.u32 [#allocation7], 4
      %s3363 = int_to_ptr.vmem [resolvable:$true] %s3362
      %3365 = dma.vmem_to_hbm [thread:$0]  %s3363, 128, %s9, [#allocation4]
    $region49: #{tpu_custom_call.1} parent=1 // pred_fallthru
      _
    // Predicated region
    $region50: #{tpu_custom_call.1} parent=1 // pred_check
      _
    $region51: #{tpu_custom_call.1} parent=1 // pred_check_branch
      %3367 = sbr.rel (0) target = $region53
    $region52: #{tpu_custom_call.1} parent=1 // pred_region
      %3368 = dma.done [#allocation4], 128
    $region53: #{tpu_custom_call.1} parent=1 // pred_fallthru
      _
    %3369 = vsyncpa [#allocation3], 1
    %3370 = vsyncpa [#allocation6], 1
    %3371 = vsyncpa [#allocation4], 1

</llo_original>
